<compile_context>
chip_gen: v7x
topology: tpu7x:2x2x1
jax: 0.10.0
libtpu: 0.0.40
codegen_flags: <defaults>
</compile_context>

<pallas_src>
import math
import numpy as np
import jax
import jax.numpy as jnp
from jax.experimental import pallas as pl
from jax.experimental.pallas import tpu as pltpu

PI = math.pi

# ----------------------------- model config (small) -----------------------------
PARAM_DIM  = 1
EMB        = 32                         # embedding_size
N_HEAD     = 2
N_HID      = 64
N_LAYERS   = 2
PHYS_DIM   = 2
N_DIM      = 1
N_SPINS    = 8                          # prod(system_size)
BATCH      = 4

PREFIX_LEN = N_DIM + PARAM_DIM                         # 2
INPUT_DIM  = PHYS_DIM + N_DIM + 2 + PARAM_DIM          # 6
SEQ        = PREFIX_LEN + N_SPINS                      # 10
TOK        = BATCH * SEQ                               # 40 flattened token rows
HEAD_DIM   = EMB // N_HEAD                             # 16
SCALE_EMB  = math.sqrt(EMB)
F32 = jnp.float32


# ----------------------------------- kernel --------------------------------------
def _layernorm(y, g, b, eps=1e-5):
    mean = jnp.mean(y, axis=-1, keepdims=True)
    var = jnp.mean((y - mean) ** 2, axis=-1, keepdims=True)
    return (y - mean) * jax.lax.rsqrt(var + eps) * g + b


def tqs_kernel(src_ref, pos_ref, mask_ref,
               enc_w_ref, enc_b_ref,
               wqkv_ref, bqkv_ref, wo_ref, bo_ref,
               w1_ref, b1_ref, w2_ref, b2_ref, ln_ref,
               head_w_ref, head_b_ref,
               out_ref):
    # All tensors are 2-D with TOK = BATCH*SEQ token rows; weights are pre-transposed
    # for right-multiplication. sqrt(EMB) is already folded into enc_w/enc_b.
    x = jnp.dot(src_ref[...], enc_w_ref[...], preferred_element_type=F32) + enc_b_ref[...]
    x = x + pos_ref[...]                                               # (TOK, EMB)

    mask = mask_ref[...]                                               # (TOK, TOK) block-diag causal
    inv_sqrt_hd = 1.0 / math.sqrt(HEAD_DIM)

    for l in range(N_LAYERS):
        ln = ln_ref[l]                                                 # (4, EMB): g1, b1, g2, b2

        # ---- multi-head self-attention (post-norm), fused QKV projection ----
        qkv = jnp.dot(x, wqkv_ref[l], preferred_element_type=F32) + bqkv_ref[l]   # (TOK, 3*EMB)
        heads = []
        for h in range(N_HEAD):
            q = qkv[:, h * HEAD_DIM:(h + 1) * HEAD_DIM]                # (TOK, HEAD_DIM)
            k = qkv[:, EMB + h * HEAD_DIM:EMB + (h + 1) * HEAD_DIM]
            v = qkv[:, 2 * EMB + h * HEAD_DIM:2 * EMB + (h + 1) * HEAD_DIM]
            s = jnp.einsum('td,sd->ts', q, k,
                           preferred_element_type=F32) * inv_sqrt_hd + mask
            s = s - jnp.max(s, axis=-1, keepdims=True)
            p = jnp.exp(s)                                             # masked entries -> exactly 0
            p = p * pl.reciprocal(jnp.sum(p, axis=-1, keepdims=True), approx=True)
            heads.append(jnp.dot(p, v, preferred_element_type=F32))    # (TOK, HEAD_DIM)
        attn = jnp.concatenate(heads, axis=-1)                         # (TOK, EMB)
        attn = jnp.dot(attn, wo_ref[l], preferred_element_type=F32) + bo_ref[l]
        x = _layernorm(x + attn, ln[0:1], ln[1:2])

        # ---- feed-forward (ReLU) ----
        ff = jnp.maximum(
            jnp.dot(x, w1_ref[l], preferred_element_type=F32) + b1_ref[l], 0.0)
        ff = jnp.dot(ff, w2_ref[l], preferred_element_type=F32) + b2_ref[l]
        x = _layernorm(x + ff, ln[2:3], ln[3:4])

    # ---- fused amp|phase head: one (TOK, EMB) x (EMB, 2*PHYS_DIM) matmul ----
    hp = jnp.dot(x, head_w_ref[...], preferred_element_type=F32) + head_b_ref[...]
    amp_logits = hp[:, :PHYS_DIM]
    ph = hp[:, PHYS_DIM:]

    # log_softmax over phys_dim
    m = jnp.max(amp_logits, axis=-1, keepdims=True)
    lse = m + jnp.log(jnp.sum(jnp.exp(amp_logits - m), axis=-1, keepdims=True))
    amp = amp_logits - lse

    # softsign -> 2*pi*(1 + x/(1+|x|))
    phase = 2.0 * PI * (1.0 + ph * pl.reciprocal(1.0 + jnp.abs(ph), approx=True))

    out_ref[...] = jnp.concatenate([amp, phase], axis=-1)              # (TOK, 2*PHYS_DIM)


# ----------------------------------- wrapper --------------------------------------
def _full_spec(arr):
    nd = arr.ndim
    return pl.BlockSpec(arr.shape, lambda i, _nd=nd: (0,) * _nd)


def tqs_forward(src2d, pos2d, mask2d, packed):
    inputs = (src2d, pos2d, mask2d) + tuple(packed)
    in_specs = [_full_spec(a) for a in inputs]

    out_shape = jax.ShapeDtypeStruct((TOK, 2 * PHYS_DIM), F32)
    out_specs = pl.BlockSpec((TOK, 2 * PHYS_DIM), lambda i: (0, 0))

    out = pl.pallas_call(
        tqs_kernel,
        out_shape=out_shape,
        grid=(1,),                                 # whole problem in one grid step
        in_specs=in_specs,
        out_specs=out_specs,
        compiler_params=pltpu.CompilerParams(
            dimension_semantics=("arbitrary",)),
    )(*inputs)

    out = out.reshape(BATCH, SEQ, 2 * PHYS_DIM)
    # psi_output = output[seq_prefix_len - 1:]  -> (n+1, batch, phys_dim)
    amp = jnp.transpose(out[:, PREFIX_LEN - 1:, :PHYS_DIM], (1, 0, 2))
    phase = jnp.transpose(out[:, PREFIX_LEN - 1:, PHYS_DIM:], (1, 0, 2))
    return amp, phase


# ------------------------------ glue: input building -------------------------------
def init_seq(system_size, param):
    """Replicates TransformerModel.init_seq -> prefix (PREFIX_LEN, 1, INPUT_DIM)."""
    parity = (system_size % 2).astype(F32)
    size_input = jnp.diag(jnp.log(system_size.astype(F32)))           # (N_DIM, N_DIM)
    init = jnp.zeros((PREFIX_LEN, 1, INPUT_DIM), F32)
    init = init.at[:N_DIM, :, PHYS_DIM:PHYS_DIM + N_DIM].set(size_input[:, None, :])
    init = init.at[:N_DIM, :, PHYS_DIM + N_DIM].set(parity[:, None])
    param_offset = PHYS_DIM + N_DIM + 2
    for i in range(PARAM_DIM):
        init = init.at[N_DIM + i, :, param_offset + i].add(param[i])
    return init


def wrap_spins(prefix, spins):
    """Replicates TransformerModel.wrap_spins -> (SEQ, batch, INPUT_DIM)."""
    n, batch = spins.shape
    src = jnp.zeros((PREFIX_LEN + n, batch, INPUT_DIM), F32)
    src = src.at[:PREFIX_LEN].set(jnp.broadcast_to(prefix, (PREFIX_LEN, batch, INPUT_DIM)))
    one_hot = jax.nn.one_hot(spins.astype(jnp.int32), PHYS_DIM, dtype=F32)
    src = src.at[PREFIX_LEN:, :, :PHYS_DIM].set(one_hot)
    return src


def sinusoidal_pe(max_len, d_model):
    position = np.arange(max_len)[:, None].astype(np.float64)
    div_term = np.exp(np.arange(0, d_model, 2) * (-math.log(10000.0) / d_model))
    pe = np.zeros((max_len, d_model), dtype=np.float32)
    pe[:, 0::2] = np.sin(position * div_term)
    pe[:, 1::2] = np.cos(position * div_term)
    return jnp.asarray(pe)


def block_causal_mask(batch, seq):
    """Additive mask on flattened tokens: causal within a batch element, -inf across."""
    tok = batch * seq
    b_idx = jnp.arange(tok) // seq
    s_idx = jnp.arange(tok) % seq
    same_b = b_idx[:, None] == b_idx[None, :]
    causal = s_idx[None, :] <= s_idx[:, None]
    return jnp.where(same_b & causal, 0.0, -1e30).astype(F32)


# ------------------------------ parameter construction ------------------------------
def make_params(key):
    """Synthetic parameters in PyTorch layout (nn.Linear weight = (out, in))."""
    ks = jax.random.split(key, 8)
    initrange = 0.1

    def uni(k, shape, a):
        return jax.random.uniform(k, shape, F32, -a, a)

    # init_weights(): encoder / amp_head / phase_head ~ U(-0.1, 0.1), zero bias
    enc_w = uni(ks[0], (EMB, INPUT_DIM), initrange)
    enc_b = jnp.zeros((EMB,), F32)
    ampw = uni(ks[1], (PHYS_DIM, EMB), initrange)
    ampb = jnp.zeros((PHYS_DIM,), F32)
    phw = uni(ks[2], (PHYS_DIM, EMB), initrange)
    phb = jnp.zeros((PHYS_DIM,), F32)

    # TransformerEncoderLayer weights (deterministic synthetic init)
    in_proj_w = uni(ks[3], (N_LAYERS, 3 * EMB, EMB), 0.08)   # MHA in_proj_weight
    in_proj_b = jnp.zeros((N_LAYERS, 3 * EMB), F32)
    out_proj_w = uni(ks[4], (N_LAYERS, EMB, EMB), 0.08)
    out_proj_b = jnp.zeros((N_LAYERS, EMB), F32)
    lin1_w = uni(ks[5], (N_LAYERS, N_HID, EMB), 0.08)
    lin1_b = jnp.zeros((N_LAYERS, N_HID), F32)
    lin2_w = uni(ks[6], (N_LAYERS, EMB, N_HID), 0.08)
    lin2_b = jnp.zeros((N_LAYERS, EMB), F32)
    g1 = jnp.ones((N_LAYERS, EMB), F32)
    be1 = jnp.zeros((N_LAYERS, EMB), F32)
    g2 = jnp.ones((N_LAYERS, EMB), F32)
    be2 = jnp.zeros((N_LAYERS, EMB), F32)

    return (enc_w, enc_b, ampw, ampb, phw, phb,
            in_proj_w, in_proj_b, out_proj_w, out_proj_b,
            lin1_w, lin1_b, lin2_w, lin2_b, g1, be1, g2, be2)


def pack_params(params):
    """Pre-transpose for right-multiplication, fuse QKV / heads, fold sqrt(EMB)."""
    (enc_w, enc_b, ampw, ampb, phw, phb,
     in_proj_w, in_proj_b, out_proj_w, out_proj_b,
     lin1_w, lin1_b, lin2_w, lin2_b, g1, be1, g2, be2) = params

    enc_w_p = (enc_w.T * SCALE_EMB).astype(F32)                    # (INPUT_DIM, EMB)
    enc_b_p = (enc_b * SCALE_EMB).reshape(1, EMB)

    wqkv = jnp.transpose(in_proj_w, (0, 2, 1))                     # (L, EMB, 3*EMB)
    bqkv = in_proj_b.reshape(N_LAYERS, 1, 3 * EMB)
    wo = jnp.transpose(out_proj_w, (0, 2, 1))                      # (L, EMB, EMB)
    bo = out_proj_b.reshape(N_LAYERS, 1, EMB)

    w1 = jnp.transpose(lin1_w, (0, 2, 1))                          # (L, EMB, N_HID)
    b1 = lin1_b.reshape(N_LAYERS, 1, N_HID)
    w2 = jnp.transpose(lin2_w, (0, 2, 1))                          # (L, N_HID, EMB)
    b2 = lin2_b.reshape(N_LAYERS, 1, EMB)

    ln = jnp.stack([g1, be1, g2, be2], axis=1)                     # (L, 4, EMB)

    head_w = jnp.concatenate([ampw.T, phw.T], axis=1)              # (EMB, 2*PHYS_DIM)
    head_b = jnp.concatenate([ampb, phb]).reshape(1, 2 * PHYS_DIM)

    return (enc_w_p, enc_b_p, wqkv, bqkv, wo, bo,
            w1, b1, w2, b2, ln, head_w, head_b)


# ----------------------------------------- main -------------------------------------
if __name__ == "__main__":
    key = jax.random.PRNGKey(0)
    k_param, k_spins = jax.random.split(key)

    # set_param() equivalent (deterministic): system_size = [8], param = [1.0]
    system_size = jnp.array([N_SPINS], dtype=jnp.int32)
    param = jnp.array([1.0], F32)
    prefix = init_seq(system_size, param)

    # spins: (n, batch) in {0, 1}
    spins = jax.random.randint(k_spins, (N_SPINS, BATCH), 0, PHYS_DIM)

    # build src (seq, batch, input_dim), flatten to batch-major token rows (TOK, INPUT_DIM)
    src = wrap_spins(prefix, spins)
    src2d = jnp.transpose(src, (1, 0, 2)).reshape(TOK, INPUT_DIM).astype(F32)

    # positional encoding added only to spin positions (after the prefix), tiled per batch
    pe = sinusoidal_pe(N_SPINS, EMB)
    pos = jnp.concatenate([jnp.zeros((PREFIX_LEN, EMB), F32), pe], axis=0)   # (SEQ, EMB)
    pos2d = jnp.tile(pos, (BATCH, 1))                                        # (TOK, EMB)

    mask2d = block_causal_mask(BATCH, SEQ)                                   # (TOK, TOK)

    params = make_params(k_param)
    packed = pack_params(params)

    amp, phase = tqs_forward(src2d, pos2d, mask2d, packed)
    amp = jax.block_until_ready(amp)
    phase = jax.block_until_ready(phase)

    assert amp.shape == (N_SPINS + 1, BATCH, PHYS_DIM)
    assert phase.shape == (N_SPINS + 1, BATCH, PHYS_DIM)
    assert bool(jnp.all(jnp.isfinite(amp))) and bool(jnp.all(jnp.isfinite(phase)))
    # log_softmax rows should exponentiate-sum to ~1
    assert bool(jnp.allclose(jnp.exp(amp).sum(-1), 1.0, atol=1e-4))
    # phase is in (0, 4*pi) by construction of the softsign
    assert bool(jnp.all(phase > 0.0)) and bool(jnp.all(phase < 4.0 * PI))

    print("KERNEL_OK")
</pallas_src>

<mosaic_0001>
module attributes {stable_mosaic.version = 11 : i64} {
  func.func @tqs_kernel(%arg0: i32, %arg1: memref<40x6xf32, #tpu.memory_space<vmem>>, %arg2: memref<40x32xf32, #tpu.memory_space<vmem>>, %arg3: memref<40x40xf32, #tpu.memory_space<vmem>>, %arg4: memref<6x32xf32, #tpu.memory_space<vmem>>, %arg5: memref<1x32xf32, #tpu.memory_space<vmem>>, %arg6: memref<2x32x96xf32, #tpu.memory_space<vmem>>, %arg7: memref<2x1x96xf32, #tpu.memory_space<vmem>>, %arg8: memref<2x32x32xf32, #tpu.memory_space<vmem>>, %arg9: memref<2x1x32xf32, #tpu.memory_space<vmem>>, %arg10: memref<2x32x64xf32, #tpu.memory_space<vmem>>, %arg11: memref<2x1x64xf32, #tpu.memory_space<vmem>>, %arg12: memref<2x64x32xf32, #tpu.memory_space<vmem>>, %arg13: memref<2x1x32xf32, #tpu.memory_space<vmem>>, %arg14: memref<2x4x32xf32, #tpu.memory_space<vmem>>, %arg15: memref<32x4xf32, #tpu.memory_space<vmem>>, %arg16: memref<1x4xf32, #tpu.memory_space<vmem>>, %arg17: memref<40x4xf32, #tpu.memory_space<vmem>>) attributes {dimension_semantics = [#tpu.dimension_semantics<arbitrary>], iteration_bounds = array<i64: 1>, scalar_prefetch = 0 : i64, scratch_operands = 0 : i64, tpu.core_type = #tpu.core_type<tc>, window_params = [{pipeline_mode = #tpu.pipeline_mode<synchronous>, transform_indices = @transform_0, window_bounds = array<i64: 40, 6>}, {pipeline_mode = #tpu.pipeline_mode<synchronous>, transform_indices = @transform_1, window_bounds = array<i64: 40, 32>}, {pipeline_mode = #tpu.pipeline_mode<synchronous>, transform_indices = @transform_2, window_bounds = array<i64: 40, 40>}, {pipeline_mode = #tpu.pipeline_mode<synchronous>, transform_indices = @transform_3, window_bounds = array<i64: 6, 32>}, {pipeline_mode = #tpu.pipeline_mode<synchronous>, transform_indices = @transform_4, window_bounds = array<i64: 1, 32>}, {pipeline_mode = #tpu.pipeline_mode<synchronous>, transform_indices = @transform_5, window_bounds = array<i64: 2, 32, 96>}, {pipeline_mode = #tpu.pipeline_mode<synchronous>, transform_indices = @transform_6, window_bounds = array<i64: 2, 1, 96>}, {pipeline_mode = #tpu.pipeline_mode<synchronous>, transform_indices = @transform_7, window_bounds = array<i64: 2, 32, 32>}, {pipeline_mode = #tpu.pipeline_mode<synchronous>, transform_indices = @transform_8, window_bounds = array<i64: 2, 1, 32>}, {pipeline_mode = #tpu.pipeline_mode<synchronous>, transform_indices = @transform_9, window_bounds = array<i64: 2, 32, 64>}, {pipeline_mode = #tpu.pipeline_mode<synchronous>, transform_indices = @transform_10, window_bounds = array<i64: 2, 1, 64>}, {pipeline_mode = #tpu.pipeline_mode<synchronous>, transform_indices = @transform_11, window_bounds = array<i64: 2, 64, 32>}, {pipeline_mode = #tpu.pipeline_mode<synchronous>, transform_indices = @transform_12, window_bounds = array<i64: 2, 1, 32>}, {pipeline_mode = #tpu.pipeline_mode<synchronous>, transform_indices = @transform_13, window_bounds = array<i64: 2, 4, 32>}, {pipeline_mode = #tpu.pipeline_mode<synchronous>, transform_indices = @transform_14, window_bounds = array<i64: 32, 4>}, {pipeline_mode = #tpu.pipeline_mode<synchronous>, transform_indices = @transform_15, window_bounds = array<i64: 1, 4>}, {pipeline_mode = #tpu.pipeline_mode<synchronous>, transform_indices = @transform_16, window_bounds = array<i64: 40, 4>}]} {
    %c0 = arith.constant 0 : index
    %c0_0 = arith.constant 0 : index
    %0 = vector.load %arg1[%c0, %c0_0] : memref<40x6xf32, #tpu.memory_space<vmem>>, vector<40x6xf32>
    %c0_1 = arith.constant 0 : index
    %c0_2 = arith.constant 0 : index
    %1 = vector.load %arg4[%c0_1, %c0_2] : memref<6x32xf32, #tpu.memory_space<vmem>>, vector<6x32xf32>
    %cst = arith.constant dense<0.000000e+00> : vector<40x32xf32>
    %2 = tpu.matmul %0, %1, %cst {dimension_numbers = #tpu.dot_dimension_numbers<[1], [0], [0], [1], [0, 0, 1, 1], [], []>} : vector<40x6xf32>, vector<6x32xf32>, vector<40x32xf32> -> vector<40x32xf32>
    %c0_3 = arith.constant 0 : index
    %c0_4 = arith.constant 0 : index
    %3 = vector.load %arg5[%c0_3, %c0_4] : memref<1x32xf32, #tpu.memory_space<vmem>>, vector<1x32xf32>
    %4 = vector.broadcast %3 : vector<1x32xf32> to vector<40x32xf32>
    %5 = arith.addf %2, %4 : vector<40x32xf32>
    %c0_5 = arith.constant 0 : index
    %c0_6 = arith.constant 0 : index
    %6 = vector.load %arg2[%c0_5, %c0_6] : memref<40x32xf32, #tpu.memory_space<vmem>>, vector<40x32xf32>
    %7 = arith.addf %5, %6 : vector<40x32xf32>
    %c0_7 = arith.constant 0 : index
    %c0_8 = arith.constant 0 : index
    %8 = vector.load %arg3[%c0_7, %c0_8] : memref<40x40xf32, #tpu.memory_space<vmem>>, vector<40x40xf32>
    %c0_9 = arith.constant 0 : index
    %c0_10 = arith.constant 0 : index
    %c0_11 = arith.constant 0 : index
    %9 = vector.load %arg14[%c0_9, %c0_10, %c0_11] : memref<2x4x32xf32, #tpu.memory_space<vmem>>, vector<1x4x32xf32>
    %10 = vector.shape_cast %9 : vector<1x4x32xf32> to vector<4x32xf32>
    %c0_12 = arith.constant 0 : index
    %c0_13 = arith.constant 0 : index
    %c0_14 = arith.constant 0 : index
    %11 = vector.load %arg6[%c0_12, %c0_13, %c0_14] : memref<2x32x96xf32, #tpu.memory_space<vmem>>, vector<1x32x96xf32>
    %12 = vector.shape_cast %11 : vector<1x32x96xf32> to vector<32x96xf32>
    %cst_15 = arith.constant dense<0.000000e+00> : vector<40x96xf32>
    %13 = tpu.matmul %7, %12, %cst_15 {dimension_numbers = #tpu.dot_dimension_numbers<[1], [0], [0], [1], [0, 0, 1, 1], [], []>} : vector<40x32xf32>, vector<32x96xf32>, vector<40x96xf32> -> vector<40x96xf32>
    %c0_16 = arith.constant 0 : index
    %c0_17 = arith.constant 0 : index
    %c0_18 = arith.constant 0 : index
    %14 = vector.load %arg7[%c0_16, %c0_17, %c0_18] : memref<2x1x96xf32, #tpu.memory_space<vmem>>, vector<1x1x96xf32>
    %15 = vector.shape_cast %14 : vector<1x1x96xf32> to vector<1x96xf32>
    %16 = vector.broadcast %15 : vector<1x96xf32> to vector<40x96xf32>
    %17 = arith.addf %13, %16 : vector<40x96xf32>
    %18 = vector.extract_strided_slice %17 {offsets = [0, 0], sizes = [40, 16], strides = [1, 1]} : vector<40x96xf32> to vector<40x16xf32>
    %19 = vector.extract_strided_slice %17 {offsets = [0, 32], sizes = [40, 16], strides = [1, 1]} : vector<40x96xf32> to vector<40x16xf32>
    %20 = vector.extract_strided_slice %17 {offsets = [0, 64], sizes = [40, 16], strides = [1, 1]} : vector<40x96xf32> to vector<40x16xf32>
    "tpu.trace_start"() <{level = 10 : i32, message = "td,sd->ts"}> : () -> ()
    %cst_19 = arith.constant dense<0.000000e+00> : vector<40x40xf32>
    %21 = tpu.matmul %18, %19, %cst_19 {dimension_numbers = #tpu.dot_dimension_numbers<[1], [1], [0], [0], [0, 0, 1, 0], [], []>} : vector<40x16xf32>, vector<40x16xf32>, vector<40x40xf32> -> vector<40x40xf32>
    "tpu.trace_stop"() : () -> ()
    %cst_20 = arith.constant 2.500000e-01 : f32
    %22 = vector.broadcast %cst_20 : f32 to vector<40x40xf32>
    %23 = arith.mulf %21, %22 : vector<40x40xf32>
    %24 = arith.addf %23, %8 : vector<40x40xf32>
    %cst_21 = arith.constant dense<0xFF800000> : vector<40xf32>
    %25 = vector.multi_reduction <maximumf>, %24, %cst_21 [1] : vector<40x40xf32> to vector<40xf32>
    %26 = vector.shape_cast %25 : vector<40xf32> to vector<40x1xf32>
    %27 = vector.broadcast %26 : vector<40x1xf32> to vector<40x40xf32>
    %28 = arith.subf %24, %27 : vector<40x40xf32>
    %29 = math.exp %28 : vector<40x40xf32>
    %cst_22 = arith.constant dense<0.000000e+00> : vector<40xf32>
    %30 = vector.multi_reduction <add>, %29, %cst_22 [1] : vector<40x40xf32> to vector<40xf32>
    %31 = vector.shape_cast %30 : vector<40xf32> to vector<40x1xf32>
    %32 = tpu.reciprocal %31 {approx = true} : vector<40x1xf32> -> vector<40x1xf32>
    %33 = vector.broadcast %32 : vector<40x1xf32> to vector<40x40xf32>
    %34 = arith.mulf %29, %33 : vector<40x40xf32>
    %cst_23 = arith.constant dense<0.000000e+00> : vector<40x16xf32>
    %35 = tpu.matmul %34, %20, %cst_23 {dimension_numbers = #tpu.dot_dimension_numbers<[1], [0], [0], [1], [0, 0, 1, 1], [], []>} : vector<40x40xf32>, vector<40x16xf32>, vector<40x16xf32> -> vector<40x16xf32>
    %36 = vector.extract_strided_slice %17 {offsets = [0, 16], sizes = [40, 16], strides = [1, 1]} : vector<40x96xf32> to vector<40x16xf32>
    %37 = vector.extract_strided_slice %17 {offsets = [0, 48], sizes = [40, 16], strides = [1, 1]} : vector<40x96xf32> to vector<40x16xf32>
    %38 = vector.extract_strided_slice %17 {offsets = [0, 80], sizes = [40, 16], strides = [1, 1]} : vector<40x96xf32> to vector<40x16xf32>
    "tpu.trace_start"() <{level = 10 : i32, message = "td,sd->ts"}> : () -> ()
    %cst_24 = arith.constant dense<0.000000e+00> : vector<40x40xf32>
    %39 = tpu.matmul %36, %37, %cst_24 {dimension_numbers = #tpu.dot_dimension_numbers<[1], [1], [0], [0], [0, 0, 1, 0], [], []>} : vector<40x16xf32>, vector<40x16xf32>, vector<40x40xf32> -> vector<40x40xf32>
    "tpu.trace_stop"() : () -> ()
    %cst_25 = arith.constant 2.500000e-01 : f32
    %40 = vector.broadcast %cst_25 : f32 to vector<40x40xf32>
    %41 = arith.mulf %39, %40 : vector<40x40xf32>
    %42 = arith.addf %41, %8 : vector<40x40xf32>
    %cst_26 = arith.constant dense<0xFF800000> : vector<40xf32>
    %43 = vector.multi_reduction <maximumf>, %42, %cst_26 [1] : vector<40x40xf32> to vector<40xf32>
    %44 = vector.shape_cast %43 : vector<40xf32> to vector<40x1xf32>
    %45 = vector.broadcast %44 : vector<40x1xf32> to vector<40x40xf32>
    %46 = arith.subf %42, %45 : vector<40x40xf32>
    %47 = math.exp %46 : vector<40x40xf32>
    %cst_27 = arith.constant dense<0.000000e+00> : vector<40xf32>
    %48 = vector.multi_reduction <add>, %47, %cst_27 [1] : vector<40x40xf32> to vector<40xf32>
    %49 = vector.shape_cast %48 : vector<40xf32> to vector<40x1xf32>
    %50 = tpu.reciprocal %49 {approx = true} : vector<40x1xf32> -> vector<40x1xf32>
    %51 = vector.broadcast %50 : vector<40x1xf32> to vector<40x40xf32>
    %52 = arith.mulf %47, %51 : vector<40x40xf32>
    %cst_28 = arith.constant dense<0.000000e+00> : vector<40x16xf32>
    %53 = tpu.matmul %52, %38, %cst_28 {dimension_numbers = #tpu.dot_dimension_numbers<[1], [0], [0], [1], [0, 0, 1, 1], [], []>} : vector<40x40xf32>, vector<40x16xf32>, vector<40x16xf32> -> vector<40x16xf32>
    %54 = tpu.concatenate %35, %53 in 1 : vector<40x16xf32>, vector<40x16xf32> -> vector<40x32xf32>
    %c0_29 = arith.constant 0 : index
    %c0_30 = arith.constant 0 : index
    %c0_31 = arith.constant 0 : index
    %55 = vector.load %arg8[%c0_29, %c0_30, %c0_31] : memref<2x32x32xf32, #tpu.memory_space<vmem>>, vector<1x32x32xf32>
    %56 = vector.shape_cast %55 : vector<1x32x32xf32> to vector<32x32xf32>
    %cst_32 = arith.constant dense<0.000000e+00> : vector<40x32xf32>
    %57 = tpu.matmul %54, %56, %cst_32 {dimension_numbers = #tpu.dot_dimension_numbers<[1], [0], [0], [1], [0, 0, 1, 1], [], []>} : vector<40x32xf32>, vector<32x32xf32>, vector<40x32xf32> -> vector<40x32xf32>
    %c0_33 = arith.constant 0 : index
    %c0_34 = arith.constant 0 : index
    %c0_35 = arith.constant 0 : index
    %58 = vector.load %arg9[%c0_33, %c0_34, %c0_35] : memref<2x1x32xf32, #tpu.memory_space<vmem>>, vector<1x1x32xf32>
    %59 = vector.shape_cast %58 : vector<1x1x32xf32> to vector<1x32xf32>
    %60 = vector.broadcast %59 : vector<1x32xf32> to vector<40x32xf32>
    %61 = arith.addf %57, %60 : vector<40x32xf32>
    %62 = arith.addf %7, %61 : vector<40x32xf32>
    %63 = vector.extract_strided_slice %10 {offsets = [0, 0], sizes = [1, 32], strides = [1, 1]} : vector<4x32xf32> to vector<1x32xf32>
    %64 = vector.extract_strided_slice %10 {offsets = [1, 0], sizes = [1, 32], strides = [1, 1]} : vector<4x32xf32> to vector<1x32xf32>
    %cst_36 = arith.constant dense<0.000000e+00> : vector<40xf32>
    %65 = vector.multi_reduction <add>, %62, %cst_36 [1] : vector<40x32xf32> to vector<40xf32>
    %66 = vector.shape_cast %65 : vector<40xf32> to vector<40x1xf32>
    %cst_37 = arith.constant 3.200000e+01 : f32
    %67 = vector.broadcast %cst_37 : f32 to vector<40x1xf32>
    %68 = arith.divf %66, %67 : vector<40x1xf32>
    %69 = vector.broadcast %68 : vector<40x1xf32> to vector<40x32xf32>
    %70 = arith.subf %62, %69 : vector<40x32xf32>
    %71 = arith.mulf %70, %70 : vector<40x32xf32>
    %cst_38 = arith.constant dense<0.000000e+00> : vector<40xf32>
    %72 = vector.multi_reduction <add>, %71, %cst_38 [1] : vector<40x32xf32> to vector<40xf32>
    %73 = vector.shape_cast %72 : vector<40xf32> to vector<40x1xf32>
    %cst_39 = arith.constant 3.200000e+01 : f32
    %74 = vector.broadcast %cst_39 : f32 to vector<40x1xf32>
    %75 = arith.divf %73, %74 : vector<40x1xf32>
    %76 = vector.broadcast %68 : vector<40x1xf32> to vector<40x32xf32>
    %77 = arith.subf %62, %76 : vector<40x32xf32>
    %cst_40 = arith.constant 9.99999974E-6 : f32
    %78 = vector.broadcast %cst_40 : f32 to vector<40x1xf32>
    %79 = arith.addf %75, %78 : vector<40x1xf32>
    %80 = math.rsqrt %79 : vector<40x1xf32>
    %81 = vector.broadcast %80 : vector<40x1xf32> to vector<40x32xf32>
    %82 = arith.mulf %77, %81 : vector<40x32xf32>
    %83 = vector.broadcast %63 : vector<1x32xf32> to vector<40x32xf32>
    %84 = arith.mulf %82, %83 : vector<40x32xf32>
    %85 = vector.broadcast %64 : vector<1x32xf32> to vector<40x32xf32>
    %86 = arith.addf %84, %85 : vector<40x32xf32>
    %c0_41 = arith.constant 0 : index
    %c0_42 = arith.constant 0 : index
    %c0_43 = arith.constant 0 : index
    %87 = vector.load %arg10[%c0_41, %c0_42, %c0_43] : memref<2x32x64xf32, #tpu.memory_space<vmem>>, vector<1x32x64xf32>
    %88 = vector.shape_cast %87 : vector<1x32x64xf32> to vector<32x64xf32>
    %cst_44 = arith.constant dense<0.000000e+00> : vector<40x64xf32>
    %89 = tpu.matmul %86, %88, %cst_44 {dimension_numbers = #tpu.dot_dimension_numbers<[1], [0], [0], [1], [0, 0, 1, 1], [], []>} : vector<40x32xf32>, vector<32x64xf32>, vector<40x64xf32> -> vector<40x64xf32>
    %c0_45 = arith.constant 0 : index
    %c0_46 = arith.constant 0 : index
    %c0_47 = arith.constant 0 : index
    %90 = vector.load %arg11[%c0_45, %c0_46, %c0_47] : memref<2x1x64xf32, #tpu.memory_space<vmem>>, vector<1x1x64xf32>
    %91 = vector.shape_cast %90 : vector<1x1x64xf32> to vector<1x64xf32>
    %92 = vector.broadcast %91 : vector<1x64xf32> to vector<40x64xf32>
    %93 = arith.addf %89, %92 : vector<40x64xf32>
    %cst_48 = arith.constant 0.000000e+00 : f32
    %94 = vector.broadcast %cst_48 : f32 to vector<40x64xf32>
    %95 = arith.maximumf %93, %94 : vector<40x64xf32>
    %c0_49 = arith.constant 0 : index
    %c0_50 = arith.constant 0 : index
    %c0_51 = arith.constant 0 : index
    %96 = vector.load %arg12[%c0_49, %c0_50, %c0_51] : memref<2x64x32xf32, #tpu.memory_space<vmem>>, vector<1x64x32xf32>
    %97 = vector.shape_cast %96 : vector<1x64x32xf32> to vector<64x32xf32>
    %cst_52 = arith.constant dense<0.000000e+00> : vector<40x32xf32>
    %98 = tpu.matmul %95, %97, %cst_52 {dimension_numbers = #tpu.dot_dimension_numbers<[1], [0], [0], [1], [0, 0, 1, 1], [], []>} : vector<40x64xf32>, vector<64x32xf32>, vector<40x32xf32> -> vector<40x32xf32>
    %c0_53 = arith.constant 0 : index
    %c0_54 = arith.constant 0 : index
    %c0_55 = arith.constant 0 : index
    %99 = vector.load %arg13[%c0_53, %c0_54, %c0_55] : memref<2x1x32xf32, #tpu.memory_space<vmem>>, vector<1x1x32xf32>
    %100 = vector.shape_cast %99 : vector<1x1x32xf32> to vector<1x32xf32>
    %101 = vector.broadcast %100 : vector<1x32xf32> to vector<40x32xf32>
    %102 = arith.addf %98, %101 : vector<40x32xf32>
    %103 = arith.addf %86, %102 : vector<40x32xf32>
    %104 = vector.extract_strided_slice %10 {offsets = [2, 0], sizes = [1, 32], strides = [1, 1]} : vector<4x32xf32> to vector<1x32xf32>
    %105 = vector.extract_strided_slice %10 {offsets = [3, 0], sizes = [1, 32], strides = [1, 1]} : vector<4x32xf32> to vector<1x32xf32>
    %cst_56 = arith.constant dense<0.000000e+00> : vector<40xf32>
    %106 = vector.multi_reduction <add>, %103, %cst_56 [1] : vector<40x32xf32> to vector<40xf32>
    %107 = vector.shape_cast %106 : vector<40xf32> to vector<40x1xf32>
    %cst_57 = arith.constant 3.200000e+01 : f32
    %108 = vector.broadcast %cst_57 : f32 to vector<40x1xf32>
    %109 = arith.divf %107, %108 : vector<40x1xf32>
    %110 = vector.broadcast %109 : vector<40x1xf32> to vector<40x32xf32>
    %111 = arith.subf %103, %110 : vector<40x32xf32>
    %112 = arith.mulf %111, %111 : vector<40x32xf32>
    %cst_58 = arith.constant dense<0.000000e+00> : vector<40xf32>
    %113 = vector.multi_reduction <add>, %112, %cst_58 [1] : vector<40x32xf32> to vector<40xf32>
    %114 = vector.shape_cast %113 : vector<40xf32> to vector<40x1xf32>
    %cst_59 = arith.constant 3.200000e+01 : f32
    %115 = vector.broadcast %cst_59 : f32 to vector<40x1xf32>
    %116 = arith.divf %114, %115 : vector<40x1xf32>
    %117 = vector.broadcast %109 : vector<40x1xf32> to vector<40x32xf32>
    %118 = arith.subf %103, %117 : vector<40x32xf32>
    %cst_60 = arith.constant 9.99999974E-6 : f32
    %119 = vector.broadcast %cst_60 : f32 to vector<40x1xf32>
    %120 = arith.addf %116, %119 : vector<40x1xf32>
    %121 = math.rsqrt %120 : vector<40x1xf32>
    %122 = vector.broadcast %121 : vector<40x1xf32> to vector<40x32xf32>
    %123 = arith.mulf %118, %122 : vector<40x32xf32>
    %124 = vector.broadcast %104 : vector<1x32xf32> to vector<40x32xf32>
    %125 = arith.mulf %123, %124 : vector<40x32xf32>
    %126 = vector.broadcast %105 : vector<1x32xf32> to vector<40x32xf32>
    %127 = arith.addf %125, %126 : vector<40x32xf32>
    %c1 = arith.constant 1 : index
    %c0_61 = arith.constant 0 : index
    %c0_62 = arith.constant 0 : index
    %128 = vector.load %arg14[%c1, %c0_61, %c0_62] : memref<2x4x32xf32, #tpu.memory_space<vmem>>, vector<1x4x32xf32>
    %129 = vector.shape_cast %128 : vector<1x4x32xf32> to vector<4x32xf32>
    %c1_63 = arith.constant 1 : index
    %c0_64 = arith.constant 0 : index
    %c0_65 = arith.constant 0 : index
    %130 = vector.load %arg6[%c1_63, %c0_64, %c0_65] : memref<2x32x96xf32, #tpu.memory_space<vmem>>, vector<1x32x96xf32>
    %131 = vector.shape_cast %130 : vector<1x32x96xf32> to vector<32x96xf32>
    %cst_66 = arith.constant dense<0.000000e+00> : vector<40x96xf32>
    %132 = tpu.matmul %127, %131, %cst_66 {dimension_numbers = #tpu.dot_dimension_numbers<[1], [0], [0], [1], [0, 0, 1, 1], [], []>} : vector<40x32xf32>, vector<32x96xf32>, vector<40x96xf32> -> vector<40x96xf32>
    %c1_67 = arith.constant 1 : index
    %c0_68 = arith.constant 0 : index
    %c0_69 = arith.constant 0 : index
    %133 = vector.load %arg7[%c1_67, %c0_68, %c0_69] : memref<2x1x96xf32, #tpu.memory_space<vmem>>, vector<1x1x96xf32>
    %134 = vector.shape_cast %133 : vector<1x1x96xf32> to vector<1x96xf32>
    %135 = vector.broadcast %134 : vector<1x96xf32> to vector<40x96xf32>
    %136 = arith.addf %132, %135 : vector<40x96xf32>
    %137 = vector.extract_strided_slice %136 {offsets = [0, 0], sizes = [40, 16], strides = [1, 1]} : vector<40x96xf32> to vector<40x16xf32>
    %138 = vector.extract_strided_slice %136 {offsets = [0, 32], sizes = [40, 16], strides = [1, 1]} : vector<40x96xf32> to vector<40x16xf32>
    %139 = vector.extract_strided_slice %136 {offsets = [0, 64], sizes = [40, 16], strides = [1, 1]} : vector<40x96xf32> to vector<40x16xf32>
    "tpu.trace_start"() <{level = 10 : i32, message = "td,sd->ts"}> : () -> ()
    %cst_70 = arith.constant dense<0.000000e+00> : vector<40x40xf32>
    %140 = tpu.matmul %137, %138, %cst_70 {dimension_numbers = #tpu.dot_dimension_numbers<[1], [1], [0], [0], [0, 0, 1, 0], [], []>} : vector<40x16xf32>, vector<40x16xf32>, vector<40x40xf32> -> vector<40x40xf32>
    "tpu.trace_stop"() : () -> ()
    %cst_71 = arith.constant 2.500000e-01 : f32
    %141 = vector.broadcast %cst_71 : f32 to vector<40x40xf32>
    %142 = arith.mulf %140, %141 : vector<40x40xf32>
    %143 = arith.addf %142, %8 : vector<40x40xf32>
    %cst_72 = arith.constant dense<0xFF800000> : vector<40xf32>
    %144 = vector.multi_reduction <maximumf>, %143, %cst_72 [1] : vector<40x40xf32> to vector<40xf32>
    %145 = vector.shape_cast %144 : vector<40xf32> to vector<40x1xf32>
    %146 = vector.broadcast %145 : vector<40x1xf32> to vector<40x40xf32>
    %147 = arith.subf %143, %146 : vector<40x40xf32>
    %148 = math.exp %147 : vector<40x40xf32>
    %cst_73 = arith.constant dense<0.000000e+00> : vector<40xf32>
    %149 = vector.multi_reduction <add>, %148, %cst_73 [1] : vector<40x40xf32> to vector<40xf32>
    %150 = vector.shape_cast %149 : vector<40xf32> to vector<40x1xf32>
    %151 = tpu.reciprocal %150 {approx = true} : vector<40x1xf32> -> vector<40x1xf32>
    %152 = vector.broadcast %151 : vector<40x1xf32> to vector<40x40xf32>
    %153 = arith.mulf %148, %152 : vector<40x40xf32>
    %cst_74 = arith.constant dense<0.000000e+00> : vector<40x16xf32>
    %154 = tpu.matmul %153, %139, %cst_74 {dimension_numbers = #tpu.dot_dimension_numbers<[1], [0], [0], [1], [0, 0, 1, 1], [], []>} : vector<40x40xf32>, vector<40x16xf32>, vector<40x16xf32> -> vector<40x16xf32>
    %155 = vector.extract_strided_slice %136 {offsets = [0, 16], sizes = [40, 16], strides = [1, 1]} : vector<40x96xf32> to vector<40x16xf32>
    %156 = vector.extract_strided_slice %136 {offsets = [0, 48], sizes = [40, 16], strides = [1, 1]} : vector<40x96xf32> to vector<40x16xf32>
    %157 = vector.extract_strided_slice %136 {offsets = [0, 80], sizes = [40, 16], strides = [1, 1]} : vector<40x96xf32> to vector<40x16xf32>
    "tpu.trace_start"() <{level = 10 : i32, message = "td,sd->ts"}> : () -> ()
    %cst_75 = arith.constant dense<0.000000e+00> : vector<40x40xf32>
    %158 = tpu.matmul %155, %156, %cst_75 {dimension_numbers = #tpu.dot_dimension_numbers<[1], [1], [0], [0], [0, 0, 1, 0], [], []>} : vector<40x16xf32>, vector<40x16xf32>, vector<40x40xf32> -> vector<40x40xf32>
    "tpu.trace_stop"() : () -> ()
    %cst_76 = arith.constant 2.500000e-01 : f32
    %159 = vector.broadcast %cst_76 : f32 to vector<40x40xf32>
    %160 = arith.mulf %158, %159 : vector<40x40xf32>
    %161 = arith.addf %160, %8 : vector<40x40xf32>
    %cst_77 = arith.constant dense<0xFF800000> : vector<40xf32>
    %162 = vector.multi_reduction <maximumf>, %161, %cst_77 [1] : vector<40x40xf32> to vector<40xf32>
    %163 = vector.shape_cast %162 : vector<40xf32> to vector<40x1xf32>
    %164 = vector.broadcast %163 : vector<40x1xf32> to vector<40x40xf32>
    %165 = arith.subf %161, %164 : vector<40x40xf32>
    %166 = math.exp %165 : vector<40x40xf32>
    %cst_78 = arith.constant dense<0.000000e+00> : vector<40xf32>
    %167 = vector.multi_reduction <add>, %166, %cst_78 [1] : vector<40x40xf32> to vector<40xf32>
    %168 = vector.shape_cast %167 : vector<40xf32> to vector<40x1xf32>
    %169 = tpu.reciprocal %168 {approx = true} : vector<40x1xf32> -> vector<40x1xf32>
    %170 = vector.broadcast %169 : vector<40x1xf32> to vector<40x40xf32>
    %171 = arith.mulf %166, %170 : vector<40x40xf32>
    %cst_79 = arith.constant dense<0.000000e+00> : vector<40x16xf32>
    %172 = tpu.matmul %171, %157, %cst_79 {dimension_numbers = #tpu.dot_dimension_numbers<[1], [0], [0], [1], [0, 0, 1, 1], [], []>} : vector<40x40xf32>, vector<40x16xf32>, vector<40x16xf32> -> vector<40x16xf32>
    %173 = tpu.concatenate %154, %172 in 1 : vector<40x16xf32>, vector<40x16xf32> -> vector<40x32xf32>
    %c1_80 = arith.constant 1 : index
    %c0_81 = arith.constant 0 : index
    %c0_82 = arith.constant 0 : index
    %174 = vector.load %arg8[%c1_80, %c0_81, %c0_82] : memref<2x32x32xf32, #tpu.memory_space<vmem>>, vector<1x32x32xf32>
    %175 = vector.shape_cast %174 : vector<1x32x32xf32> to vector<32x32xf32>
    %cst_83 = arith.constant dense<0.000000e+00> : vector<40x32xf32>
    %176 = tpu.matmul %173, %175, %cst_83 {dimension_numbers = #tpu.dot_dimension_numbers<[1], [0], [0], [1], [0, 0, 1, 1], [], []>} : vector<40x32xf32>, vector<32x32xf32>, vector<40x32xf32> -> vector<40x32xf32>
    %c1_84 = arith.constant 1 : index
    %c0_85 = arith.constant 0 : index
    %c0_86 = arith.constant 0 : index
    %177 = vector.load %arg9[%c1_84, %c0_85, %c0_86] : memref<2x1x32xf32, #tpu.memory_space<vmem>>, vector<1x1x32xf32>
    %178 = vector.shape_cast %177 : vector<1x1x32xf32> to vector<1x32xf32>
    %179 = vector.broadcast %178 : vector<1x32xf32> to vector<40x32xf32>
    %180 = arith.addf %176, %179 : vector<40x32xf32>
    %181 = arith.addf %127, %180 : vector<40x32xf32>
    %182 = vector.extract_strided_slice %129 {offsets = [0, 0], sizes = [1, 32], strides = [1, 1]} : vector<4x32xf32> to vector<1x32xf32>
    %183 = vector.extract_strided_slice %129 {offsets = [1, 0], sizes = [1, 32], strides = [1, 1]} : vector<4x32xf32> to vector<1x32xf32>
    %cst_87 = arith.constant dense<0.000000e+00> : vector<40xf32>
    %184 = vector.multi_reduction <add>, %181, %cst_87 [1] : vector<40x32xf32> to vector<40xf32>
    %185 = vector.shape_cast %184 : vector<40xf32> to vector<40x1xf32>
    %cst_88 = arith.constant 3.200000e+01 : f32
    %186 = vector.broadcast %cst_88 : f32 to vector<40x1xf32>
    %187 = arith.divf %185, %186 : vector<40x1xf32>
    %188 = vector.broadcast %187 : vector<40x1xf32> to vector<40x32xf32>
    %189 = arith.subf %181, %188 : vector<40x32xf32>
    %190 = arith.mulf %189, %189 : vector<40x32xf32>
    %cst_89 = arith.constant dense<0.000000e+00> : vector<40xf32>
    %191 = vector.multi_reduction <add>, %190, %cst_89 [1] : vector<40x32xf32> to vector<40xf32>
    %192 = vector.shape_cast %191 : vector<40xf32> to vector<40x1xf32>
    %cst_90 = arith.constant 3.200000e+01 : f32
    %193 = vector.broadcast %cst_90 : f32 to vector<40x1xf32>
    %194 = arith.divf %192, %193 : vector<40x1xf32>
    %195 = vector.broadcast %187 : vector<40x1xf32> to vector<40x32xf32>
    %196 = arith.subf %181, %195 : vector<40x32xf32>
    %cst_91 = arith.constant 9.99999974E-6 : f32
    %197 = vector.broadcast %cst_91 : f32 to vector<40x1xf32>
    %198 = arith.addf %194, %197 : vector<40x1xf32>
    %199 = math.rsqrt %198 : vector<40x1xf32>
    %200 = vector.broadcast %199 : vector<40x1xf32> to vector<40x32xf32>
    %201 = arith.mulf %196, %200 : vector<40x32xf32>
    %202 = vector.broadcast %182 : vector<1x32xf32> to vector<40x32xf32>
    %203 = arith.mulf %201, %202 : vector<40x32xf32>
    %204 = vector.broadcast %183 : vector<1x32xf32> to vector<40x32xf32>
    %205 = arith.addf %203, %204 : vector<40x32xf32>
    %c1_92 = arith.constant 1 : index
    %c0_93 = arith.constant 0 : index
    %c0_94 = arith.constant 0 : index
    %206 = vector.load %arg10[%c1_92, %c0_93, %c0_94] : memref<2x32x64xf32, #tpu.memory_space<vmem>>, vector<1x32x64xf32>
    %207 = vector.shape_cast %206 : vector<1x32x64xf32> to vector<32x64xf32>
    %cst_95 = arith.constant dense<0.000000e+00> : vector<40x64xf32>
    %208 = tpu.matmul %205, %207, %cst_95 {dimension_numbers = #tpu.dot_dimension_numbers<[1], [0], [0], [1], [0, 0, 1, 1], [], []>} : vector<40x32xf32>, vector<32x64xf32>, vector<40x64xf32> -> vector<40x64xf32>
    %c1_96 = arith.constant 1 : index
    %c0_97 = arith.constant 0 : index
    %c0_98 = arith.constant 0 : index
    %209 = vector.load %arg11[%c1_96, %c0_97, %c0_98] : memref<2x1x64xf32, #tpu.memory_space<vmem>>, vector<1x1x64xf32>
    %210 = vector.shape_cast %209 : vector<1x1x64xf32> to vector<1x64xf32>
    %211 = vector.broadcast %210 : vector<1x64xf32> to vector<40x64xf32>
    %212 = arith.addf %208, %211 : vector<40x64xf32>
    %cst_99 = arith.constant 0.000000e+00 : f32
    %213 = vector.broadcast %cst_99 : f32 to vector<40x64xf32>
    %214 = arith.maximumf %212, %213 : vector<40x64xf32>
    %c1_100 = arith.constant 1 : index
    %c0_101 = arith.constant 0 : index
    %c0_102 = arith.constant 0 : index
    %215 = vector.load %arg12[%c1_100, %c0_101, %c0_102] : memref<2x64x32xf32, #tpu.memory_space<vmem>>, vector<1x64x32xf32>
    %216 = vector.shape_cast %215 : vector<1x64x32xf32> to vector<64x32xf32>
    %cst_103 = arith.constant dense<0.000000e+00> : vector<40x32xf32>
    %217 = tpu.matmul %214, %216, %cst_103 {dimension_numbers = #tpu.dot_dimension_numbers<[1], [0], [0], [1], [0, 0, 1, 1], [], []>} : vector<40x64xf32>, vector<64x32xf32>, vector<40x32xf32> -> vector<40x32xf32>
    %c1_104 = arith.constant 1 : index
    %c0_105 = arith.constant 0 : index
    %c0_106 = arith.constant 0 : index
    %218 = vector.load %arg13[%c1_104, %c0_105, %c0_106] : memref<2x1x32xf32, #tpu.memory_space<vmem>>, vector<1x1x32xf32>
    %219 = vector.shape_cast %218 : vector<1x1x32xf32> to vector<1x32xf32>
    %220 = vector.broadcast %219 : vector<1x32xf32> to vector<40x32xf32>
    %221 = arith.addf %217, %220 : vector<40x32xf32>
    %222 = arith.addf %205, %221 : vector<40x32xf32>
    %223 = vector.extract_strided_slice %129 {offsets = [2, 0], sizes = [1, 32], strides = [1, 1]} : vector<4x32xf32> to vector<1x32xf32>
    %224 = vector.extract_strided_slice %129 {offsets = [3, 0], sizes = [1, 32], strides = [1, 1]} : vector<4x32xf32> to vector<1x32xf32>
    %cst_107 = arith.constant dense<0.000000e+00> : vector<40xf32>
    %225 = vector.multi_reduction <add>, %222, %cst_107 [1] : vector<40x32xf32> to vector<40xf32>
    %226 = vector.shape_cast %225 : vector<40xf32> to vector<40x1xf32>
    %cst_108 = arith.constant 3.200000e+01 : f32
    %227 = vector.broadcast %cst_108 : f32 to vector<40x1xf32>
    %228 = arith.divf %226, %227 : vector<40x1xf32>
    %229 = vector.broadcast %228 : vector<40x1xf32> to vector<40x32xf32>
    %230 = arith.subf %222, %229 : vector<40x32xf32>
    %231 = arith.mulf %230, %230 : vector<40x32xf32>
    %cst_109 = arith.constant dense<0.000000e+00> : vector<40xf32>
    %232 = vector.multi_reduction <add>, %231, %cst_109 [1] : vector<40x32xf32> to vector<40xf32>
    %233 = vector.shape_cast %232 : vector<40xf32> to vector<40x1xf32>
    %cst_110 = arith.constant 3.200000e+01 : f32
    %234 = vector.broadcast %cst_110 : f32 to vector<40x1xf32>
    %235 = arith.divf %233, %234 : vector<40x1xf32>
    %236 = vector.broadcast %228 : vector<40x1xf32> to vector<40x32xf32>
    %237 = arith.subf %222, %236 : vector<40x32xf32>
    %cst_111 = arith.constant 9.99999974E-6 : f32
    %238 = vector.broadcast %cst_111 : f32 to vector<40x1xf32>
    %239 = arith.addf %235, %238 : vector<40x1xf32>
    %240 = math.rsqrt %239 : vector<40x1xf32>
    %241 = vector.broadcast %240 : vector<40x1xf32> to vector<40x32xf32>
    %242 = arith.mulf %237, %241 : vector<40x32xf32>
    %243 = vector.broadcast %223 : vector<1x32xf32> to vector<40x32xf32>
    %244 = arith.mulf %242, %243 : vector<40x32xf32>
    %245 = vector.broadcast %224 : vector<1x32xf32> to vector<40x32xf32>
    %246 = arith.addf %244, %245 : vector<40x32xf32>
    %c0_112 = arith.constant 0 : index
    %c0_113 = arith.constant 0 : index
    %247 = vector.load %arg15[%c0_112, %c0_113] : memref<32x4xf32, #tpu.memory_space<vmem>>, vector<32x4xf32>
    %cst_114 = arith.constant dense<0.000000e+00> : vector<40x4xf32>
    %248 = tpu.matmul %246, %247, %cst_114 {dimension_numbers = #tpu.dot_dimension_numbers<[1], [0], [0], [1], [0, 0, 1, 1], [], []>} : vector<40x32xf32>, vector<32x4xf32>, vector<40x4xf32> -> vector<40x4xf32>
    %c0_115 = arith.constant 0 : index
    %c0_116 = arith.constant 0 : index
    %249 = vector.load %arg16[%c0_115, %c0_116] : memref<1x4xf32, #tpu.memory_space<vmem>>, vector<1x4xf32>
    %250 = vector.broadcast %249 : vector<1x4xf32> to vector<40x4xf32>
    %251 = arith.addf %248, %250 : vector<40x4xf32>
    %252 = vector.extract_strided_slice %251 {offsets = [0, 0], sizes = [40, 2], strides = [1, 1]} : vector<40x4xf32> to vector<40x2xf32>
    %253 = vector.extract_strided_slice %251 {offsets = [0, 2], sizes = [40, 2], strides = [1, 1]} : vector<40x4xf32> to vector<40x2xf32>
    %cst_117 = arith.constant dense<0xFF800000> : vector<40xf32>
    %254 = vector.multi_reduction <maximumf>, %252, %cst_117 [1] : vector<40x2xf32> to vector<40xf32>
    %255 = vector.shape_cast %254 : vector<40xf32> to vector<40x1xf32>
    %256 = vector.broadcast %255 : vector<40x1xf32> to vector<40x2xf32>
    %257 = arith.subf %252, %256 : vector<40x2xf32>
    %258 = math.exp %257 : vector<40x2xf32>
    %cst_118 = arith.constant dense<0.000000e+00> : vector<40xf32>
    %259 = vector.multi_reduction <add>, %258, %cst_118 [1] : vector<40x2xf32> to vector<40xf32>
    %260 = vector.shape_cast %259 : vector<40xf32> to vector<40x1xf32>
    %261 = math.log %260 : vector<40x1xf32>
    %262 = arith.addf %255, %261 : vector<40x1xf32>
    %263 = vector.broadcast %262 : vector<40x1xf32> to vector<40x2xf32>
    %264 = arith.subf %252, %263 : vector<40x2xf32>
    %265 = math.absf %253 : vector<40x2xf32>
    %cst_119 = arith.constant 1.000000e+00 : f32
    %266 = vector.broadcast %cst_119 : f32 to vector<40x2xf32>
    %267 = arith.addf %266, %265 : vector<40x2xf32>
    %268 = tpu.reciprocal %267 {approx = true} : vector<40x2xf32> -> vector<40x2xf32>
    %269 = arith.mulf %253, %268 : vector<40x2xf32>
    %cst_120 = arith.constant 1.000000e+00 : f32
    %270 = vector.broadcast %cst_120 : f32 to vector<40x2xf32>
    %271 = arith.addf %270, %269 : vector<40x2xf32>
    %cst_121 = arith.constant 6.28318548 : f32
    %272 = vector.broadcast %cst_121 : f32 to vector<40x2xf32>
    %273 = arith.mulf %272, %271 : vector<40x2xf32>
    %274 = tpu.concatenate %264, %273 in 1 : vector<40x2xf32>, vector<40x2xf32> -> vector<40x4xf32>
    %c0_122 = arith.constant 0 : index
    %c0_123 = arith.constant 0 : index
    %275 = vector.load %arg17[%c0_122, %c0_123] : memref<40x4xf32, #tpu.memory_space<vmem>>, vector<40x4xf32>
    tpu.vector_store %arg17[%c0_122, %c0_123], %274 {strides = array<i32>} : memref<40x4xf32, #tpu.memory_space<vmem>>, vector<40x4xf32>,
    return
  }
  func.func @transform_0(%arg0: i32) -> (i32, i32) {
    %c0_i32 = arith.constant 0 : i32
    %c0_i32_0 = arith.constant 0 : i32
    %c0_i32_1 = arith.constant 0 : i32
    return %c0_i32, %c0_i32_0 : i32, i32
  }
  func.func @transform_1(%arg0: i32) -> (i32, i32) {
    %c0_i32 = arith.constant 0 : i32
    %c0_i32_0 = arith.constant 0 : i32
    %c0_i32_1 = arith.constant 0 : i32
    return %c0_i32, %c0_i32_0 : i32, i32
  }
  func.func @transform_2(%arg0: i32) -> (i32, i32) {
    %c0_i32 = arith.constant 0 : i32
    %c0_i32_0 = arith.constant 0 : i32
    %c0_i32_1 = arith.constant 0 : i32
    return %c0_i32, %c0_i32_0 : i32, i32
  }
  func.func @transform_3(%arg0: i32) -> (i32, i32) {
    %c0_i32 = arith.constant 0 : i32
    %c0_i32_0 = arith.constant 0 : i32
    %c0_i32_1 = arith.constant 0 : i32
    return %c0_i32, %c0_i32_0 : i32, i32
  }
  func.func @transform_4(%arg0: i32) -> (i32, i32) {
    %c0_i32 = arith.constant 0 : i32
    %c0_i32_0 = arith.constant 0 : i32
    %c0_i32_1 = arith.constant 0 : i32
    return %c0_i32, %c0_i32_0 : i32, i32
  }
  func.func @transform_5(%arg0: i32) -> (i32, i32, i32) {
    %c0_i32 = arith.constant 0 : i32
    %c0_i32_0 = arith.constant 0 : i32
    %c0_i32_1 = arith.constant 0 : i32
    %c0_i32_2 = arith.constant 0 : i32
    return %c0_i32, %c0_i32_0, %c0_i32_1 : i32, i32, i32
  }
  func.func @transform_6(%arg0: i32) -> (i32, i32, i32) {
    %c0_i32 = arith.constant 0 : i32
    %c0_i32_0 = arith.constant 0 : i32
    %c0_i32_1 = arith.constant 0 : i32
    %c0_i32_2 = arith.constant 0 : i32
    return %c0_i32, %c0_i32_0, %c0_i32_1 : i32, i32, i32
  }
  func.func @transform_7(%arg0: i32) -> (i32, i32, i32) {
    %c0_i32 = arith.constant 0 : i32
    %c0_i32_0 = arith.constant 0 : i32
    %c0_i32_1 = arith.constant 0 : i32
    %c0_i32_2 = arith.constant 0 : i32
    return %c0_i32, %c0_i32_0, %c0_i32_1 : i32, i32, i32
  }
  func.func @transform_8(%arg0: i32) -> (i32, i32, i32) {
    %c0_i32 = arith.constant 0 : i32
    %c0_i32_0 = arith.constant 0 : i32
    %c0_i32_1 = arith.constant 0 : i32
    %c0_i32_2 = arith.constant 0 : i32
    return %c0_i32, %c0_i32_0, %c0_i32_1 : i32, i32, i32
  }
  func.func @transform_9(%arg0: i32) -> (i32, i32, i32) {
    %c0_i32 = arith.constant 0 : i32
    %c0_i32_0 = arith.constant 0 : i32
    %c0_i32_1 = arith.constant 0 : i32
    %c0_i32_2 = arith.constant 0 : i32
    return %c0_i32, %c0_i32_0, %c0_i32_1 : i32, i32, i32
  }
  func.func @transform_10(%arg0: i32) -> (i32, i32, i32) {
    %c0_i32 = arith.constant 0 : i32
    %c0_i32_0 = arith.constant 0 : i32
    %c0_i32_1 = arith.constant 0 : i32
    %c0_i32_2 = arith.constant 0 : i32
    return %c0_i32, %c0_i32_0, %c0_i32_1 : i32, i32, i32
  }
  func.func @transform_11(%arg0: i32) -> (i32, i32, i32) {
    %c0_i32 = arith.constant 0 : i32
    %c0_i32_0 = arith.constant 0 : i32
    %c0_i32_1 = arith.constant 0 : i32
    %c0_i32_2 = arith.constant 0 : i32
    return %c0_i32, %c0_i32_0, %c0_i32_1 : i32, i32, i32
  }
  func.func @transform_12(%arg0: i32) -> (i32, i32, i32) {
    %c0_i32 = arith.constant 0 : i32
    %c0_i32_0 = arith.constant 0 : i32
    %c0_i32_1 = arith.constant 0 : i32
    %c0_i32_2 = arith.constant 0 : i32
    return %c0_i32, %c0_i32_0, %c0_i32_1 : i32, i32, i32
  }
  func.func @transform_13(%arg0: i32) -> (i32, i32, i32) {
    %c0_i32 = arith.constant 0 : i32
    %c0_i32_0 = arith.constant 0 : i32
    %c0_i32_1 = arith.constant 0 : i32
    %c0_i32_2 = arith.constant 0 : i32
    return %c0_i32, %c0_i32_0, %c0_i32_1 : i32, i32, i32
  }
  func.func @transform_14(%arg0: i32) -> (i32, i32) {
    %c0_i32 = arith.constant 0 : i32
    %c0_i32_0 = arith.constant 0 : i32
    %c0_i32_1 = arith.constant 0 : i32
    return %c0_i32, %c0_i32_0 : i32, i32
  }
  func.func @transform_15(%arg0: i32) -> (i32, i32) {
    %c0_i32 = arith.constant 0 : i32
    %c0_i32_0 = arith.constant 0 : i32
    %c0_i32_1 = arith.constant 0 : i32
    return %c0_i32, %c0_i32_0 : i32, i32
  }
  func.func @transform_16(%arg0: i32) -> (i32, i32) {
    %c0_i32 = arith.constant 0 : i32
    %c0_i32_0 = arith.constant 0 : i32
    %c0_i32_1 = arith.constant 0 : i32
    return %c0_i32, %c0_i32_0 : i32, i32
  }
}

</mosaic_0001>

<llo_original>
// kernel: tpu_custom_call.1
$region0: #{tpu_custom_call.1}
  #allocation0 [shape = 'u32[]', space=smem, size = 0x4, offset = 0x4, fixed_abs, tag = 'smem constant byte address 0x4 - core index']
  #allocation1 [shape = 'u32[144,128]{1,0:T(1,128)}', space=vmem, size = 0x12000, scoped, tag = 'internal scratch']
  %s0 = inlined_call_operand.vmem [shape: f32[40,6], index: 0, kind: input, shape index: {}]
  %s1 = inlined_call_operand.vmem [shape: f32[40,32], index: 1, kind: input, shape index: {}]
  %s2 = inlined_call_operand.vmem [shape: f32[40,40], index: 2, kind: input, shape index: {}]
  %s3 = inlined_call_operand.vmem [shape: f32[6,32], index: 3, kind: input, shape index: {}]
  %s4 = inlined_call_operand.vmem [shape: f32[1,32], index: 4, kind: input, shape index: {}]
  %s5 = inlined_call_operand.vmem [shape: f32[2,32,96], index: 5, kind: input, shape index: {}]
  %s6 = inlined_call_operand.vmem [shape: f32[2,1,96], index: 6, kind: input, shape index: {}]
  %s7 = inlined_call_operand.vmem [shape: f32[2,32,32], index: 7, kind: input, shape index: {}]
  %s8 = inlined_call_operand.vmem [shape: f32[2,1,32], index: 8, kind: input, shape index: {}]
  %s9 = inlined_call_operand.vmem [shape: f32[2,32,64], index: 9, kind: input, shape index: {}]
  %s10 = inlined_call_operand.vmem [shape: f32[2,1,64], index: 10, kind: input, shape index: {}]
  %s11 = inlined_call_operand.vmem [shape: f32[2,64,32], index: 11, kind: input, shape index: {}]
  %s12 = inlined_call_operand.vmem [shape: f32[2,1,32], index: 12, kind: input, shape index: {}]
  %s13 = inlined_call_operand.vmem [shape: f32[2,4,32], index: 13, kind: input, shape index: {}]
  %s14 = inlined_call_operand.vmem [shape: f32[32,4], index: 14, kind: input, shape index: {}]
  %s15 = inlined_call_operand.vmem [shape: f32[1,4], index: 15, kind: input, shape index: {}]
  %s16 = inlined_call_operand.vmem [shape: f32[40,4], index: 16, kind: output, shape index: {}]
  %s17 = sld [smem:[#allocation0]]
  $region74: #{tpu_custom_call.1} parent=0
    _
  %s19 = ssub.s32 1, %s17
  %s20 = scalar_select 0, %s19, %s17
  // Predicated region
  $region2: #{tpu_custom_call.1} parent=0 // pred_check
    _
  $region3: #{tpu_custom_call.1} parent=0 // pred_check_branch
    %22 = sbr.rel (0) target = $region5
  $region4: #{tpu_custom_call.1} parent=0 // pred_region
    _
  $region5: #{tpu_custom_call.1} parent=0 // pred_fallthru
    _
  // Predicated region
  $region6: #{tpu_custom_call.1} parent=0 // pred_check
    _
  $region7: #{tpu_custom_call.1} parent=0 // pred_check_branch
    %24 = sbr.rel (0) target = $region9
  $region8: #{tpu_custom_call.1} parent=0 // pred_region
    _
  $region9: #{tpu_custom_call.1} parent=0 // pred_fallthru
    _
  // Predicated region
  $region10: #{tpu_custom_call.1} parent=0 // pred_check
    _
  $region11: #{tpu_custom_call.1} parent=0 // pred_check_branch
    %26 = sbr.rel (0) target = $region13
  $region12: #{tpu_custom_call.1} parent=0 // pred_region
    _
  $region13: #{tpu_custom_call.1} parent=0 // pred_fallthru
    _
  // Predicated region
  $region14: #{tpu_custom_call.1} parent=0 // pred_check
    _
  $region15: #{tpu_custom_call.1} parent=0 // pred_check_branch
    %28 = sbr.rel (0) target = $region17
  $region16: #{tpu_custom_call.1} parent=0 // pred_region
    _
  $region17: #{tpu_custom_call.1} parent=0 // pred_fallthru
    _
  // Predicated region
  $region18: #{tpu_custom_call.1} parent=0 // pred_check
    _
  $region19: #{tpu_custom_call.1} parent=0 // pred_check_branch
    %30 = sbr.rel (0) target = $region21
  $region20: #{tpu_custom_call.1} parent=0 // pred_region
    _
  $region21: #{tpu_custom_call.1} parent=0 // pred_fallthru
    _
  // Predicated region
  $region22: #{tpu_custom_call.1} parent=0 // pred_check
    _
  $region23: #{tpu_custom_call.1} parent=0 // pred_check_branch
    %32 = sbr.rel (0) target = $region25
  $region24: #{tpu_custom_call.1} parent=0 // pred_region
    _
  $region25: #{tpu_custom_call.1} parent=0 // pred_fallthru
    _
  // Predicated region
  $region26: #{tpu_custom_call.1} parent=0 // pred_check
    _
  $region27: #{tpu_custom_call.1} parent=0 // pred_check_branch
    %34 = sbr.rel (0) target = $region29
  $region28: #{tpu_custom_call.1} parent=0 // pred_region
    _
  $region29: #{tpu_custom_call.1} parent=0 // pred_fallthru
    _
  // Predicated region
  $region30: #{tpu_custom_call.1} parent=0 // pred_check
    _
  $region31: #{tpu_custom_call.1} parent=0 // pred_check_branch
    %36 = sbr.rel (0) target = $region33
  $region32: #{tpu_custom_call.1} parent=0 // pred_region
    _
  $region33: #{tpu_custom_call.1} parent=0 // pred_fallthru
    _
  // Predicated region
  $region34: #{tpu_custom_call.1} parent=0 // pred_check
    _
  $region35: #{tpu_custom_call.1} parent=0 // pred_check_branch
    %38 = sbr.rel (0) target = $region37
  $region36: #{tpu_custom_call.1} parent=0 // pred_region
    _
  $region37: #{tpu_custom_call.1} parent=0 // pred_fallthru
    _
  // Predicated region
  $region38: #{tpu_custom_call.1} parent=0 // pred_check
    _
  $region39: #{tpu_custom_call.1} parent=0 // pred_check_branch
    %40 = sbr.rel (0) target = $region41
  $region40: #{tpu_custom_call.1} parent=0 // pred_region
    _
  $region41: #{tpu_custom_call.1} parent=0 // pred_fallthru
    _
  // Predicated region
  $region42: #{tpu_custom_call.1} parent=0 // pred_check
    _
  $region43: #{tpu_custom_call.1} parent=0 // pred_check_branch
    %42 = sbr.rel (0) target = $region45
  $region44: #{tpu_custom_call.1} parent=0 // pred_region
    _
  $region45: #{tpu_custom_call.1} parent=0 // pred_fallthru
    _
  // Predicated region
  $region46: #{tpu_custom_call.1} parent=0 // pred_check
    _
  $region47: #{tpu_custom_call.1} parent=0 // pred_check_branch
    %44 = sbr.rel (0) target = $region49
  $region48: #{tpu_custom_call.1} parent=0 // pred_region
    _
  $region49: #{tpu_custom_call.1} parent=0 // pred_fallthru
    _
  // Predicated region
  $region50: #{tpu_custom_call.1} parent=0 // pred_check
    _
  $region51: #{tpu_custom_call.1} parent=0 // pred_check_branch
    %46 = sbr.rel (0) target = $region53
  $region52: #{tpu_custom_call.1} parent=0 // pred_region
    _
  $region53: #{tpu_custom_call.1} parent=0 // pred_fallthru
    _
  // Predicated region
  $region54: #{tpu_custom_call.1} parent=0 // pred_check
    _
  $region55: #{tpu_custom_call.1} parent=0 // pred_check_branch
    %48 = sbr.rel (0) target = $region57
  $region56: #{tpu_custom_call.1} parent=0 // pred_region
    _
  $region57: #{tpu_custom_call.1} parent=0 // pred_fallthru
    _
  // Predicated region
  $region58: #{tpu_custom_call.1} parent=0 // pred_check
    _
  $region59: #{tpu_custom_call.1} parent=0 // pred_check_branch
    %50 = sbr.rel (0) target = $region61
  $region60: #{tpu_custom_call.1} parent=0 // pred_region
    _
  $region61: #{tpu_custom_call.1} parent=0 // pred_fallthru
    _
  // Predicated region
  $region62: #{tpu_custom_call.1} parent=0 // pred_check
    _
  $region63: #{tpu_custom_call.1} parent=0 // pred_check_branch
    %52 = sbr.rel (0) target = $region65
  $region64: #{tpu_custom_call.1} parent=0 // pred_region
    _
  $region65: #{tpu_custom_call.1} parent=0 // pred_fallthru
    _
  %v53 = vld [vmem:[%s0] sm:$0xff]
  %v54 = vld [vmem:[%s0 + $0x8] sm:$0xff]
  %v55 = vld [vmem:[%s0 + $0x10] sm:$0xff]
  %v56 = vld [vmem:[%s0 + $0x18] sm:$0xff]
  %v57 = vld [vmem:[%s0 + $0x20] sm:$0xff]
  %v58 = vld [vmem:[%s3] sm:$0x3f]
  %v59 = vld [vmem:[%s4] sm:$0x1]
  %v61 = vlaneseq
  %v62 = vshrl.u32 %v61, 7
  %v63 = vsub.s32 0, %v62
  %v64 = vrot.slane %v59, %v63
  %vm66 = vcmask 48128
  %v68 = vsel %vm66, %v53, 0
  %v71 = vsel %vm66, %v54, 0
  %v74 = vsel %vm66, %v55, 0
  %v77 = vsel %vm66, %v56, 0
  %v80 = vsel %vm66, %v57, 0
  %vm82 = vcmask 1045504
  %v84 = vsel %vm82, %v58, 0
  %86 = vmatprep.subr.mxu0 0.0
  %87 = vmatpush1.msra.mxu0 %v84
  %88 = vmatprep.subr.mxu0 0.0
  %89 = vmatpush1.msra.mxu0 0.0
  %90 = vmatprep.subr.mxu0 0.0
  %91 = vmatpush1.msra.mxu0 0.0
  %92 = vmatprep.subr.mxu0 0.0
  %93 = vmatpush1.msra.mxu0 0.0
  %94 = vmatprep.subr.mxu0 0.0
  %95 = vmatpush1.msra.mxu0 0.0
  %96 = vmatprep.subr.mxu0 0.0
  %97 = vmatpush1.msra.mxu0 0.0
  %98 = vmatprep.subr.mxu0 0.0
  %99 = vmatpush1.msra.mxu0 0.0
  %100 = vmatprep.subr.mxu0 0.0
  %101 = vmatpush1.msra.mxu0 0.0
  %102 = vmatprep.subr.mxu0 0.0
  %103 = vmatpush1.msra.mxu0 0.0
  %104 = vmatprep.subr.mxu0 0.0
  %105 = vmatpush1.msra.mxu0 0.0
  %106 = vmatprep.subr.mxu0 0.0
  %107 = vmatpush1.msra.mxu0 0.0
  %108 = vmatprep.subr.mxu0 0.0
  %109 = vmatpush1.msra.mxu0 0.0
  %110 = vmatprep.subr.mxu0 0.0
  %111 = vmatpush1.msra.mxu0 0.0
  %112 = vmatprep.subr.mxu0 0.0
  %113 = vmatpush1.msra.mxu0 0.0
  %114 = vmatprep.subr.mxu0 0.0
  %115 = vmatpush1.msra.mxu0 0.0
  %116 = vmatprep.subr.mxu0 0.0
  %117 = vmatpush1.msra.mxu0 0.0
  %118 = vmatprep.subr.mxu0 0.0
  %119 = vmatpush1.msra.mxu0 0.0
  %120 = vmatprep.subr.mxu0 0.0
  %121 = vmatpush1.msra.mxu0 0.0
  %122 = vmatprep.subr.mxu0 0.0
  %123 = vmatpush1.msra.mxu0 0.0
  %124 = vmatprep.subr.mxu0 0.0
  %125 = vmatpush1.msra.mxu0 0.0
  %126 = vmatprep.subr.mxu0 0.0
  %127 = vmatpush1.msra.mxu0 0.0
  %128 = vmatprep.subr.mxu0 0.0
  %129 = vmatpush1.msra.mxu0 0.0
  %130 = vmatprep.subr.mxu0 0.0
  %131 = vmatpush1.msra.mxu0 0.0
  %132 = vmatprep.subr.mxu0 0.0
  %133 = vmatpush1.msra.mxu0 0.0
  %134 = vmatprep.subr.mxu0 0.0
  %135 = vmatpush1.msra.mxu0 0.0
  %136 = vmatprep.subr.mxu0 0.0
  %137 = vmatpush1.msra.mxu0 0.0
  %138 = vmatprep.subr.mxu0 0.0
  %139 = vmatpush1.msra.mxu0 0.0
  %140 = vmatprep.subr.mxu0 0.0
  %141 = vmatpush1.msra.mxu0 0.0
  %142 = vmatprep.subr.mxu0 0.0
  %143 = vmatpush1.msra.mxu0 0.0
  %144 = vmatprep.subr.mxu0 0.0
  %145 = vmatpush1.msra.mxu0 0.0
  %146 = vmatprep.subr.mxu0 0.0
  %147 = vmatpush1.msra.mxu0 0.0
  %148 = vmatprep.subr.mxu0 0.0
  %149 = vmatpush1.msra.mxu0 0.0
  %150 = vmatprep.mubr.f32.mxu0 0.0
  %151 = vmatmul.mubr.f32.gmra.mrb[0].mxu0 %v68
  %v152 = vpop.f32.mrb[0].mxu0
  %v153 = vadd.f32 %v64, %v152
  %v154 = vpop.f32.mrb[0].mxu0
  %155 = vmatprep.mubr.f32.mxu0 0.0
  %156 = vmatmul.mubr.f32.gmra.mrb[0].mxu0 %v71
  %v157 = vpop.f32.mrb[0].mxu0
  %v158 = vadd.f32 %v64, %v157
  %v159 = vpop.f32.mrb[0].mxu0
  %160 = vmatprep.mubr.f32.mxu0 0.0
  %161 = vmatmul.mubr.f32.gmra.mrb[0].mxu0 %v74
  %v162 = vpop.f32.mrb[0].mxu0
  %v163 = vadd.f32 %v64, %v162
  %v164 = vpop.f32.mrb[0].mxu0
  %165 = vmatprep.mubr.f32.mxu0 0.0
  %166 = vmatmul.mubr.f32.gmra.mrb[0].mxu0 %v77
  %v167 = vpop.f32.mrb[0].mxu0
  %v168 = vadd.f32 %v64, %v167
  %v169 = vpop.f32.mrb[0].mxu0
  %170 = vmatprep.mubr.f32.mxu0 0.0
  %171 = vmatmul.mubr.f32.gmra.mrb[0].mxu0 %v80
  %v172 = vpop.f32.mrb[0].mxu0
  %v173 = vadd.f32 %v64, %v172
  %v174 = vpop.f32.mrb[0].mxu0
  %175 = vdwg.mxu0
  %v176 = vld [vmem:[%s1] sm:$0xff]
  %v177 = vld [vmem:[%s1 + $0x8] sm:$0xff]
  %v178 = vld [vmem:[%s1 + $0x10] sm:$0xff]
  %v179 = vld [vmem:[%s1 + $0x18] sm:$0xff]
  %v180 = vld [vmem:[%s1 + $0x20] sm:$0xff]
  %v181 = vadd.f32 %v153, %v176
  %v182 = vadd.f32 %v158, %v177
  %v183 = vadd.f32 %v163, %v178
  %v184 = vadd.f32 %v168, %v179
  %v185 = vadd.f32 %v173, %v180
  %v186 = vld [vmem:[%s2] sm:$0xff]
  %v187 = vld [vmem:[%s2 + $0x8] sm:$0xff]
  %v188 = vld [vmem:[%s2 + $0x10] sm:$0xff]
  %v189 = vld [vmem:[%s2 + $0x18] sm:$0xff]
  %v190 = vld [vmem:[%s2 + $0x20] sm:$0xff]
  %v191 = vld [vmem:[%s13] sm:$0xf]
  %v192 = vld [vmem:[%s5] sm:$0xff]
  %v193 = vld [vmem:[%s5 + $0x8] sm:$0xff]
  %v194 = vld [vmem:[%s5 + $0x10] sm:$0xff]
  %v195 = vld [vmem:[%s5 + $0x18] sm:$0xff]
  %v196 = vld [vmem:[%s6] sm:$0x1]
  %v198 = vlaneseq
  %v199 = vshrl.u32 %v198, 7
  %v200 = vsub.s32 0, %v199
  %v201 = vrot.slane %v196, %v200
  %vm203 = vcmask 261120
  %v205 = vsel %vm203, %v181, 0
  %v208 = vsel %vm203, %v182, 0
  %v211 = vsel %vm203, %v183, 0
  %v214 = vsel %vm203, %v184, 0
  %v217 = vsel %vm203, %v185, 0
  %219 = vmatprep.subr.mxu0 0.0
  %220 = vmatpush1.msra.mxu0 %v192
  %221 = vmatprep.subr.mxu0 0.0
  %222 = vmatpush1.msra.mxu0 %v193
  %223 = vmatprep.subr.mxu0 0.0
  %224 = vmatpush1.msra.mxu0 %v194
  %225 = vmatprep.subr.mxu0 0.0
  %226 = vmatpush1.msra.mxu0 %v195
  %227 = vmatprep.subr.mxu0 0.0
  %228 = vmatpush1.msra.mxu0 0.0
  %229 = vmatprep.subr.mxu0 0.0
  %230 = vmatpush1.msra.mxu0 0.0
  %231 = vmatprep.subr.mxu0 0.0
  %232 = vmatpush1.msra.mxu0 0.0
  %233 = vmatprep.subr.mxu0 0.0
  %234 = vmatpush1.msra.mxu0 0.0
  %235 = vmatprep.subr.mxu0 0.0
  %236 = vmatpush1.msra.mxu0 0.0
  %237 = vmatprep.subr.mxu0 0.0
  %238 = vmatpush1.msra.mxu0 0.0
  %239 = vmatprep.subr.mxu0 0.0
  %240 = vmatpush1.msra.mxu0 0.0
  %241 = vmatprep.subr.mxu0 0.0
  %242 = vmatpush1.msra.mxu0 0.0
  %243 = vmatprep.subr.mxu0 0.0
  %244 = vmatpush1.msra.mxu0 0.0
  %245 = vmatprep.subr.mxu0 0.0
  %246 = vmatpush1.msra.mxu0 0.0
  %247 = vmatprep.subr.mxu0 0.0
  %248 = vmatpush1.msra.mxu0 0.0
  %249 = vmatprep.subr.mxu0 0.0
  %250 = vmatpush1.msra.mxu0 0.0
  %251 = vmatprep.subr.mxu0 0.0
  %252 = vmatpush1.msra.mxu0 0.0
  %253 = vmatprep.subr.mxu0 0.0
  %254 = vmatpush1.msra.mxu0 0.0
  %255 = vmatprep.subr.mxu0 0.0
  %256 = vmatpush1.msra.mxu0 0.0
  %257 = vmatprep.subr.mxu0 0.0
  %258 = vmatpush1.msra.mxu0 0.0
  %259 = vmatprep.subr.mxu0 0.0
  %260 = vmatpush1.msra.mxu0 0.0
  %261 = vmatprep.subr.mxu0 0.0
  %262 = vmatpush1.msra.mxu0 0.0
  %263 = vmatprep.subr.mxu0 0.0
  %264 = vmatpush1.msra.mxu0 0.0
  %265 = vmatprep.subr.mxu0 0.0
  %266 = vmatpush1.msra.mxu0 0.0
  %267 = vmatprep.subr.mxu0 0.0
  %268 = vmatpush1.msra.mxu0 0.0
  %269 = vmatprep.subr.mxu0 0.0
  %270 = vmatpush1.msra.mxu0 0.0
  %271 = vmatprep.subr.mxu0 0.0
  %272 = vmatpush1.msra.mxu0 0.0
  %273 = vmatprep.subr.mxu0 0.0
  %274 = vmatpush1.msra.mxu0 0.0
  %275 = vmatprep.subr.mxu0 0.0
  %276 = vmatpush1.msra.mxu0 0.0
  %277 = vmatprep.subr.mxu0 0.0
  %278 = vmatpush1.msra.mxu0 0.0
  %279 = vmatprep.subr.mxu0 0.0
  %280 = vmatpush1.msra.mxu0 0.0
  %281 = vmatprep.subr.mxu0 0.0
  %282 = vmatpush1.msra.mxu0 0.0
  %283 = vmatprep.mubr.f32.mxu0 0.0
  %284 = vmatmul.mubr.f32.gmra.mrb[0].mxu0 %v205
  %v285 = vpop.f32.mrb[0].mxu0
  %v286 = vadd.f32 %v201, %v285
  %v287 = vpop.f32.mrb[0].mxu0
  %288 = vmatprep.mubr.f32.mxu0 0.0
  %289 = vmatmul.mubr.f32.gmra.mrb[0].mxu0 %v208
  %v290 = vpop.f32.mrb[0].mxu0
  %v291 = vadd.f32 %v201, %v290
  %v292 = vpop.f32.mrb[0].mxu0
  %293 = vmatprep.mubr.f32.mxu0 0.0
  %294 = vmatmul.mubr.f32.gmra.mrb[0].mxu0 %v211
  %v295 = vpop.f32.mrb[0].mxu0
  %v296 = vadd.f32 %v201, %v295
  %v297 = vpop.f32.mrb[0].mxu0
  %298 = vmatprep.mubr.f32.mxu0 0.0
  %299 = vmatmul.mubr.f32.gmra.mrb[0].mxu0 %v214
  %v300 = vpop.f32.mrb[0].mxu0
  %v301 = vadd.f32 %v201, %v300
  %v302 = vpop.f32.mrb[0].mxu0
  %303 = vmatprep.mubr.f32.mxu0 0.0
  %304 = vmatmul.mubr.f32.gmra.mrb[0].mxu0 %v217
  %v305 = vpop.f32.mrb[0].mxu0
  %v306 = vadd.f32 %v201, %v305
  %v307 = vpop.f32.mrb[0].mxu0
  %308 = vdwg.mxu0
  %314 = vrot.lane.b32.xlu0 %v286, 96
  %v315 = vpop.permute.xlu0 %314
  %316 = vrot.lane.b32.xlu0 %v291, 96
  %v317 = vpop.permute.xlu0 %316
  %318 = vrot.lane.b32.xlu0 %v296, 96
  %v319 = vpop.permute.xlu0 %318
  %320 = vrot.lane.b32.xlu0 %v301, 96
  %v321 = vpop.permute.xlu0 %320
  %322 = vrot.lane.b32.xlu0 %v306, 96
  %v323 = vpop.permute.xlu0 %322
  %vm324 = vcmask 130048
  %v325 = vsel %vm324, %v286, 0
  %v327 = vsel %vm324, %v291, 0
  %v329 = vsel %vm324, %v296, 0
  %v331 = vsel %vm324, %v301, 0
  %v333 = vsel %vm324, %v306, 0
  %v335 = vsel %vm324, %v315, 0
  %v337 = vsel %vm324, %v317, 0
  %v339 = vsel %vm324, %v319, 0
  %v341 = vsel %vm324, %v321, 0
  %v343 = vsel %vm324, %v323, 0
  %345 = vmatprep.subr.mxu0 0.0
  %346 = vmatpush1.xpose.msra.mxu0 %v335
  %347 = vmatprep.subr.mxu0 0.0
  %348 = vmatpush1.xpose.msra.mxu0 %v337
  %349 = vmatprep.subr.mxu0 0.0
  %350 = vmatpush1.xpose.msra.mxu0 %v339
  %351 = vmatprep.subr.mxu0 0.0
  %352 = vmatpush1.xpose.msra.mxu0 %v341
  %353 = vmatprep.subr.mxu0 0.0
  %354 = vmatpush1.xpose.msra.mxu0 %v343
  %355 = vmatprep.subr.mxu0 0.0
  %356 = vmatpush1.xpose.msra.mxu0 0.0
  %357 = vmatprep.subr.mxu0 0.0
  %358 = vmatpush1.xpose.msra.mxu0 0.0
  %359 = vmatprep.subr.mxu0 0.0
  %360 = vmatpush1.xpose.msra.mxu0 0.0
  %361 = vmatprep.subr.mxu0 0.0
  %362 = vmatpush1.xpose.msra.mxu0 0.0
  %363 = vmatprep.subr.mxu0 0.0
  %364 = vmatpush1.xpose.msra.mxu0 0.0
  %365 = vmatprep.subr.mxu0 0.0
  %366 = vmatpush1.xpose.msra.mxu0 0.0
  %367 = vmatprep.subr.mxu0 0.0
  %368 = vmatpush1.xpose.msra.mxu0 0.0
  %369 = vmatprep.subr.mxu0 0.0
  %370 = vmatpush1.xpose.msra.mxu0 0.0
  %371 = vmatprep.subr.mxu0 0.0
  %372 = vmatpush1.xpose.msra.mxu0 0.0
  %373 = vmatprep.subr.mxu0 0.0
  %374 = vmatpush1.xpose.msra.mxu0 0.0
  %375 = vmatprep.subr.mxu0 0.0
  %376 = vmatpush1.xpose.msra.mxu0 0.0
  %377 = vmatprep.subr.mxu0 0.0
  %378 = vmatpush1.xpose.msra.mxu0 0.0
  %379 = vmatprep.subr.mxu0 0.0
  %380 = vmatpush1.xpose.msra.mxu0 0.0
  %381 = vmatprep.subr.mxu0 0.0
  %382 = vmatpush1.xpose.msra.mxu0 0.0
  %383 = vmatprep.subr.mxu0 0.0
  %384 = vmatpush1.xpose.msra.mxu0 0.0
  %385 = vmatprep.subr.mxu0 0.0
  %386 = vmatpush1.xpose.msra.mxu0 0.0
  %387 = vmatprep.subr.mxu0 0.0
  %388 = vmatpush1.xpose.msra.mxu0 0.0
  %389 = vmatprep.subr.mxu0 0.0
  %390 = vmatpush1.xpose.msra.mxu0 0.0
  %391 = vmatprep.subr.mxu0 0.0
  %392 = vmatpush1.xpose.msra.mxu0 0.0
  %393 = vmatprep.subr.mxu0 0.0
  %394 = vmatpush1.xpose.msra.mxu0 0.0
  %395 = vmatprep.subr.mxu0 0.0
  %396 = vmatpush1.xpose.msra.mxu0 0.0
  %397 = vmatprep.subr.mxu0 0.0
  %398 = vmatpush1.xpose.msra.mxu0 0.0
  %399 = vmatprep.subr.mxu0 0.0
  %400 = vmatpush1.xpose.msra.mxu0 0.0
  %401 = vmatprep.subr.mxu0 0.0
  %402 = vmatpush1.xpose.msra.mxu0 0.0
  %403 = vmatprep.subr.mxu0 0.0
  %404 = vmatpush1.xpose.msra.mxu0 0.0
  %405 = vmatprep.subr.mxu0 0.0
  %406 = vmatpush1.xpose.msra.mxu0 0.0
  %407 = vmatprep.subr.mxu0 0.0
  %408 = vmatpush1.xpose.msra.mxu0 0.0
  %409 = vmatprep.mubr.f32.mxu0 0.0
  %410 = vmatmul.mubr.f32.gmra.mrb[0].mxu0 %v325
  %v411 = vpop.f32.mrb[0].mxu0
  %v412 = vadd.f32 0.0, %v411
  %v413 = vpop.f32.mrb[0].mxu0
  %414 = vmatprep.mubr.f32.mxu0 0.0
  %415 = vmatmul.mubr.f32.gmra.mrb[0].mxu0 %v327
  %v416 = vpop.f32.mrb[0].mxu0
  %v417 = vadd.f32 0.0, %v416
  %v418 = vpop.f32.mrb[0].mxu0
  %419 = vmatprep.mubr.f32.mxu0 0.0
  %420 = vmatmul.mubr.f32.gmra.mrb[0].mxu0 %v329
  %v421 = vpop.f32.mrb[0].mxu0
  %v422 = vadd.f32 0.0, %v421
  %v423 = vpop.f32.mrb[0].mxu0
  %424 = vmatprep.mubr.f32.mxu0 0.0
  %425 = vmatmul.mubr.f32.gmra.mrb[0].mxu0 %v331
  %v426 = vpop.f32.mrb[0].mxu0
  %v427 = vadd.f32 0.0, %v426
  %v428 = vpop.f32.mrb[0].mxu0
  %429 = vmatprep.mubr.f32.mxu0 0.0
  %430 = vmatmul.mubr.f32.gmra.mrb[0].mxu0 %v333
  %v431 = vpop.f32.mrb[0].mxu0
  %v432 = vadd.f32 0.0, %v431
  %v433 = vpop.f32.mrb[0].mxu0
  %434 = vdwg.mxu0
  %v435 = vmul.f32 %v412, 0.25
  %v436 = vmul.f32 %v417, 0.25
  %v437 = vmul.f32 %v422, 0.25
  %v438 = vmul.f32 %v427, 0.25
  %v439 = vmul.f32 %v432, 0.25
  %v440 = vadd.f32 %v435, %v186
  %v441 = vadd.f32 %v436, %v187
  %v442 = vadd.f32 %v437, %v188
  %v443 = vadd.f32 %v438, %v189
  %v444 = vadd.f32 %v439, %v190
  %vm445 = vcmask 326656
  %v446 = vsel %vm445, %v440, -inf
  %447 = vmax.xlane.f32.xlu0 %v446
  %v448 = vpop.xlane.xlu0 %447
  %v449 = vsel %vm445, %v441, -inf
  %450 = vmax.xlane.f32.xlu0 %v449
  %v451 = vpop.xlane.xlu0 %450
  %v452 = vsel %vm445, %v442, -inf
  %453 = vmax.xlane.f32.xlu0 %v452
  %v454 = vpop.xlane.xlu0 %453
  %v455 = vsel %vm445, %v443, -inf
  %456 = vmax.xlane.f32.xlu0 %v455
  %v457 = vpop.xlane.xlu0 %456
  %v458 = vsel %vm445, %v444, -inf
  %459 = vmax.xlane.f32.xlu0 %v458
  %v460 = vpop.xlane.xlu0 %459
  %v461 = vsub.f32 %v440, %v448
  %v462 = vsub.f32 %v441, %v451
  %v463 = vsub.f32 %v442, %v454
  %v464 = vsub.f32 %v443, %v457
  %v465 = vsub.f32 %v444, %v460
  %v466 = vmul.f32 %v461, 1.442695
  %v467 = vpow.pop %v466
  %v468 = vmul.f32 %v462, 1.442695
  %v469 = vpow.pop %v468
  %v470 = vmul.f32 %v463, 1.442695
  %v471 = vpow.pop %v470
  %v472 = vmul.f32 %v464, 1.442695
  %v473 = vpow.pop %v472
  %v474 = vmul.f32 %v465, 1.442695
  %v475 = vpow.pop %v474
  %v476 = vsel %vm445, %v467, 0.0
  %477 = vadd.xlane.f32.xlu0 %v476
  %v478 = vpop.xlane.xlu0 %477
  %v479 = vsel %vm445, %v469, 0.0
  %480 = vadd.xlane.f32.xlu0 %v479
  %v481 = vpop.xlane.xlu0 %480
  %v482 = vsel %vm445, %v471, 0.0
  %483 = vadd.xlane.f32.xlu0 %v482
  %v484 = vpop.xlane.xlu0 %483
  %v485 = vsel %vm445, %v473, 0.0
  %486 = vadd.xlane.f32.xlu0 %v485
  %v487 = vpop.xlane.xlu0 %486
  %v488 = vsel %vm445, %v475, 0.0
  %489 = vadd.xlane.f32.xlu0 %v488
  %v490 = vpop.xlane.xlu0 %489
  %v491 = vrcp.pop %v478
  %v492 = vrcp.pop %v481
  %v493 = vrcp.pop %v484
  %v494 = vrcp.pop %v487
  %v495 = vrcp.pop %v490
  %v496 = vmul.f32 %v467, %v491
  %v497 = vmul.f32 %v469, %v492
  %v498 = vmul.f32 %v471, %v493
  %v499 = vmul.f32 %v473, %v494
  %v500 = vmul.f32 %v475, %v495
  %501 = vrot.lane.b32.xlu0 %v286, 64
  %v502 = vpop.permute.xlu0 %501
  %503 = vrot.lane.b32.xlu0 %v291, 64
  %v504 = vpop.permute.xlu0 %503
  %505 = vrot.lane.b32.xlu0 %v296, 64
  %v506 = vpop.permute.xlu0 %505
  %507 = vrot.lane.b32.xlu0 %v301, 64
  %v508 = vpop.permute.xlu0 %507
  %509 = vrot.lane.b32.xlu0 %v306, 64
  %v510 = vpop.permute.xlu0 %509
  %v517 = vsel %vm445, %v496, 0
  %v520 = vsel %vm445, %v497, 0
  %v523 = vsel %vm445, %v498, 0
  %v526 = vsel %vm445, %v499, 0
  %v529 = vsel %vm445, %v500, 0
  %531 = vmatprep.subr.mxu0 0.0
  %532 = vmatpush1.msra.mxu0 %v502
  %533 = vmatprep.subr.mxu0 0.0
  %534 = vmatpush1.msra.mxu0 %v504
  %535 = vmatprep.subr.mxu0 0.0
  %536 = vmatpush1.msra.mxu0 %v506
  %537 = vmatprep.subr.mxu0 0.0
  %538 = vmatpush1.msra.mxu0 %v508
  %539 = vmatprep.subr.mxu0 0.0
  %540 = vmatpush1.msra.mxu0 %v510
  %541 = vmatprep.subr.mxu0 0.0
  %542 = vmatpush1.msra.mxu0 0.0
  %543 = vmatprep.subr.mxu0 0.0
  %544 = vmatpush1.msra.mxu0 0.0
  %545 = vmatprep.subr.mxu0 0.0
  %546 = vmatpush1.msra.mxu0 0.0
  %547 = vmatprep.subr.mxu0 0.0
  %548 = vmatpush1.msra.mxu0 0.0
  %549 = vmatprep.subr.mxu0 0.0
  %550 = vmatpush1.msra.mxu0 0.0
  %551 = vmatprep.subr.mxu0 0.0
  %552 = vmatpush1.msra.mxu0 0.0
  %553 = vmatprep.subr.mxu0 0.0
  %554 = vmatpush1.msra.mxu0 0.0
  %555 = vmatprep.subr.mxu0 0.0
  %556 = vmatpush1.msra.mxu0 0.0
  %557 = vmatprep.subr.mxu0 0.0
  %558 = vmatpush1.msra.mxu0 0.0
  %559 = vmatprep.subr.mxu0 0.0
  %560 = vmatpush1.msra.mxu0 0.0
  %561 = vmatprep.subr.mxu0 0.0
  %562 = vmatpush1.msra.mxu0 0.0
  %563 = vmatprep.subr.mxu0 0.0
  %564 = vmatpush1.msra.mxu0 0.0
  %565 = vmatprep.subr.mxu0 0.0
  %566 = vmatpush1.msra.mxu0 0.0
  %567 = vmatprep.subr.mxu0 0.0
  %568 = vmatpush1.msra.mxu0 0.0
  %569 = vmatprep.subr.mxu0 0.0
  %570 = vmatpush1.msra.mxu0 0.0
  %571 = vmatprep.subr.mxu0 0.0
  %572 = vmatpush1.msra.mxu0 0.0
  %573 = vmatprep.subr.mxu0 0.0
  %574 = vmatpush1.msra.mxu0 0.0
  %575 = vmatprep.subr.mxu0 0.0
  %576 = vmatpush1.msra.mxu0 0.0
  %577 = vmatprep.subr.mxu0 0.0
  %578 = vmatpush1.msra.mxu0 0.0
  %579 = vmatprep.subr.mxu0 0.0
  %580 = vmatpush1.msra.mxu0 0.0
  %581 = vmatprep.subr.mxu0 0.0
  %582 = vmatpush1.msra.mxu0 0.0
  %583 = vmatprep.subr.mxu0 0.0
  %584 = vmatpush1.msra.mxu0 0.0
  %585 = vmatprep.subr.mxu0 0.0
  %586 = vmatpush1.msra.mxu0 0.0
  %587 = vmatprep.subr.mxu0 0.0
  %588 = vmatpush1.msra.mxu0 0.0
  %589 = vmatprep.subr.mxu0 0.0
  %590 = vmatpush1.msra.mxu0 0.0
  %591 = vmatprep.subr.mxu0 0.0
  %592 = vmatpush1.msra.mxu0 0.0
  %593 = vmatprep.subr.mxu0 0.0
  %594 = vmatpush1.msra.mxu0 0.0
  %595 = vmatprep.mubr.f32.mxu0 0.0
  %596 = vmatmul.mubr.f32.gmra.mrb[0].mxu0 %v517
  %v597 = vpop.f32.mrb[0].mxu0
  %v598 = vadd.f32 0.0, %v597
  %v599 = vpop.f32.mrb[0].mxu0
  %600 = vmatprep.mubr.f32.mxu0 0.0
  %601 = vmatmul.mubr.f32.gmra.mrb[0].mxu0 %v520
  %v602 = vpop.f32.mrb[0].mxu0
  %v603 = vadd.f32 0.0, %v602
  %v604 = vpop.f32.mrb[0].mxu0
  %605 = vmatprep.mubr.f32.mxu0 0.0
  %606 = vmatmul.mubr.f32.gmra.mrb[0].mxu0 %v523
  %v607 = vpop.f32.mrb[0].mxu0
  %v608 = vadd.f32 0.0, %v607
  %v609 = vpop.f32.mrb[0].mxu0
  %610 = vmatprep.mubr.f32.mxu0 0.0
  %611 = vmatmul.mubr.f32.gmra.mrb[0].mxu0 %v526
  %v612 = vpop.f32.mrb[0].mxu0
  %v613 = vadd.f32 0.0, %v612
  %v614 = vpop.f32.mrb[0].mxu0
  %615 = vmatprep.mubr.f32.mxu0 0.0
  %616 = vmatmul.mubr.f32.gmra.mrb[0].mxu0 %v529
  %v617 = vpop.f32.mrb[0].mxu0
  %v618 = vadd.f32 0.0, %v617
  %v619 = vpop.f32.mrb[0].mxu0
  %620 = vdwg.mxu0
  %621 = vrot.lane.b32.xlu0 %v286, 112
  %v622 = vpop.permute.xlu0 %621
  %623 = vrot.lane.b32.xlu0 %v291, 112
  %v624 = vpop.permute.xlu0 %623
  %625 = vrot.lane.b32.xlu0 %v296, 112
  %v626 = vpop.permute.xlu0 %625
  %627 = vrot.lane.b32.xlu0 %v301, 112
  %v628 = vpop.permute.xlu0 %627
  %629 = vrot.lane.b32.xlu0 %v306, 112
  %v630 = vpop.permute.xlu0 %629
  %631 = vrot.lane.b32.xlu0 %v286, 80
  %v632 = vpop.permute.xlu0 %631
  %633 = vrot.lane.b32.xlu0 %v291, 80
  %v634 = vpop.permute.xlu0 %633
  %635 = vrot.lane.b32.xlu0 %v296, 80
  %v636 = vpop.permute.xlu0 %635
  %637 = vrot.lane.b32.xlu0 %v301, 80
  %v638 = vpop.permute.xlu0 %637
  %639 = vrot.lane.b32.xlu0 %v306, 80
  %v640 = vpop.permute.xlu0 %639
  %v641 = vsel %vm324, %v622, 0
  %v643 = vsel %vm324, %v624, 0
  %v645 = vsel %vm324, %v626, 0
  %v647 = vsel %vm324, %v628, 0
  %v649 = vsel %vm324, %v630, 0
  %v651 = vsel %vm324, %v632, 0
  %v653 = vsel %vm324, %v634, 0
  %v655 = vsel %vm324, %v636, 0
  %v657 = vsel %vm324, %v638, 0
  %v659 = vsel %vm324, %v640, 0
  %661 = vmatprep.subr.mxu0 0.0
  %662 = vmatpush1.xpose.msra.mxu0 %v651
  %663 = vmatprep.subr.mxu0 0.0
  %664 = vmatpush1.xpose.msra.mxu0 %v653
  %665 = vmatprep.subr.mxu0 0.0
  %666 = vmatpush1.xpose.msra.mxu0 %v655
  %667 = vmatprep.subr.mxu0 0.0
  %668 = vmatpush1.xpose.msra.mxu0 %v657
  %669 = vmatprep.subr.mxu0 0.0
  %670 = vmatpush1.xpose.msra.mxu0 %v659
  %671 = vmatprep.subr.mxu0 0.0
  %672 = vmatpush1.xpose.msra.mxu0 0.0
  %673 = vmatprep.subr.mxu0 0.0
  %674 = vmatpush1.xpose.msra.mxu0 0.0
  %675 = vmatprep.subr.mxu0 0.0
  %676 = vmatpush1.xpose.msra.mxu0 0.0
  %677 = vmatprep.subr.mxu0 0.0
  %678 = vmatpush1.xpose.msra.mxu0 0.0
  %679 = vmatprep.subr.mxu0 0.0
  %680 = vmatpush1.xpose.msra.mxu0 0.0
  %681 = vmatprep.subr.mxu0 0.0
  %682 = vmatpush1.xpose.msra.mxu0 0.0
  %683 = vmatprep.subr.mxu0 0.0
  %684 = vmatpush1.xpose.msra.mxu0 0.0
  %685 = vmatprep.subr.mxu0 0.0
  %686 = vmatpush1.xpose.msra.mxu0 0.0
  %687 = vmatprep.subr.mxu0 0.0
  %688 = vmatpush1.xpose.msra.mxu0 0.0
  %689 = vmatprep.subr.mxu0 0.0
  %690 = vmatpush1.xpose.msra.mxu0 0.0
  %691 = vmatprep.subr.mxu0 0.0
  %692 = vmatpush1.xpose.msra.mxu0 0.0
  %693 = vmatprep.subr.mxu0 0.0
  %694 = vmatpush1.xpose.msra.mxu0 0.0
  %695 = vmatprep.subr.mxu0 0.0
  %696 = vmatpush1.xpose.msra.mxu0 0.0
  %697 = vmatprep.subr.mxu0 0.0
  %698 = vmatpush1.xpose.msra.mxu0 0.0
  %699 = vmatprep.subr.mxu0 0.0
  %700 = vmatpush1.xpose.msra.mxu0 0.0
  %701 = vmatprep.subr.mxu0 0.0
  %702 = vmatpush1.xpose.msra.mxu0 0.0
  %703 = vmatprep.subr.mxu0 0.0
  %704 = vmatpush1.xpose.msra.mxu0 0.0
  %705 = vmatprep.subr.mxu0 0.0
  %706 = vmatpush1.xpose.msra.mxu0 0.0
  %707 = vmatprep.subr.mxu0 0.0
  %708 = vmatpush1.xpose.msra.mxu0 0.0
  %709 = vmatprep.subr.mxu0 0.0
  %710 = vmatpush1.xpose.msra.mxu0 0.0
  %711 = vmatprep.subr.mxu0 0.0
  %712 = vmatpush1.xpose.msra.mxu0 0.0
  %713 = vmatprep.subr.mxu0 0.0
  %714 = vmatpush1.xpose.msra.mxu0 0.0
  %715 = vmatprep.subr.mxu0 0.0
  %716 = vmatpush1.xpose.msra.mxu0 0.0
  %717 = vmatprep.subr.mxu0 0.0
  %718 = vmatpush1.xpose.msra.mxu0 0.0
  %719 = vmatprep.subr.mxu0 0.0
  %720 = vmatpush1.xpose.msra.mxu0 0.0
  %721 = vmatprep.subr.mxu0 0.0
  %722 = vmatpush1.xpose.msra.mxu0 0.0
  %723 = vmatprep.subr.mxu0 0.0
  %724 = vmatpush1.xpose.msra.mxu0 0.0
  %725 = vmatprep.mubr.f32.mxu0 0.0
  %726 = vmatmul.mubr.f32.gmra.mrb[0].mxu0 %v641
  %v727 = vpop.f32.mrb[0].mxu0
  %v728 = vadd.f32 0.0, %v727
  %v729 = vpop.f32.mrb[0].mxu0
  %730 = vmatprep.mubr.f32.mxu0 0.0
  %731 = vmatmul.mubr.f32.gmra.mrb[0].mxu0 %v643
  %v732 = vpop.f32.mrb[0].mxu0
  %v733 = vadd.f32 0.0, %v732
  %v734 = vpop.f32.mrb[0].mxu0
  %735 = vmatprep.mubr.f32.mxu0 0.0
  %736 = vmatmul.mubr.f32.gmra.mrb[0].mxu0 %v645
  %v737 = vpop.f32.mrb[0].mxu0
  %v738 = vadd.f32 0.0, %v737
  %v739 = vpop.f32.mrb[0].mxu0
  %740 = vmatprep.mubr.f32.mxu0 0.0
  %741 = vmatmul.mubr.f32.gmra.mrb[0].mxu0 %v647
  %v742 = vpop.f32.mrb[0].mxu0
  %v743 = vadd.f32 0.0, %v742
  %v744 = vpop.f32.mrb[0].mxu0
  %745 = vmatprep.mubr.f32.mxu0 0.0
  %746 = vmatmul.mubr.f32.gmra.mrb[0].mxu0 %v649
  %v747 = vpop.f32.mrb[0].mxu0
  %v748 = vadd.f32 0.0, %v747
  %v749 = vpop.f32.mrb[0].mxu0
  %750 = vdwg.mxu0
  %v751 = vmul.f32 %v728, 0.25
  %v752 = vmul.f32 %v733, 0.25
  %v753 = vmul.f32 %v738, 0.25
  %v754 = vmul.f32 %v743, 0.25
  %v755 = vmul.f32 %v748, 0.25
  %v756 = vadd.f32 %v751, %v186
  %v757 = vadd.f32 %v752, %v187
  %v758 = vadd.f32 %v753, %v188
  %v759 = vadd.f32 %v754, %v189
  %v760 = vadd.f32 %v755, %v190
  %v761 = vsel %vm445, %v756, -inf
  %762 = vmax.xlane.f32.xlu0 %v761
  %v763 = vpop.xlane.xlu0 %762
  %v764 = vsel %vm445, %v757, -inf
  %765 = vmax.xlane.f32.xlu0 %v764
  %v766 = vpop.xlane.xlu0 %765
  %v767 = vsel %vm445, %v758, -inf
  %768 = vmax.xlane.f32.xlu0 %v767
  %v769 = vpop.xlane.xlu0 %768
  %v770 = vsel %vm445, %v759, -inf
  %771 = vmax.xlane.f32.xlu0 %v770
  %v772 = vpop.xlane.xlu0 %771
  %v773 = vsel %vm445, %v760, -inf
  %774 = vmax.xlane.f32.xlu0 %v773
  %v775 = vpop.xlane.xlu0 %774
  %v776 = vsub.f32 %v756, %v763
  %v777 = vsub.f32 %v757, %v766
  %v778 = vsub.f32 %v758, %v769
  %v779 = vsub.f32 %v759, %v772
  %v780 = vsub.f32 %v760, %v775
  %v781 = vmul.f32 %v776, 1.442695
  %v782 = vpow.pop %v781
  %v783 = vmul.f32 %v777, 1.442695
  %v784 = vpow.pop %v783
  %v785 = vmul.f32 %v778, 1.442695
  %v786 = vpow.pop %v785
  %v787 = vmul.f32 %v779, 1.442695
  %v788 = vpow.pop %v787
  %v789 = vmul.f32 %v780, 1.442695
  %v790 = vpow.pop %v789
  %v791 = vsel %vm445, %v782, 0.0
  %792 = vadd.xlane.f32.xlu0 %v791
  %v793 = vpop.xlane.xlu0 %792
  %v794 = vsel %vm445, %v784, 0.0
  %795 = vadd.xlane.f32.xlu0 %v794
  %v796 = vpop.xlane.xlu0 %795
  %v797 = vsel %vm445, %v786, 0.0
  %798 = vadd.xlane.f32.xlu0 %v797
  %v799 = vpop.xlane.xlu0 %798
  %v800 = vsel %vm445, %v788, 0.0
  %801 = vadd.xlane.f32.xlu0 %v800
  %v802 = vpop.xlane.xlu0 %801
  %v803 = vsel %vm445, %v790, 0.0
  %804 = vadd.xlane.f32.xlu0 %v803
  %v805 = vpop.xlane.xlu0 %804
  %v806 = vrcp.pop %v793
  %v807 = vrcp.pop %v796
  %v808 = vrcp.pop %v799
  %v809 = vrcp.pop %v802
  %v810 = vrcp.pop %v805
  %v811 = vmul.f32 %v782, %v806
  %v812 = vmul.f32 %v784, %v807
  %v813 = vmul.f32 %v786, %v808
  %v814 = vmul.f32 %v788, %v809
  %v815 = vmul.f32 %v790, %v810
  %816 = vrot.lane.b32.xlu0 %v286, 48
  %v817 = vpop.permute.xlu0 %816
  %818 = vrot.lane.b32.xlu0 %v291, 48
  %v819 = vpop.permute.xlu0 %818
  %820 = vrot.lane.b32.xlu0 %v296, 48
  %v821 = vpop.permute.xlu0 %820
  %822 = vrot.lane.b32.xlu0 %v301, 48
  %v823 = vpop.permute.xlu0 %822
  %824 = vrot.lane.b32.xlu0 %v306, 48
  %v825 = vpop.permute.xlu0 %824
  %v832 = vsel %vm445, %v811, 0
  %v835 = vsel %vm445, %v812, 0
  %v838 = vsel %vm445, %v813, 0
  %v841 = vsel %vm445, %v814, 0
  %v844 = vsel %vm445, %v815, 0
  %846 = vmatprep.subr.mxu0 0.0
  %847 = vmatpush1.msra.mxu0 %v817
  %848 = vmatprep.subr.mxu0 0.0
  %849 = vmatpush1.msra.mxu0 %v819
  %850 = vmatprep.subr.mxu0 0.0
  %851 = vmatpush1.msra.mxu0 %v821
  %852 = vmatprep.subr.mxu0 0.0
  %853 = vmatpush1.msra.mxu0 %v823
  %854 = vmatprep.subr.mxu0 0.0
  %855 = vmatpush1.msra.mxu0 %v825
  %856 = vmatprep.subr.mxu0 0.0
  %857 = vmatpush1.msra.mxu0 0.0
  %858 = vmatprep.subr.mxu0 0.0
  %859 = vmatpush1.msra.mxu0 0.0
  %860 = vmatprep.subr.mxu0 0.0
  %861 = vmatpush1.msra.mxu0 0.0
  %862 = vmatprep.subr.mxu0 0.0
  %863 = vmatpush1.msra.mxu0 0.0
  %864 = vmatprep.subr.mxu0 0.0
  %865 = vmatpush1.msra.mxu0 0.0
  %866 = vmatprep.subr.mxu0 0.0
  %867 = vmatpush1.msra.mxu0 0.0
  %868 = vmatprep.subr.mxu0 0.0
  %869 = vmatpush1.msra.mxu0 0.0
  %870 = vmatprep.subr.mxu0 0.0
  %871 = vmatpush1.msra.mxu0 0.0
  %872 = vmatprep.subr.mxu0 0.0
  %873 = vmatpush1.msra.mxu0 0.0
  %874 = vmatprep.subr.mxu0 0.0
  %875 = vmatpush1.msra.mxu0 0.0
  %876 = vmatprep.subr.mxu0 0.0
  %877 = vmatpush1.msra.mxu0 0.0
  %878 = vmatprep.subr.mxu0 0.0
  %879 = vmatpush1.msra.mxu0 0.0
  %880 = vmatprep.subr.mxu0 0.0
  %881 = vmatpush1.msra.mxu0 0.0
  %882 = vmatprep.subr.mxu0 0.0
  %883 = vmatpush1.msra.mxu0 0.0
  %884 = vmatprep.subr.mxu0 0.0
  %885 = vmatpush1.msra.mxu0 0.0
  %886 = vmatprep.subr.mxu0 0.0
  %887 = vmatpush1.msra.mxu0 0.0
  %888 = vmatprep.subr.mxu0 0.0
  %889 = vmatpush1.msra.mxu0 0.0
  %890 = vmatprep.subr.mxu0 0.0
  %891 = vmatpush1.msra.mxu0 0.0
  %892 = vmatprep.subr.mxu0 0.0
  %893 = vmatpush1.msra.mxu0 0.0
  %894 = vmatprep.subr.mxu0 0.0
  %895 = vmatpush1.msra.mxu0 0.0
  %896 = vmatprep.subr.mxu0 0.0
  %897 = vmatpush1.msra.mxu0 0.0
  %898 = vmatprep.subr.mxu0 0.0
  %899 = vmatpush1.msra.mxu0 0.0
  %900 = vmatprep.subr.mxu0 0.0
  %901 = vmatpush1.msra.mxu0 0.0
  %902 = vmatprep.subr.mxu0 0.0
  %903 = vmatpush1.msra.mxu0 0.0
  %904 = vmatprep.subr.mxu0 0.0
  %905 = vmatpush1.msra.mxu0 0.0
  %906 = vmatprep.subr.mxu0 0.0
  %907 = vmatpush1.msra.mxu0 0.0
  %908 = vmatprep.subr.mxu0 0.0
  %909 = vmatpush1.msra.mxu0 0.0
  %910 = vmatprep.mubr.f32.mxu0 0.0
  %911 = vmatmul.mubr.f32.gmra.mrb[0].mxu0 %v832
  %v912 = vpop.f32.mrb[0].mxu0
  %v913 = vadd.f32 0.0, %v912
  %v914 = vpop.f32.mrb[0].mxu0
  %915 = vmatprep.mubr.f32.mxu0 0.0
  %916 = vmatmul.mubr.f32.gmra.mrb[0].mxu0 %v835
  %v917 = vpop.f32.mrb[0].mxu0
  %v918 = vadd.f32 0.0, %v917
  %v919 = vpop.f32.mrb[0].mxu0
  %920 = vmatprep.mubr.f32.mxu0 0.0
  %921 = vmatmul.mubr.f32.gmra.mrb[0].mxu0 %v838
  %v922 = vpop.f32.mrb[0].mxu0
  %v923 = vadd.f32 0.0, %v922
  %v924 = vpop.f32.mrb[0].mxu0
  %925 = vmatprep.mubr.f32.mxu0 0.0
  %926 = vmatmul.mubr.f32.gmra.mrb[0].mxu0 %v841
  %v927 = vpop.f32.mrb[0].mxu0
  %v928 = vadd.f32 0.0, %v927
  %v929 = vpop.f32.mrb[0].mxu0
  %930 = vmatprep.mubr.f32.mxu0 0.0
  %931 = vmatmul.mubr.f32.gmra.mrb[0].mxu0 %v844
  %v932 = vpop.f32.mrb[0].mxu0
  %v933 = vadd.f32 0.0, %v932
  %v934 = vpop.f32.mrb[0].mxu0
  %935 = vdwg.mxu0
  %941 = vrot.lane.b32.xlu0 %v913, 16
  %v942 = vpop.permute.xlu0 %941
  %943 = vrot.lane.b32.xlu0 %v918, 16
  %v944 = vpop.permute.xlu0 %943
  %945 = vrot.lane.b32.xlu0 %v923, 16
  %v946 = vpop.permute.xlu0 %945
  %947 = vrot.lane.b32.xlu0 %v928, 16
  %v948 = vpop.permute.xlu0 %947
  %949 = vrot.lane.b32.xlu0 %v933, 16
  %v950 = vpop.permute.xlu0 %949
  %v956 = vsel %vm324, %v598, %v942
  %v957 = vsel %vm324, %v603, %v944
  %v958 = vsel %vm324, %v608, %v946
  %v959 = vsel %vm324, %v613, %v948
  %v960 = vsel %vm324, %v618, %v950
  %v961 = vld [vmem:[%s7] sm:$0xff]
  %v962 = vld [vmem:[%s7 + $0x8] sm:$0xff]
  %v963 = vld [vmem:[%s7 + $0x10] sm:$0xff]
  %v964 = vld [vmem:[%s7 + $0x18] sm:$0xff]
  %v965 = vld [vmem:[%s8] sm:$0x1]
  %v967 = vlaneseq
  %v968 = vshrl.u32 %v967, 7
  %v969 = vsub.s32 0, %v968
  %v970 = vrot.slane %v965, %v969
  %v973 = vsel %vm203, %v956, 0
  %v976 = vsel %vm203, %v957, 0
  %v979 = vsel %vm203, %v958, 0
  %v982 = vsel %vm203, %v959, 0
  %v985 = vsel %vm203, %v960, 0
  %987 = vmatprep.subr.mxu0 0.0
  %988 = vmatpush1.msra.mxu0 %v961
  %989 = vmatprep.subr.mxu0 0.0
  %990 = vmatpush1.msra.mxu0 %v962
  %991 = vmatprep.subr.mxu0 0.0
  %992 = vmatpush1.msra.mxu0 %v963
  %993 = vmatprep.subr.mxu0 0.0
  %994 = vmatpush1.msra.mxu0 %v964
  %995 = vmatprep.subr.mxu0 0.0
  %996 = vmatpush1.msra.mxu0 0.0
  %997 = vmatprep.subr.mxu0 0.0
  %998 = vmatpush1.msra.mxu0 0.0
  %999 = vmatprep.subr.mxu0 0.0
  %1000 = vmatpush1.msra.mxu0 0.0
  %1001 = vmatprep.subr.mxu0 0.0
  %1002 = vmatpush1.msra.mxu0 0.0
  %1003 = vmatprep.subr.mxu0 0.0
  %1004 = vmatpush1.msra.mxu0 0.0
  %1005 = vmatprep.subr.mxu0 0.0
  %1006 = vmatpush1.msra.mxu0 0.0
  %1007 = vmatprep.subr.mxu0 0.0
  %1008 = vmatpush1.msra.mxu0 0.0
  %1009 = vmatprep.subr.mxu0 0.0
  %1010 = vmatpush1.msra.mxu0 0.0
  %1011 = vmatprep.subr.mxu0 0.0
  %1012 = vmatpush1.msra.mxu0 0.0
  %1013 = vmatprep.subr.mxu0 0.0
  %1014 = vmatpush1.msra.mxu0 0.0
  %1015 = vmatprep.subr.mxu0 0.0
  %1016 = vmatpush1.msra.mxu0 0.0
  %1017 = vmatprep.subr.mxu0 0.0
  %1018 = vmatpush1.msra.mxu0 0.0
  %1019 = vmatprep.subr.mxu0 0.0
  %1020 = vmatpush1.msra.mxu0 0.0
  %1021 = vmatprep.subr.mxu0 0.0
  %1022 = vmatpush1.msra.mxu0 0.0
  %1023 = vmatprep.subr.mxu0 0.0
  %1024 = vmatpush1.msra.mxu0 0.0
  %1025 = vmatprep.subr.mxu0 0.0
  %1026 = vmatpush1.msra.mxu0 0.0
  %1027 = vmatprep.subr.mxu0 0.0
  %1028 = vmatpush1.msra.mxu0 0.0
  %1029 = vmatprep.subr.mxu0 0.0
  %1030 = vmatpush1.msra.mxu0 0.0
  %1031 = vmatprep.subr.mxu0 0.0
  %1032 = vmatpush1.msra.mxu0 0.0
  %1033 = vmatprep.subr.mxu0 0.0
  %1034 = vmatpush1.msra.mxu0 0.0
  %1035 = vmatprep.subr.mxu0 0.0
  %1036 = vmatpush1.msra.mxu0 0.0
  %1037 = vmatprep.subr.mxu0 0.0
  %1038 = vmatpush1.msra.mxu0 0.0
  %1039 = vmatprep.subr.mxu0 0.0
  %1040 = vmatpush1.msra.mxu0 0.0
  %1041 = vmatprep.subr.mxu0 0.0
  %1042 = vmatpush1.msra.mxu0 0.0
  %1043 = vmatprep.subr.mxu0 0.0
  %1044 = vmatpush1.msra.mxu0 0.0
  %1045 = vmatprep.subr.mxu0 0.0
  %1046 = vmatpush1.msra.mxu0 0.0
  %1047 = vmatprep.subr.mxu0 0.0
  %1048 = vmatpush1.msra.mxu0 0.0
  %1049 = vmatprep.subr.mxu0 0.0
  %1050 = vmatpush1.msra.mxu0 0.0
  %1051 = vmatprep.mubr.f32.mxu0 0.0
  %1052 = vmatmul.mubr.f32.gmra.mrb[0].mxu0 %v973
  %v1053 = vpop.f32.mrb[0].mxu0
  %v1054 = vadd.f32 %v970, %v1053
  %v1055 = vpop.f32.mrb[0].mxu0
  %1056 = vmatprep.mubr.f32.mxu0 0.0
  %1057 = vmatmul.mubr.f32.gmra.mrb[0].mxu0 %v976
  %v1058 = vpop.f32.mrb[0].mxu0
  %v1059 = vadd.f32 %v970, %v1058
  %v1060 = vpop.f32.mrb[0].mxu0
  %1061 = vmatprep.mubr.f32.mxu0 0.0
  %1062 = vmatmul.mubr.f32.gmra.mrb[0].mxu0 %v979
  %v1063 = vpop.f32.mrb[0].mxu0
  %v1064 = vadd.f32 %v970, %v1063
  %v1065 = vpop.f32.mrb[0].mxu0
  %1066 = vmatprep.mubr.f32.mxu0 0.0
  %1067 = vmatmul.mubr.f32.gmra.mrb[0].mxu0 %v982
  %v1068 = vpop.f32.mrb[0].mxu0
  %v1069 = vadd.f32 %v970, %v1068
  %v1070 = vpop.f32.mrb[0].mxu0
  %1071 = vmatprep.mubr.f32.mxu0 0.0
  %1072 = vmatmul.mubr.f32.gmra.mrb[0].mxu0 %v985
  %v1073 = vpop.f32.mrb[0].mxu0
  %v1074 = vadd.f32 %v970, %v1073
  %v1075 = vpop.f32.mrb[0].mxu0
  %1076 = vdwg.mxu0
  %v1077 = vadd.f32 %v181, %v1054
  %v1078 = vadd.f32 %v182, %v1059
  %v1079 = vadd.f32 %v183, %v1064
  %v1080 = vadd.f32 %v184, %v1069
  %v1081 = vadd.f32 %v185, %v1074
  %v1082 = vsel %vm203, %v1077, 0.0
  %1083 = vadd.xlane.f32.xlu0 %v1082
  %v1084 = vpop.xlane.xlu0 %1083
  %v1085 = vsel %vm203, %v1078, 0.0
  %1086 = vadd.xlane.f32.xlu0 %v1085
  %v1087 = vpop.xlane.xlu0 %1086
  %v1088 = vsel %vm203, %v1079, 0.0
  %1089 = vadd.xlane.f32.xlu0 %v1088
  %v1090 = vpop.xlane.xlu0 %1089
  %v1091 = vsel %vm203, %v1080, 0.0
  %1092 = vadd.xlane.f32.xlu0 %v1091
  %v1093 = vpop.xlane.xlu0 %1092
  %v1094 = vsel %vm203, %v1081, 0.0
  %1095 = vadd.xlane.f32.xlu0 %v1094
  %v1096 = vpop.xlane.xlu0 %1095
  %v1097 = vrcp.pop 32.0
  %v1098 = vmul.f32 %v1084, %v1097
  %v1099 = vmul.f32 %v1087, %v1097
  %v1100 = vmul.f32 %v1090, %v1097
  %v1101 = vmul.f32 %v1093, %v1097
  %v1102 = vmul.f32 %v1096, %v1097
  %v1103 = vsub.f32 %v1077, %v1098
  %v1104 = vsub.f32 %v1078, %v1099
  %v1105 = vsub.f32 %v1079, %v1100
  %v1106 = vsub.f32 %v1080, %v1101
  %v1107 = vsub.f32 %v1081, %v1102
  %v1108 = vmul.f32 %v1103, %v1103
  %v1109 = vmul.f32 %v1104, %v1104
  %v1110 = vmul.f32 %v1105, %v1105
  %v1111 = vmul.f32 %v1106, %v1106
  %v1112 = vmul.f32 %v1107, %v1107
  %v1113 = vsel %vm203, %v1108, 0.0
  %1114 = vadd.xlane.f32.xlu0 %v1113
  %v1115 = vpop.xlane.xlu0 %1114
  %v1116 = vsel %vm203, %v1109, 0.0
  %1117 = vadd.xlane.f32.xlu0 %v1116
  %v1118 = vpop.xlane.xlu0 %1117
  %v1119 = vsel %vm203, %v1110, 0.0
  %1120 = vadd.xlane.f32.xlu0 %v1119
  %v1121 = vpop.xlane.xlu0 %1120
  %v1122 = vsel %vm203, %v1111, 0.0
  %1123 = vadd.xlane.f32.xlu0 %v1122
  %v1124 = vpop.xlane.xlu0 %1123
  %v1125 = vsel %vm203, %v1112, 0.0
  %1126 = vadd.xlane.f32.xlu0 %v1125
  %v1127 = vpop.xlane.xlu0 %1126
  %v1128 = vmul.f32 %v1115, %v1097
  %v1129 = vmul.f32 %v1118, %v1097
  %v1130 = vmul.f32 %v1121, %v1097
  %v1131 = vmul.f32 %v1124, %v1097
  %v1132 = vmul.f32 %v1127, %v1097
  %v1133 = vadd.f32 %v1128, 1e-05
  %v1134 = vadd.f32 %v1129, 1e-05
  %v1135 = vadd.f32 %v1130, 1e-05
  %v1136 = vadd.f32 %v1131, 1e-05
  %v1137 = vadd.f32 %v1132, 1e-05
  %v1138 = vrsqrt.pop %v1133
  %v1139 = vrsqrt.pop %v1134
  %v1140 = vrsqrt.pop %v1135
  %v1141 = vrsqrt.pop %v1136
  %v1142 = vrsqrt.pop %v1137
  %v1143 = vmul.f32 %v1103, %v1138
  %v1144 = vmul.f32 %v1104, %v1139
  %v1145 = vmul.f32 %v1105, %v1140
  %v1146 = vmul.f32 %v1106, %v1141
  %v1147 = vmul.f32 %v1107, %v1142
  %v1148 = vlaneseq
  %v1149 = vshrl.u32 %v1148, 7
  %v1150 = vsub.s32 0, %v1149
  %v1151 = vrot.slane %v191, %v1150
  %v1152 = vmul.f32 %v1143, %v1151
  %v1153 = vmul.f32 %v1144, %v1151
  %v1154 = vmul.f32 %v1145, %v1151
  %v1155 = vmul.f32 %v1146, %v1151
  %v1156 = vmul.f32 %v1147, %v1151
  %v1157 = vlaneseq
  %v1158 = vshrl.u32 %v1157, 7
  %v1159 = vsub.s32 1, %v1158
  %v1160 = vrot.slane %v191, %v1159
  %v1161 = vadd.f32 %v1152, %v1160
  %v1162 = vadd.f32 %v1153, %v1160
  %v1163 = vadd.f32 %v1154, %v1160
  %v1164 = vadd.f32 %v1155, %v1160
  %v1165 = vadd.f32 %v1156, %v1160
  %v1166 = vld [vmem:[%s9] sm:$0xff]
  %v1167 = vld [vmem:[%s9 + $0x8] sm:$0xff]
  %v1168 = vld [vmem:[%s9 + $0x10] sm:$0xff]
  %v1169 = vld [vmem:[%s9 + $0x18] sm:$0xff]
  %v1170 = vld [vmem:[%s10] sm:$0x1]
  %v1172 = vlaneseq
  %v1173 = vshrl.u32 %v1172, 7
  %v1174 = vsub.s32 0, %v1173
  %v1175 = vrot.slane %v1170, %v1174
  %v1178 = vsel %vm203, %v1161, 0
  %v1181 = vsel %vm203, %v1162, 0
  %v1184 = vsel %vm203, %v1163, 0
  %v1187 = vsel %vm203, %v1164, 0
  %v1190 = vsel %vm203, %v1165, 0
  %1192 = vmatprep.subr.mxu0 0.0
  %1193 = vmatpush1.msra.mxu0 %v1166
  %1194 = vmatprep.subr.mxu0 0.0
  %1195 = vmatpush1.msra.mxu0 %v1167
  %1196 = vmatprep.subr.mxu0 0.0
  %1197 = vmatpush1.msra.mxu0 %v1168
  %1198 = vmatprep.subr.mxu0 0.0
  %1199 = vmatpush1.msra.mxu0 %v1169
  %1200 = vmatprep.subr.mxu0 0.0
  %1201 = vmatpush1.msra.mxu0 0.0
  %1202 = vmatprep.subr.mxu0 0.0
  %1203 = vmatpush1.msra.mxu0 0.0
  %1204 = vmatprep.subr.mxu0 0.0
  %1205 = vmatpush1.msra.mxu0 0.0
  %1206 = vmatprep.subr.mxu0 0.0
  %1207 = vmatpush1.msra.mxu0 0.0
  %1208 = vmatprep.subr.mxu0 0.0
  %1209 = vmatpush1.msra.mxu0 0.0
  %1210 = vmatprep.subr.mxu0 0.0
  %1211 = vmatpush1.msra.mxu0 0.0
  %1212 = vmatprep.subr.mxu0 0.0
  %1213 = vmatpush1.msra.mxu0 0.0
  %1214 = vmatprep.subr.mxu0 0.0
  %1215 = vmatpush1.msra.mxu0 0.0
  %1216 = vmatprep.subr.mxu0 0.0
  %1217 = vmatpush1.msra.mxu0 0.0
  %1218 = vmatprep.subr.mxu0 0.0
  %1219 = vmatpush1.msra.mxu0 0.0
  %1220 = vmatprep.subr.mxu0 0.0
  %1221 = vmatpush1.msra.mxu0 0.0
  %1222 = vmatprep.subr.mxu0 0.0
  %1223 = vmatpush1.msra.mxu0 0.0
  %1224 = vmatprep.subr.mxu0 0.0
  %1225 = vmatpush1.msra.mxu0 0.0
  %1226 = vmatprep.subr.mxu0 0.0
  %1227 = vmatpush1.msra.mxu0 0.0
  %1228 = vmatprep.subr.mxu0 0.0
  %1229 = vmatpush1.msra.mxu0 0.0
  %1230 = vmatprep.subr.mxu0 0.0
  %1231 = vmatpush1.msra.mxu0 0.0
  %1232 = vmatprep.subr.mxu0 0.0
  %1233 = vmatpush1.msra.mxu0 0.0
  %1234 = vmatprep.subr.mxu0 0.0
  %1235 = vmatpush1.msra.mxu0 0.0
  %1236 = vmatprep.subr.mxu0 0.0
  %1237 = vmatpush1.msra.mxu0 0.0
  %1238 = vmatprep.subr.mxu0 0.0
  %1239 = vmatpush1.msra.mxu0 0.0
  %1240 = vmatprep.subr.mxu0 0.0
  %1241 = vmatpush1.msra.mxu0 0.0
  %1242 = vmatprep.subr.mxu0 0.0
  %1243 = vmatpush1.msra.mxu0 0.0
  %1244 = vmatprep.subr.mxu0 0.0
  %1245 = vmatpush1.msra.mxu0 0.0
  %1246 = vmatprep.subr.mxu0 0.0
  %1247 = vmatpush1.msra.mxu0 0.0
  %1248 = vmatprep.subr.mxu0 0.0
  %1249 = vmatpush1.msra.mxu0 0.0
  %1250 = vmatprep.subr.mxu0 0.0
  %1251 = vmatpush1.msra.mxu0 0.0
  %1252 = vmatprep.subr.mxu0 0.0
  %1253 = vmatpush1.msra.mxu0 0.0
  %1254 = vmatprep.subr.mxu0 0.0
  %1255 = vmatpush1.msra.mxu0 0.0
  %1256 = vmatprep.mubr.f32.mxu0 0.0
  %1257 = vmatmul.mubr.f32.gmra.mrb[0].mxu0 %v1178
  %v1258 = vpop.f32.mrb[0].mxu0
  %v1259 = vadd.f32 %v1175, %v1258
  %v1260 = vpop.f32.mrb[0].mxu0
  %1261 = vmatprep.mubr.f32.mxu0 0.0
  %1262 = vmatmul.mubr.f32.gmra.mrb[0].mxu0 %v1181
  %v1263 = vpop.f32.mrb[0].mxu0
  %v1264 = vadd.f32 %v1175, %v1263
  %v1265 = vpop.f32.mrb[0].mxu0
  %1266 = vmatprep.mubr.f32.mxu0 0.0
  %1267 = vmatmul.mubr.f32.gmra.mrb[0].mxu0 %v1184
  %v1268 = vpop.f32.mrb[0].mxu0
  %v1269 = vadd.f32 %v1175, %v1268
  %v1270 = vpop.f32.mrb[0].mxu0
  %1271 = vmatprep.mubr.f32.mxu0 0.0
  %1272 = vmatmul.mubr.f32.gmra.mrb[0].mxu0 %v1187
  %v1273 = vpop.f32.mrb[0].mxu0
  %v1274 = vadd.f32 %v1175, %v1273
  %v1275 = vpop.f32.mrb[0].mxu0
  %1276 = vmatprep.mubr.f32.mxu0 0.0
  %1277 = vmatmul.mubr.f32.gmra.mrb[0].mxu0 %v1190
  %v1278 = vpop.f32.mrb[0].mxu0
  %v1279 = vadd.f32 %v1175, %v1278
  %v1280 = vpop.f32.mrb[0].mxu0
  %1281 = vdwg.mxu0
  %v1282 = vmax.f32 %v1259, 0.0
  %v1283 = vmax.f32 %v1264, 0.0
  %v1284 = vmax.f32 %v1269, 0.0
  %v1285 = vmax.f32 %v1274, 0.0
  %v1286 = vmax.f32 %v1279, 0.0
  %v1287 = vld [vmem:[%s11] sm:$0xff]
  %v1288 = vld [vmem:[%s11 + $0x8] sm:$0xff]
  %v1289 = vld [vmem:[%s11 + $0x10] sm:$0xff]
  %v1290 = vld [vmem:[%s11 + $0x18] sm:$0xff]
  %v1291 = vld [vmem:[%s11 + $0x20] sm:$0xff]
  %v1292 = vld [vmem:[%s11 + $0x28] sm:$0xff]
  %v1293 = vld [vmem:[%s11 + $0x30] sm:$0xff]
  %v1294 = vld [vmem:[%s11 + $0x38] sm:$0xff]
  %v1295 = vld [vmem:[%s12] sm:$0x1]
  %v1297 = vlaneseq
  %v1298 = vshrl.u32 %v1297, 7
  %v1299 = vsub.s32 0, %v1298
  %v1300 = vrot.slane %v1295, %v1299
  %vm1302 = vcmask 523264
  %v1304 = vsel %vm1302, %v1282, 0
  %v1307 = vsel %vm1302, %v1283, 0
  %v1310 = vsel %vm1302, %v1284, 0
  %v1313 = vsel %vm1302, %v1285, 0
  %v1316 = vsel %vm1302, %v1286, 0
  %1318 = vmatprep.subr.mxu0 0.0
  %1319 = vmatpush1.msra.mxu0 %v1287
  %1320 = vmatprep.subr.mxu0 0.0
  %1321 = vmatpush1.msra.mxu0 %v1288
  %1322 = vmatprep.subr.mxu0 0.0
  %1323 = vmatpush1.msra.mxu0 %v1289
  %1324 = vmatprep.subr.mxu0 0.0
  %1325 = vmatpush1.msra.mxu0 %v1290
  %1326 = vmatprep.subr.mxu0 0.0
  %1327 = vmatpush1.msra.mxu0 %v1291
  %1328 = vmatprep.subr.mxu0 0.0
  %1329 = vmatpush1.msra.mxu0 %v1292
  %1330 = vmatprep.subr.mxu0 0.0
  %1331 = vmatpush1.msra.mxu0 %v1293
  %1332 = vmatprep.subr.mxu0 0.0
  %1333 = vmatpush1.msra.mxu0 %v1294
  %1334 = vmatprep.subr.mxu0 0.0
  %1335 = vmatpush1.msra.mxu0 0.0
  %1336 = vmatprep.subr.mxu0 0.0
  %1337 = vmatpush1.msra.mxu0 0.0
  %1338 = vmatprep.subr.mxu0 0.0
  %1339 = vmatpush1.msra.mxu0 0.0
  %1340 = vmatprep.subr.mxu0 0.0
  %1341 = vmatpush1.msra.mxu0 0.0
  %1342 = vmatprep.subr.mxu0 0.0
  %1343 = vmatpush1.msra.mxu0 0.0
  %1344 = vmatprep.subr.mxu0 0.0
  %1345 = vmatpush1.msra.mxu0 0.0
  %1346 = vmatprep.subr.mxu0 0.0
  %1347 = vmatpush1.msra.mxu0 0.0
  %1348 = vmatprep.subr.mxu0 0.0
  %1349 = vmatpush1.msra.mxu0 0.0
  %1350 = vmatprep.subr.mxu0 0.0
  %1351 = vmatpush1.msra.mxu0 0.0
  %1352 = vmatprep.subr.mxu0 0.0
  %1353 = vmatpush1.msra.mxu0 0.0
  %1354 = vmatprep.subr.mxu0 0.0
  %1355 = vmatpush1.msra.mxu0 0.0
  %1356 = vmatprep.subr.mxu0 0.0
  %1357 = vmatpush1.msra.mxu0 0.0
  %1358 = vmatprep.subr.mxu0 0.0
  %1359 = vmatpush1.msra.mxu0 0.0
  %1360 = vmatprep.subr.mxu0 0.0
  %1361 = vmatpush1.msra.mxu0 0.0
  %1362 = vmatprep.subr.mxu0 0.0
  %1363 = vmatpush1.msra.mxu0 0.0
  %1364 = vmatprep.subr.mxu0 0.0
  %1365 = vmatpush1.msra.mxu0 0.0
  %1366 = vmatprep.subr.mxu0 0.0
  %1367 = vmatpush1.msra.mxu0 0.0
  %1368 = vmatprep.subr.mxu0 0.0
  %1369 = vmatpush1.msra.mxu0 0.0
  %1370 = vmatprep.subr.mxu0 0.0
  %1371 = vmatpush1.msra.mxu0 0.0
  %1372 = vmatprep.subr.mxu0 0.0
  %1373 = vmatpush1.msra.mxu0 0.0
  %1374 = vmatprep.subr.mxu0 0.0
  %1375 = vmatpush1.msra.mxu0 0.0
  %1376 = vmatprep.subr.mxu0 0.0
  %1377 = vmatpush1.msra.mxu0 0.0
  %1378 = vmatprep.subr.mxu0 0.0
  %1379 = vmatpush1.msra.mxu0 0.0
  %1380 = vmatprep.subr.mxu0 0.0
  %1381 = vmatpush1.msra.mxu0 0.0
  %1382 = vmatprep.mubr.f32.mxu0 0.0
  %1383 = vmatmul.mubr.f32.gmra.mrb[0].mxu0 %v1304
  %v1384 = vpop.f32.mrb[0].mxu0
  %v1385 = vadd.f32 %v1300, %v1384
  %v1386 = vpop.f32.mrb[0].mxu0
  %1387 = vmatprep.mubr.f32.mxu0 0.0
  %1388 = vmatmul.mubr.f32.gmra.mrb[0].mxu0 %v1307
  %v1389 = vpop.f32.mrb[0].mxu0
  %v1390 = vadd.f32 %v1300, %v1389
  %v1391 = vpop.f32.mrb[0].mxu0
  %1392 = vmatprep.mubr.f32.mxu0 0.0
  %1393 = vmatmul.mubr.f32.gmra.mrb[0].mxu0 %v1310
  %v1394 = vpop.f32.mrb[0].mxu0
  %v1395 = vadd.f32 %v1300, %v1394
  %v1396 = vpop.f32.mrb[0].mxu0
  %1397 = vmatprep.mubr.f32.mxu0 0.0
  %1398 = vmatmul.mubr.f32.gmra.mrb[0].mxu0 %v1313
  %v1399 = vpop.f32.mrb[0].mxu0
  %v1400 = vadd.f32 %v1300, %v1399
  %v1401 = vpop.f32.mrb[0].mxu0
  %1402 = vmatprep.mubr.f32.mxu0 0.0
  %1403 = vmatmul.mubr.f32.gmra.mrb[0].mxu0 %v1316
  %v1404 = vpop.f32.mrb[0].mxu0
  %v1405 = vadd.f32 %v1300, %v1404
  %v1406 = vpop.f32.mrb[0].mxu0
  %1407 = vdwg.mxu0
  %v1408 = vadd.f32 %v1161, %v1385
  %v1409 = vadd.f32 %v1162, %v1390
  %v1410 = vadd.f32 %v1163, %v1395
  %v1411 = vadd.f32 %v1164, %v1400
  %v1412 = vadd.f32 %v1165, %v1405
  %v1413 = vsel %vm203, %v1408, 0.0
  %1414 = vadd.xlane.f32.xlu0 %v1413
  %v1415 = vpop.xlane.xlu0 %1414
  %v1416 = vsel %vm203, %v1409, 0.0
  %1417 = vadd.xlane.f32.xlu0 %v1416
  %v1418 = vpop.xlane.xlu0 %1417
  %v1419 = vsel %vm203, %v1410, 0.0
  %1420 = vadd.xlane.f32.xlu0 %v1419
  %v1421 = vpop.xlane.xlu0 %1420
  %v1422 = vsel %vm203, %v1411, 0.0
  %1423 = vadd.xlane.f32.xlu0 %v1422
  %v1424 = vpop.xlane.xlu0 %1423
  %v1425 = vsel %vm203, %v1412, 0.0
  %1426 = vadd.xlane.f32.xlu0 %v1425
  %v1427 = vpop.xlane.xlu0 %1426
  %v1428 = vmul.f32 %v1415, %v1097
  %v1429 = vmul.f32 %v1418, %v1097
  %v1430 = vmul.f32 %v1421, %v1097
  %v1431 = vmul.f32 %v1424, %v1097
  %v1432 = vmul.f32 %v1427, %v1097
  %v1433 = vsub.f32 %v1408, %v1428
  %v1434 = vsub.f32 %v1409, %v1429
  %v1435 = vsub.f32 %v1410, %v1430
  %v1436 = vsub.f32 %v1411, %v1431
  %v1437 = vsub.f32 %v1412, %v1432
  %v1438 = vmul.f32 %v1433, %v1433
  %v1439 = vmul.f32 %v1434, %v1434
  %v1440 = vmul.f32 %v1435, %v1435
  %v1441 = vmul.f32 %v1436, %v1436
  %v1442 = vmul.f32 %v1437, %v1437
  %v1443 = vsel %vm203, %v1438, 0.0
  %1444 = vadd.xlane.f32.xlu0 %v1443
  %v1445 = vpop.xlane.xlu0 %1444
  %v1446 = vsel %vm203, %v1439, 0.0
  %1447 = vadd.xlane.f32.xlu0 %v1446
  %v1448 = vpop.xlane.xlu0 %1447
  %v1449 = vsel %vm203, %v1440, 0.0
  %1450 = vadd.xlane.f32.xlu0 %v1449
  %v1451 = vpop.xlane.xlu0 %1450
  %v1452 = vsel %vm203, %v1441, 0.0
  %1453 = vadd.xlane.f32.xlu0 %v1452
  %v1454 = vpop.xlane.xlu0 %1453
  %v1455 = vsel %vm203, %v1442, 0.0
  %1456 = vadd.xlane.f32.xlu0 %v1455
  %v1457 = vpop.xlane.xlu0 %1456
  %v1458 = vmul.f32 %v1445, %v1097
  %v1459 = vmul.f32 %v1448, %v1097
  %v1460 = vmul.f32 %v1451, %v1097
  %v1461 = vmul.f32 %v1454, %v1097
  %v1462 = vmul.f32 %v1457, %v1097
  %v1463 = vadd.f32 %v1458, 1e-05
  %v1464 = vadd.f32 %v1459, 1e-05
  %v1465 = vadd.f32 %v1460, 1e-05
  %v1466 = vadd.f32 %v1461, 1e-05
  %v1467 = vadd.f32 %v1462, 1e-05
  %v1468 = vrsqrt.pop %v1463
  %v1469 = vrsqrt.pop %v1464
  %v1470 = vrsqrt.pop %v1465
  %v1471 = vrsqrt.pop %v1466
  %v1472 = vrsqrt.pop %v1467
  %v1473 = vmul.f32 %v1433, %v1468
  %v1474 = vmul.f32 %v1434, %v1469
  %v1475 = vmul.f32 %v1435, %v1470
  %v1476 = vmul.f32 %v1436, %v1471
  %v1477 = vmul.f32 %v1437, %v1472
  %v1478 = vlaneseq
  %v1479 = vshrl.u32 %v1478, 7
  %v1480 = vsub.s32 2, %v1479
  %v1481 = vrot.slane %v191, %v1480
  %v1482 = vmul.f32 %v1473, %v1481
  %v1483 = vmul.f32 %v1474, %v1481
  %v1484 = vmul.f32 %v1475, %v1481
  %v1485 = vmul.f32 %v1476, %v1481
  %v1486 = vmul.f32 %v1477, %v1481
  %v1487 = vlaneseq
  %v1488 = vshrl.u32 %v1487, 7
  %v1489 = vsub.s32 3, %v1488
  %v1490 = vrot.slane %v191, %v1489
  %v1491 = vadd.f32 %v1482, %v1490
  %v1492 = vadd.f32 %v1483, %v1490
  %v1493 = vadd.f32 %v1484, %v1490
  %v1494 = vadd.f32 %v1485, %v1490
  %v1495 = vadd.f32 %v1486, %v1490
  %s1496 = scalar_lea.vmem %s13, 4
  %v1497 = vld [vmem:[%s1496] sm:$0xf]
  %s1498 = scalar_lea.vmem %s5, 32
  %v1499 = vld [vmem:[%s1498] sm:$0xff]
  %v1500 = vld [vmem:[%s1498 + $0x8] sm:$0xff]
  %v1501 = vld [vmem:[%s1498 + $0x10] sm:$0xff]
  %v1502 = vld [vmem:[%s1498 + $0x18] sm:$0xff]
  %s1503 = scalar_lea.vmem %s6, 1
  %v1504 = vld [vmem:[%s1503] sm:$0x1]
  %v1506 = vlaneseq
  %v1507 = vshrl.u32 %v1506, 7
  %v1508 = vsub.s32 0, %v1507
  %v1509 = vrot.slane %v1504, %v1508
  %v1512 = vsel %vm203, %v1491, 0
  %v1515 = vsel %vm203, %v1492, 0
  %v1518 = vsel %vm203, %v1493, 0
  %v1521 = vsel %vm203, %v1494, 0
  %v1524 = vsel %vm203, %v1495, 0
  %1526 = vmatprep.subr.mxu0 0.0
  %1527 = vmatpush1.msra.mxu0 %v1499
  %1528 = vmatprep.subr.mxu0 0.0
  %1529 = vmatpush1.msra.mxu0 %v1500
  %1530 = vmatprep.subr.mxu0 0.0
  %1531 = vmatpush1.msra.mxu0 %v1501
  %1532 = vmatprep.subr.mxu0 0.0
  %1533 = vmatpush1.msra.mxu0 %v1502
  %1534 = vmatprep.subr.mxu0 0.0
  %1535 = vmatpush1.msra.mxu0 0.0
  %1536 = vmatprep.subr.mxu0 0.0
  %1537 = vmatpush1.msra.mxu0 0.0
  %1538 = vmatprep.subr.mxu0 0.0
  %1539 = vmatpush1.msra.mxu0 0.0
  %1540 = vmatprep.subr.mxu0 0.0
  %1541 = vmatpush1.msra.mxu0 0.0
  %1542 = vmatprep.subr.mxu0 0.0
  %1543 = vmatpush1.msra.mxu0 0.0
  %1544 = vmatprep.subr.mxu0 0.0
  %1545 = vmatpush1.msra.mxu0 0.0
  %1546 = vmatprep.subr.mxu0 0.0
  %1547 = vmatpush1.msra.mxu0 0.0
  %1548 = vmatprep.subr.mxu0 0.0
  %1549 = vmatpush1.msra.mxu0 0.0
  %1550 = vmatprep.subr.mxu0 0.0
  %1551 = vmatpush1.msra.mxu0 0.0
  %1552 = vmatprep.subr.mxu0 0.0
  %1553 = vmatpush1.msra.mxu0 0.0
  %1554 = vmatprep.subr.mxu0 0.0
  %1555 = vmatpush1.msra.mxu0 0.0
  %1556 = vmatprep.subr.mxu0 0.0
  %1557 = vmatpush1.msra.mxu0 0.0
  %1558 = vmatprep.subr.mxu0 0.0
  %1559 = vmatpush1.msra.mxu0 0.0
  %1560 = vmatprep.subr.mxu0 0.0
  %1561 = vmatpush1.msra.mxu0 0.0
  %1562 = vmatprep.subr.mxu0 0.0
  %1563 = vmatpush1.msra.mxu0 0.0
  %1564 = vmatprep.subr.mxu0 0.0
  %1565 = vmatpush1.msra.mxu0 0.0
  %1566 = vmatprep.subr.mxu0 0.0
  %1567 = vmatpush1.msra.mxu0 0.0
  %1568 = vmatprep.subr.mxu0 0.0
  %1569 = vmatpush1.msra.mxu0 0.0
  %1570 = vmatprep.subr.mxu0 0.0
  %1571 = vmatpush1.msra.mxu0 0.0
  %1572 = vmatprep.subr.mxu0 0.0
  %1573 = vmatpush1.msra.mxu0 0.0
  %1574 = vmatprep.subr.mxu0 0.0
  %1575 = vmatpush1.msra.mxu0 0.0
  %1576 = vmatprep.subr.mxu0 0.0
  %1577 = vmatpush1.msra.mxu0 0.0
  %1578 = vmatprep.subr.mxu0 0.0
  %1579 = vmatpush1.msra.mxu0 0.0
  %1580 = vmatprep.subr.mxu0 0.0
  %1581 = vmatpush1.msra.mxu0 0.0
  %1582 = vmatprep.subr.mxu0 0.0
  %1583 = vmatpush1.msra.mxu0 0.0
  %1584 = vmatprep.subr.mxu0 0.0
  %1585 = vmatpush1.msra.mxu0 0.0
  %1586 = vmatprep.subr.mxu0 0.0
  %1587 = vmatpush1.msra.mxu0 0.0
  %1588 = vmatprep.subr.mxu0 0.0
  %1589 = vmatpush1.msra.mxu0 0.0
  %1590 = vmatprep.mubr.f32.mxu0 0.0
  %1591 = vmatmul.mubr.f32.gmra.mrb[0].mxu0 %v1512
  %v1592 = vpop.f32.mrb[0].mxu0
  %v1593 = vadd.f32 %v1509, %v1592
  %v1594 = vpop.f32.mrb[0].mxu0
  %1595 = vmatprep.mubr.f32.mxu0 0.0
  %1596 = vmatmul.mubr.f32.gmra.mrb[0].mxu0 %v1515
  %v1597 = vpop.f32.mrb[0].mxu0
  %v1598 = vadd.f32 %v1509, %v1597
  %v1599 = vpop.f32.mrb[0].mxu0
  %1600 = vmatprep.mubr.f32.mxu0 0.0
  %1601 = vmatmul.mubr.f32.gmra.mrb[0].mxu0 %v1518
  %v1602 = vpop.f32.mrb[0].mxu0
  %v1603 = vadd.f32 %v1509, %v1602
  %v1604 = vpop.f32.mrb[0].mxu0
  %1605 = vmatprep.mubr.f32.mxu0 0.0
  %1606 = vmatmul.mubr.f32.gmra.mrb[0].mxu0 %v1521
  %v1607 = vpop.f32.mrb[0].mxu0
  %v1608 = vadd.f32 %v1509, %v1607
  %v1609 = vpop.f32.mrb[0].mxu0
  %1610 = vmatprep.mubr.f32.mxu0 0.0
  %1611 = vmatmul.mubr.f32.gmra.mrb[0].mxu0 %v1524
  %v1612 = vpop.f32.mrb[0].mxu0
  %v1613 = vadd.f32 %v1509, %v1612
  %v1614 = vpop.f32.mrb[0].mxu0
  %1615 = vdwg.mxu0
  %1621 = vrot.lane.b32.xlu0 %v1593, 96
  %v1622 = vpop.permute.xlu0 %1621
  %1623 = vrot.lane.b32.xlu0 %v1598, 96
  %v1624 = vpop.permute.xlu0 %1623
  %1625 = vrot.lane.b32.xlu0 %v1603, 96
  %v1626 = vpop.permute.xlu0 %1625
  %1627 = vrot.lane.b32.xlu0 %v1608, 96
  %v1628 = vpop.permute.xlu0 %1627
  %1629 = vrot.lane.b32.xlu0 %v1613, 96
  %v1630 = vpop.permute.xlu0 %1629
  %v1631 = vsel %vm324, %v1593, 0
  %v1633 = vsel %vm324, %v1598, 0
  %v1635 = vsel %vm324, %v1603, 0
  %v1637 = vsel %vm324, %v1608, 0
  %v1639 = vsel %vm324, %v1613, 0
  %v1641 = vsel %vm324, %v1622, 0
  %v1643 = vsel %vm324, %v1624, 0
  %v1645 = vsel %vm324, %v1626, 0
  %v1647 = vsel %vm324, %v1628, 0
  %v1649 = vsel %vm324, %v1630, 0
  %1651 = vmatprep.subr.mxu0 0.0
  %1652 = vmatpush1.xpose.msra.mxu0 %v1641
  %1653 = vmatprep.subr.mxu0 0.0
  %1654 = vmatpush1.xpose.msra.mxu0 %v1643
  %1655 = vmatprep.subr.mxu0 0.0
  %1656 = vmatpush1.xpose.msra.mxu0 %v1645
  %1657 = vmatprep.subr.mxu0 0.0
  %1658 = vmatpush1.xpose.msra.mxu0 %v1647
  %1659 = vmatprep.subr.mxu0 0.0
  %1660 = vmatpush1.xpose.msra.mxu0 %v1649
  %1661 = vmatprep.subr.mxu0 0.0
  %1662 = vmatpush1.xpose.msra.mxu0 0.0
  %1663 = vmatprep.subr.mxu0 0.0
  %1664 = vmatpush1.xpose.msra.mxu0 0.0
  %1665 = vmatprep.subr.mxu0 0.0
  %1666 = vmatpush1.xpose.msra.mxu0 0.0
  %1667 = vmatprep.subr.mxu0 0.0
  %1668 = vmatpush1.xpose.msra.mxu0 0.0
  %1669 = vmatprep.subr.mxu0 0.0
  %1670 = vmatpush1.xpose.msra.mxu0 0.0
  %1671 = vmatprep.subr.mxu0 0.0
  %1672 = vmatpush1.xpose.msra.mxu0 0.0
  %1673 = vmatprep.subr.mxu0 0.0
  %1674 = vmatpush1.xpose.msra.mxu0 0.0
  %1675 = vmatprep.subr.mxu0 0.0
  %1676 = vmatpush1.xpose.msra.mxu0 0.0
  %1677 = vmatprep.subr.mxu0 0.0
  %1678 = vmatpush1.xpose.msra.mxu0 0.0
  %1679 = vmatprep.subr.mxu0 0.0
  %1680 = vmatpush1.xpose.msra.mxu0 0.0
  %1681 = vmatprep.subr.mxu0 0.0
  %1682 = vmatpush1.xpose.msra.mxu0 0.0
  %1683 = vmatprep.subr.mxu0 0.0
  %1684 = vmatpush1.xpose.msra.mxu0 0.0
  %1685 = vmatprep.subr.mxu0 0.0
  %1686 = vmatpush1.xpose.msra.mxu0 0.0
  %1687 = vmatprep.subr.mxu0 0.0
  %1688 = vmatpush1.xpose.msra.mxu0 0.0
  %1689 = vmatprep.subr.mxu0 0.0
  %1690 = vmatpush1.xpose.msra.mxu0 0.0
  %1691 = vmatprep.subr.mxu0 0.0
  %1692 = vmatpush1.xpose.msra.mxu0 0.0
  %1693 = vmatprep.subr.mxu0 0.0
  %1694 = vmatpush1.xpose.msra.mxu0 0.0
  %1695 = vmatprep.subr.mxu0 0.0
  %1696 = vmatpush1.xpose.msra.mxu0 0.0
  %1697 = vmatprep.subr.mxu0 0.0
  %1698 = vmatpush1.xpose.msra.mxu0 0.0
  %1699 = vmatprep.subr.mxu0 0.0
  %1700 = vmatpush1.xpose.msra.mxu0 0.0
  %1701 = vmatprep.subr.mxu0 0.0
  %1702 = vmatpush1.xpose.msra.mxu0 0.0
  %1703 = vmatprep.subr.mxu0 0.0
  %1704 = vmatpush1.xpose.msra.mxu0 0.0
  %1705 = vmatprep.subr.mxu0 0.0
  %1706 = vmatpush1.xpose.msra.mxu0 0.0
  %1707 = vmatprep.subr.mxu0 0.0
  %1708 = vmatpush1.xpose.msra.mxu0 0.0
  %1709 = vmatprep.subr.mxu0 0.0
  %1710 = vmatpush1.xpose.msra.mxu0 0.0
  %1711 = vmatprep.subr.mxu0 0.0
  %1712 = vmatpush1.xpose.msra.mxu0 0.0
  %1713 = vmatprep.subr.mxu0 0.0
  %1714 = vmatpush1.xpose.msra.mxu0 0.0
  %1715 = vmatprep.mubr.f32.mxu0 0.0
  %1716 = vmatmul.mubr.f32.gmra.mrb[0].mxu0 %v1631
  %v1717 = vpop.f32.mrb[0].mxu0
  %v1718 = vadd.f32 0.0, %v1717
  %v1719 = vpop.f32.mrb[0].mxu0
  %1720 = vmatprep.mubr.f32.mxu0 0.0
  %1721 = vmatmul.mubr.f32.gmra.mrb[0].mxu0 %v1633
  %v1722 = vpop.f32.mrb[0].mxu0
  %v1723 = vadd.f32 0.0, %v1722
  %v1724 = vpop.f32.mrb[0].mxu0
  %1725 = vmatprep.mubr.f32.mxu0 0.0
  %1726 = vmatmul.mubr.f32.gmra.mrb[0].mxu0 %v1635
  %v1727 = vpop.f32.mrb[0].mxu0
  %v1728 = vadd.f32 0.0, %v1727
  %v1729 = vpop.f32.mrb[0].mxu0
  %1730 = vmatprep.mubr.f32.mxu0 0.0
  %1731 = vmatmul.mubr.f32.gmra.mrb[0].mxu0 %v1637
  %v1732 = vpop.f32.mrb[0].mxu0
  %v1733 = vadd.f32 0.0, %v1732
  %v1734 = vpop.f32.mrb[0].mxu0
  %1735 = vmatprep.mubr.f32.mxu0 0.0
  %1736 = vmatmul.mubr.f32.gmra.mrb[0].mxu0 %v1639
  %v1737 = vpop.f32.mrb[0].mxu0
  %v1738 = vadd.f32 0.0, %v1737
  %v1739 = vpop.f32.mrb[0].mxu0
  %1740 = vdwg.mxu0
  %v1741 = vmul.f32 %v1718, 0.25
  %v1742 = vmul.f32 %v1723, 0.25
  %v1743 = vmul.f32 %v1728, 0.25
  %v1744 = vmul.f32 %v1733, 0.25
  %v1745 = vmul.f32 %v1738, 0.25
  %v1746 = vadd.f32 %v1741, %v186
  %v1747 = vadd.f32 %v1742, %v187
  %v1748 = vadd.f32 %v1743, %v188
  %v1749 = vadd.f32 %v1744, %v189
  %v1750 = vadd.f32 %v1745, %v190
  %v1751 = vsel %vm445, %v1746, -inf
  %1752 = vmax.xlane.f32.xlu0 %v1751
  %v1753 = vpop.xlane.xlu0 %1752
  %v1754 = vsel %vm445, %v1747, -inf
  %1755 = vmax.xlane.f32.xlu0 %v1754
  %v1756 = vpop.xlane.xlu0 %1755
  %v1757 = vsel %vm445, %v1748, -inf
  %1758 = vmax.xlane.f32.xlu0 %v1757
  %v1759 = vpop.xlane.xlu0 %1758
  %v1760 = vsel %vm445, %v1749, -inf
  %1761 = vmax.xlane.f32.xlu0 %v1760
  %v1762 = vpop.xlane.xlu0 %1761
  %v1763 = vsel %vm445, %v1750, -inf
  %1764 = vmax.xlane.f32.xlu0 %v1763
  %v1765 = vpop.xlane.xlu0 %1764
  %v1766 = vsub.f32 %v1746, %v1753
  %v1767 = vsub.f32 %v1747, %v1756
  %v1768 = vsub.f32 %v1748, %v1759
  %v1769 = vsub.f32 %v1749, %v1762
  %v1770 = vsub.f32 %v1750, %v1765
  %v1771 = vmul.f32 %v1766, 1.442695
  %v1772 = vpow.pop %v1771
  %v1773 = vmul.f32 %v1767, 1.442695
  %v1774 = vpow.pop %v1773
  %v1775 = vmul.f32 %v1768, 1.442695
  %v1776 = vpow.pop %v1775
  %v1777 = vmul.f32 %v1769, 1.442695
  %v1778 = vpow.pop %v1777
  %v1779 = vmul.f32 %v1770, 1.442695
  %v1780 = vpow.pop %v1779
  %v1781 = vsel %vm445, %v1772, 0.0
  %1782 = vadd.xlane.f32.xlu0 %v1781
  %v1783 = vpop.xlane.xlu0 %1782
  %v1784 = vsel %vm445, %v1774, 0.0
  %1785 = vadd.xlane.f32.xlu0 %v1784
  %v1786 = vpop.xlane.xlu0 %1785
  %v1787 = vsel %vm445, %v1776, 0.0
  %1788 = vadd.xlane.f32.xlu0 %v1787
  %v1789 = vpop.xlane.xlu0 %1788
  %v1790 = vsel %vm445, %v1778, 0.0
  %1791 = vadd.xlane.f32.xlu0 %v1790
  %v1792 = vpop.xlane.xlu0 %1791
  %v1793 = vsel %vm445, %v1780, 0.0
  %1794 = vadd.xlane.f32.xlu0 %v1793
  %v1795 = vpop.xlane.xlu0 %1794
  %v1796 = vrcp.pop %v1783
  %v1797 = vrcp.pop %v1786
  %v1798 = vrcp.pop %v1789
  %v1799 = vrcp.pop %v1792
  %v1800 = vrcp.pop %v1795
  %v1801 = vmul.f32 %v1772, %v1796
  %v1802 = vmul.f32 %v1774, %v1797
  %v1803 = vmul.f32 %v1776, %v1798
  %v1804 = vmul.f32 %v1778, %v1799
  %v1805 = vmul.f32 %v1780, %v1800
  %1806 = vrot.lane.b32.xlu0 %v1593, 64
  %v1807 = vpop.permute.xlu0 %1806
  %1808 = vrot.lane.b32.xlu0 %v1598, 64
  %v1809 = vpop.permute.xlu0 %1808
  %1810 = vrot.lane.b32.xlu0 %v1603, 64
  %v1811 = vpop.permute.xlu0 %1810
  %1812 = vrot.lane.b32.xlu0 %v1608, 64
  %v1813 = vpop.permute.xlu0 %1812
  %1814 = vrot.lane.b32.xlu0 %v1613, 64
  %v1815 = vpop.permute.xlu0 %1814
  %v1822 = vsel %vm445, %v1801, 0
  %v1825 = vsel %vm445, %v1802, 0
  %v1828 = vsel %vm445, %v1803, 0
  %v1831 = vsel %vm445, %v1804, 0
  %v1834 = vsel %vm445, %v1805, 0
  %1836 = vmatprep.subr.mxu0 0.0
  %1837 = vmatpush1.msra.mxu0 %v1807
  %1838 = vmatprep.subr.mxu0 0.0
  %1839 = vmatpush1.msra.mxu0 %v1809
  %1840 = vmatprep.subr.mxu0 0.0
  %1841 = vmatpush1.msra.mxu0 %v1811
  %1842 = vmatprep.subr.mxu0 0.0
  %1843 = vmatpush1.msra.mxu0 %v1813
  %1844 = vmatprep.subr.mxu0 0.0
  %1845 = vmatpush1.msra.mxu0 %v1815
  %1846 = vmatprep.subr.mxu0 0.0
  %1847 = vmatpush1.msra.mxu0 0.0
  %1848 = vmatprep.subr.mxu0 0.0
  %1849 = vmatpush1.msra.mxu0 0.0
  %1850 = vmatprep.subr.mxu0 0.0
  %1851 = vmatpush1.msra.mxu0 0.0
  %1852 = vmatprep.subr.mxu0 0.0
  %1853 = vmatpush1.msra.mxu0 0.0
  %1854 = vmatprep.subr.mxu0 0.0
  %1855 = vmatpush1.msra.mxu0 0.0
  %1856 = vmatprep.subr.mxu0 0.0
  %1857 = vmatpush1.msra.mxu0 0.0
  %1858 = vmatprep.subr.mxu0 0.0
  %1859 = vmatpush1.msra.mxu0 0.0
  %1860 = vmatprep.subr.mxu0 0.0
  %1861 = vmatpush1.msra.mxu0 0.0
  %1862 = vmatprep.subr.mxu0 0.0
  %1863 = vmatpush1.msra.mxu0 0.0
  %1864 = vmatprep.subr.mxu0 0.0
  %1865 = vmatpush1.msra.mxu0 0.0
  %1866 = vmatprep.subr.mxu0 0.0
  %1867 = vmatpush1.msra.mxu0 0.0
  %1868 = vmatprep.subr.mxu0 0.0
  %1869 = vmatpush1.msra.mxu0 0.0
  %1870 = vmatprep.subr.mxu0 0.0
  %1871 = vmatpush1.msra.mxu0 0.0
  %1872 = vmatprep.subr.mxu0 0.0
  %1873 = vmatpush1.msra.mxu0 0.0
  %1874 = vmatprep.subr.mxu0 0.0
  %1875 = vmatpush1.msra.mxu0 0.0
  %1876 = vmatprep.subr.mxu0 0.0
  %1877 = vmatpush1.msra.mxu0 0.0
  %1878 = vmatprep.subr.mxu0 0.0
  %1879 = vmatpush1.msra.mxu0 0.0
  %1880 = vmatprep.subr.mxu0 0.0
  %1881 = vmatpush1.msra.mxu0 0.0
  %1882 = vmatprep.subr.mxu0 0.0
  %1883 = vmatpush1.msra.mxu0 0.0
  %1884 = vmatprep.subr.mxu0 0.0
  %1885 = vmatpush1.msra.mxu0 0.0
  %1886 = vmatprep.subr.mxu0 0.0
  %1887 = vmatpush1.msra.mxu0 0.0
  %1888 = vmatprep.subr.mxu0 0.0
  %1889 = vmatpush1.msra.mxu0 0.0
  %1890 = vmatprep.subr.mxu0 0.0
  %1891 = vmatpush1.msra.mxu0 0.0
  %1892 = vmatprep.subr.mxu0 0.0
  %1893 = vmatpush1.msra.mxu0 0.0
  %1894 = vmatprep.subr.mxu0 0.0
  %1895 = vmatpush1.msra.mxu0 0.0
  %1896 = vmatprep.subr.mxu0 0.0
  %1897 = vmatpush1.msra.mxu0 0.0
  %1898 = vmatprep.subr.mxu0 0.0
  %1899 = vmatpush1.msra.mxu0 0.0
  %1900 = vmatprep.mubr.f32.mxu0 0.0
  %1901 = vmatmul.mubr.f32.gmra.mrb[0].mxu0 %v1822
  %v1902 = vpop.f32.mrb[0].mxu0
  %v1903 = vadd.f32 0.0, %v1902
  %v1904 = vpop.f32.mrb[0].mxu0
  %1905 = vmatprep.mubr.f32.mxu0 0.0
  %1906 = vmatmul.mubr.f32.gmra.mrb[0].mxu0 %v1825
  %v1907 = vpop.f32.mrb[0].mxu0
  %v1908 = vadd.f32 0.0, %v1907
  %v1909 = vpop.f32.mrb[0].mxu0
  %1910 = vmatprep.mubr.f32.mxu0 0.0
  %1911 = vmatmul.mubr.f32.gmra.mrb[0].mxu0 %v1828
  %v1912 = vpop.f32.mrb[0].mxu0
  %v1913 = vadd.f32 0.0, %v1912
  %v1914 = vpop.f32.mrb[0].mxu0
  %1915 = vmatprep.mubr.f32.mxu0 0.0
  %1916 = vmatmul.mubr.f32.gmra.mrb[0].mxu0 %v1831
  %v1917 = vpop.f32.mrb[0].mxu0
  %v1918 = vadd.f32 0.0, %v1917
  %v1919 = vpop.f32.mrb[0].mxu0
  %1920 = vmatprep.mubr.f32.mxu0 0.0
  %1921 = vmatmul.mubr.f32.gmra.mrb[0].mxu0 %v1834
  %v1922 = vpop.f32.mrb[0].mxu0
  %v1923 = vadd.f32 0.0, %v1922
  %v1924 = vpop.f32.mrb[0].mxu0
  %1925 = vdwg.mxu0
  %1926 = vrot.lane.b32.xlu0 %v1593, 112
  %v1927 = vpop.permute.xlu0 %1926
  %1928 = vrot.lane.b32.xlu0 %v1598, 112
  %v1929 = vpop.permute.xlu0 %1928
  %1930 = vrot.lane.b32.xlu0 %v1603, 112
  %v1931 = vpop.permute.xlu0 %1930
  %1932 = vrot.lane.b32.xlu0 %v1608, 112
  %v1933 = vpop.permute.xlu0 %1932
  %1934 = vrot.lane.b32.xlu0 %v1613, 112
  %v1935 = vpop.permute.xlu0 %1934
  %1936 = vrot.lane.b32.xlu0 %v1593, 80
  %v1937 = vpop.permute.xlu0 %1936
  %1938 = vrot.lane.b32.xlu0 %v1598, 80
  %v1939 = vpop.permute.xlu0 %1938
  %1940 = vrot.lane.b32.xlu0 %v1603, 80
  %v1941 = vpop.permute.xlu0 %1940
  %1942 = vrot.lane.b32.xlu0 %v1608, 80
  %v1943 = vpop.permute.xlu0 %1942
  %1944 = vrot.lane.b32.xlu0 %v1613, 80
  %v1945 = vpop.permute.xlu0 %1944
  %v1946 = vsel %vm324, %v1927, 0
  %v1948 = vsel %vm324, %v1929, 0
  %v1950 = vsel %vm324, %v1931, 0
  %v1952 = vsel %vm324, %v1933, 0
  %v1954 = vsel %vm324, %v1935, 0
  %v1956 = vsel %vm324, %v1937, 0
  %v1958 = vsel %vm324, %v1939, 0
  %v1960 = vsel %vm324, %v1941, 0
  %v1962 = vsel %vm324, %v1943, 0
  %v1964 = vsel %vm324, %v1945, 0
  %1966 = vmatprep.subr.mxu0 0.0
  %1967 = vmatpush1.xpose.msra.mxu0 %v1956
  %1968 = vmatprep.subr.mxu0 0.0
  %1969 = vmatpush1.xpose.msra.mxu0 %v1958
  %1970 = vmatprep.subr.mxu0 0.0
  %1971 = vmatpush1.xpose.msra.mxu0 %v1960
  %1972 = vmatprep.subr.mxu0 0.0
  %1973 = vmatpush1.xpose.msra.mxu0 %v1962
  %1974 = vmatprep.subr.mxu0 0.0
  %1975 = vmatpush1.xpose.msra.mxu0 %v1964
  %1976 = vmatprep.subr.mxu0 0.0
  %1977 = vmatpush1.xpose.msra.mxu0 0.0
  %1978 = vmatprep.subr.mxu0 0.0
  %1979 = vmatpush1.xpose.msra.mxu0 0.0
  %1980 = vmatprep.subr.mxu0 0.0
  %1981 = vmatpush1.xpose.msra.mxu0 0.0
  %1982 = vmatprep.subr.mxu0 0.0
  %1983 = vmatpush1.xpose.msra.mxu0 0.0
  %1984 = vmatprep.subr.mxu0 0.0
  %1985 = vmatpush1.xpose.msra.mxu0 0.0
  %1986 = vmatprep.subr.mxu0 0.0
  %1987 = vmatpush1.xpose.msra.mxu0 0.0
  %1988 = vmatprep.subr.mxu0 0.0
  %1989 = vmatpush1.xpose.msra.mxu0 0.0
  %1990 = vmatprep.subr.mxu0 0.0
  %1991 = vmatpush1.xpose.msra.mxu0 0.0
  %1992 = vmatprep.subr.mxu0 0.0
  %1993 = vmatpush1.xpose.msra.mxu0 0.0
  %1994 = vmatprep.subr.mxu0 0.0
  %1995 = vmatpush1.xpose.msra.mxu0 0.0
  %1996 = vmatprep.subr.mxu0 0.0
  %1997 = vmatpush1.xpose.msra.mxu0 0.0
  %1998 = vmatprep.subr.mxu0 0.0
  %1999 = vmatpush1.xpose.msra.mxu0 0.0
  %2000 = vmatprep.subr.mxu0 0.0
  %2001 = vmatpush1.xpose.msra.mxu0 0.0
  %2002 = vmatprep.subr.mxu0 0.0
  %2003 = vmatpush1.xpose.msra.mxu0 0.0
  %2004 = vmatprep.subr.mxu0 0.0
  %2005 = vmatpush1.xpose.msra.mxu0 0.0
  %2006 = vmatprep.subr.mxu0 0.0
  %2007 = vmatpush1.xpose.msra.mxu0 0.0
  %2008 = vmatprep.subr.mxu0 0.0
  %2009 = vmatpush1.xpose.msra.mxu0 0.0
  %2010 = vmatprep.subr.mxu0 0.0
  %2011 = vmatpush1.xpose.msra.mxu0 0.0
  %2012 = vmatprep.subr.mxu0 0.0
  %2013 = vmatpush1.xpose.msra.mxu0 0.0
  %2014 = vmatprep.subr.mxu0 0.0
  %2015 = vmatpush1.xpose.msra.mxu0 0.0
  %2016 = vmatprep.subr.mxu0 0.0
  %2017 = vmatpush1.xpose.msra.mxu0 0.0
  %2018 = vmatprep.subr.mxu0 0.0
  %2019 = vmatpush1.xpose.msra.mxu0 0.0
  %2020 = vmatprep.subr.mxu0 0.0
  %2021 = vmatpush1.xpose.msra.mxu0 0.0
  %2022 = vmatprep.subr.mxu0 0.0
  %2023 = vmatpush1.xpose.msra.mxu0 0.0
  %2024 = vmatprep.subr.mxu0 0.0
  %2025 = vmatpush1.xpose.msra.mxu0 0.0
  %2026 = vmatprep.subr.mxu0 0.0
  %2027 = vmatpush1.xpose.msra.mxu0 0.0
  %2028 = vmatprep.subr.mxu0 0.0
  %2029 = vmatpush1.xpose.msra.mxu0 0.0
  %2030 = vmatprep.mubr.f32.mxu0 0.0
  %2031 = vmatmul.mubr.f32.gmra.mrb[0].mxu0 %v1946
  %v2032 = vpop.f32.mrb[0].mxu0
  %v2033 = vadd.f32 0.0, %v2032
  %v2034 = vpop.f32.mrb[0].mxu0
  %2035 = vmatprep.mubr.f32.mxu0 0.0
  %2036 = vmatmul.mubr.f32.gmra.mrb[0].mxu0 %v1948
  %v2037 = vpop.f32.mrb[0].mxu0
  %v2038 = vadd.f32 0.0, %v2037
  %v2039 = vpop.f32.mrb[0].mxu0
  %2040 = vmatprep.mubr.f32.mxu0 0.0
  %2041 = vmatmul.mubr.f32.gmra.mrb[0].mxu0 %v1950
  %v2042 = vpop.f32.mrb[0].mxu0
  %v2043 = vadd.f32 0.0, %v2042
  %v2044 = vpop.f32.mrb[0].mxu0
  %2045 = vmatprep.mubr.f32.mxu0 0.0
  %2046 = vmatmul.mubr.f32.gmra.mrb[0].mxu0 %v1952
  %v2047 = vpop.f32.mrb[0].mxu0
  %v2048 = vadd.f32 0.0, %v2047
  %v2049 = vpop.f32.mrb[0].mxu0
  %2050 = vmatprep.mubr.f32.mxu0 0.0
  %2051 = vmatmul.mubr.f32.gmra.mrb[0].mxu0 %v1954
  %v2052 = vpop.f32.mrb[0].mxu0
  %v2053 = vadd.f32 0.0, %v2052
  %v2054 = vpop.f32.mrb[0].mxu0
  %2055 = vdwg.mxu0
  %v2056 = vmul.f32 %v2033, 0.25
  %v2057 = vmul.f32 %v2038, 0.25
  %v2058 = vmul.f32 %v2043, 0.25
  %v2059 = vmul.f32 %v2048, 0.25
  %v2060 = vmul.f32 %v2053, 0.25
  %v2061 = vadd.f32 %v2056, %v186
  %v2062 = vadd.f32 %v2057, %v187
  %v2063 = vadd.f32 %v2058, %v188
  %v2064 = vadd.f32 %v2059, %v189
  %v2065 = vadd.f32 %v2060, %v190
  %v2066 = vsel %vm445, %v2061, -inf
  %2067 = vmax.xlane.f32.xlu0 %v2066
  %v2068 = vpop.xlane.xlu0 %2067
  %v2069 = vsel %vm445, %v2062, -inf
  %2070 = vmax.xlane.f32.xlu0 %v2069
  %v2071 = vpop.xlane.xlu0 %2070
  %v2072 = vsel %vm445, %v2063, -inf
  %2073 = vmax.xlane.f32.xlu0 %v2072
  %v2074 = vpop.xlane.xlu0 %2073
  %v2075 = vsel %vm445, %v2064, -inf
  %2076 = vmax.xlane.f32.xlu0 %v2075
  %v2077 = vpop.xlane.xlu0 %2076
  %v2078 = vsel %vm445, %v2065, -inf
  %2079 = vmax.xlane.f32.xlu0 %v2078
  %v2080 = vpop.xlane.xlu0 %2079
  %v2081 = vsub.f32 %v2061, %v2068
  %v2082 = vsub.f32 %v2062, %v2071
  %v2083 = vsub.f32 %v2063, %v2074
  %v2084 = vsub.f32 %v2064, %v2077
  %v2085 = vsub.f32 %v2065, %v2080
  %v2086 = vmul.f32 %v2081, 1.442695
  %v2087 = vpow.pop %v2086
  %v2088 = vmul.f32 %v2082, 1.442695
  %v2089 = vpow.pop %v2088
  %v2090 = vmul.f32 %v2083, 1.442695
  %v2091 = vpow.pop %v2090
  %v2092 = vmul.f32 %v2084, 1.442695
  %v2093 = vpow.pop %v2092
  %v2094 = vmul.f32 %v2085, 1.442695
  %v2095 = vpow.pop %v2094
  %v2096 = vsel %vm445, %v2087, 0.0
  %2097 = vadd.xlane.f32.xlu0 %v2096
  %v2098 = vpop.xlane.xlu0 %2097
  %v2099 = vsel %vm445, %v2089, 0.0
  %2100 = vadd.xlane.f32.xlu0 %v2099
  %v2101 = vpop.xlane.xlu0 %2100
  %v2102 = vsel %vm445, %v2091, 0.0
  %2103 = vadd.xlane.f32.xlu0 %v2102
  %v2104 = vpop.xlane.xlu0 %2103
  %v2105 = vsel %vm445, %v2093, 0.0
  %2106 = vadd.xlane.f32.xlu0 %v2105
  %v2107 = vpop.xlane.xlu0 %2106
  %v2108 = vsel %vm445, %v2095, 0.0
  %2109 = vadd.xlane.f32.xlu0 %v2108
  %v2110 = vpop.xlane.xlu0 %2109
  %v2111 = vrcp.pop %v2098
  %v2112 = vrcp.pop %v2101
  %v2113 = vrcp.pop %v2104
  %v2114 = vrcp.pop %v2107
  %v2115 = vrcp.pop %v2110
  %v2116 = vmul.f32 %v2087, %v2111
  %v2117 = vmul.f32 %v2089, %v2112
  %v2118 = vmul.f32 %v2091, %v2113
  %v2119 = vmul.f32 %v2093, %v2114
  %v2120 = vmul.f32 %v2095, %v2115
  %2121 = vrot.lane.b32.xlu0 %v1593, 48
  %v2122 = vpop.permute.xlu0 %2121
  %2123 = vrot.lane.b32.xlu0 %v1598, 48
  %v2124 = vpop.permute.xlu0 %2123
  %2125 = vrot.lane.b32.xlu0 %v1603, 48
  %v2126 = vpop.permute.xlu0 %2125
  %2127 = vrot.lane.b32.xlu0 %v1608, 48
  %v2128 = vpop.permute.xlu0 %2127
  %2129 = vrot.lane.b32.xlu0 %v1613, 48
  %v2130 = vpop.permute.xlu0 %2129
  %v2137 = vsel %vm445, %v2116, 0
  %v2140 = vsel %vm445, %v2117, 0
  %v2143 = vsel %vm445, %v2118, 0
  %v2146 = vsel %vm445, %v2119, 0
  %v2149 = vsel %vm445, %v2120, 0
  %2151 = vmatprep.subr.mxu0 0.0
  %2152 = vmatpush1.msra.mxu0 %v2122
  %2153 = vmatprep.subr.mxu0 0.0
  %2154 = vmatpush1.msra.mxu0 %v2124
  %2155 = vmatprep.subr.mxu0 0.0
  %2156 = vmatpush1.msra.mxu0 %v2126
  %2157 = vmatprep.subr.mxu0 0.0
  %2158 = vmatpush1.msra.mxu0 %v2128
  %2159 = vmatprep.subr.mxu0 0.0
  %2160 = vmatpush1.msra.mxu0 %v2130
  %2161 = vmatprep.subr.mxu0 0.0
  %2162 = vmatpush1.msra.mxu0 0.0
  %2163 = vmatprep.subr.mxu0 0.0
  %2164 = vmatpush1.msra.mxu0 0.0
  %2165 = vmatprep.subr.mxu0 0.0
  %2166 = vmatpush1.msra.mxu0 0.0
  %2167 = vmatprep.subr.mxu0 0.0
  %2168 = vmatpush1.msra.mxu0 0.0
  %2169 = vmatprep.subr.mxu0 0.0
  %2170 = vmatpush1.msra.mxu0 0.0
  %2171 = vmatprep.subr.mxu0 0.0
  %2172 = vmatpush1.msra.mxu0 0.0
  %2173 = vmatprep.subr.mxu0 0.0
  %2174 = vmatpush1.msra.mxu0 0.0
  %2175 = vmatprep.subr.mxu0 0.0
  %2176 = vmatpush1.msra.mxu0 0.0
  %2177 = vmatprep.subr.mxu0 0.0
  %2178 = vmatpush1.msra.mxu0 0.0
  %2179 = vmatprep.subr.mxu0 0.0
  %2180 = vmatpush1.msra.mxu0 0.0
  %2181 = vmatprep.subr.mxu0 0.0
  %2182 = vmatpush1.msra.mxu0 0.0
  %2183 = vmatprep.subr.mxu0 0.0
  %2184 = vmatpush1.msra.mxu0 0.0
  %2185 = vmatprep.subr.mxu0 0.0
  %2186 = vmatpush1.msra.mxu0 0.0
  %2187 = vmatprep.subr.mxu0 0.0
  %2188 = vmatpush1.msra.mxu0 0.0
  %2189 = vmatprep.subr.mxu0 0.0
  %2190 = vmatpush1.msra.mxu0 0.0
  %2191 = vmatprep.subr.mxu0 0.0
  %2192 = vmatpush1.msra.mxu0 0.0
  %2193 = vmatprep.subr.mxu0 0.0
  %2194 = vmatpush1.msra.mxu0 0.0
  %2195 = vmatprep.subr.mxu0 0.0
  %2196 = vmatpush1.msra.mxu0 0.0
  %2197 = vmatprep.subr.mxu0 0.0
  %2198 = vmatpush1.msra.mxu0 0.0
  %2199 = vmatprep.subr.mxu0 0.0
  %2200 = vmatpush1.msra.mxu0 0.0
  %2201 = vmatprep.subr.mxu0 0.0
  %2202 = vmatpush1.msra.mxu0 0.0
  %2203 = vmatprep.subr.mxu0 0.0
  %2204 = vmatpush1.msra.mxu0 0.0
  %2205 = vmatprep.subr.mxu0 0.0
  %2206 = vmatpush1.msra.mxu0 0.0
  %2207 = vmatprep.subr.mxu0 0.0
  %2208 = vmatpush1.msra.mxu0 0.0
  %2209 = vmatprep.subr.mxu0 0.0
  %2210 = vmatpush1.msra.mxu0 0.0
  %2211 = vmatprep.subr.mxu0 0.0
  %2212 = vmatpush1.msra.mxu0 0.0
  %2213 = vmatprep.subr.mxu0 0.0
  %2214 = vmatpush1.msra.mxu0 0.0
  %2215 = vmatprep.mubr.f32.mxu0 0.0
  %2216 = vmatmul.mubr.f32.gmra.mrb[0].mxu0 %v2137
  %v2217 = vpop.f32.mrb[0].mxu0
  %v2218 = vadd.f32 0.0, %v2217
  %v2219 = vpop.f32.mrb[0].mxu0
  %2220 = vmatprep.mubr.f32.mxu0 0.0
  %2221 = vmatmul.mubr.f32.gmra.mrb[0].mxu0 %v2140
  %v2222 = vpop.f32.mrb[0].mxu0
  %v2223 = vadd.f32 0.0, %v2222
  %v2224 = vpop.f32.mrb[0].mxu0
  %2225 = vmatprep.mubr.f32.mxu0 0.0
  %2226 = vmatmul.mubr.f32.gmra.mrb[0].mxu0 %v2143
  %v2227 = vpop.f32.mrb[0].mxu0
  %v2228 = vadd.f32 0.0, %v2227
  %v2229 = vpop.f32.mrb[0].mxu0
  %2230 = vmatprep.mubr.f32.mxu0 0.0
  %2231 = vmatmul.mubr.f32.gmra.mrb[0].mxu0 %v2146
  %v2232 = vpop.f32.mrb[0].mxu0
  %v2233 = vadd.f32 0.0, %v2232
  %v2234 = vpop.f32.mrb[0].mxu0
  %2235 = vmatprep.mubr.f32.mxu0 0.0
  %2236 = vmatmul.mubr.f32.gmra.mrb[0].mxu0 %v2149
  %v2237 = vpop.f32.mrb[0].mxu0
  %v2238 = vadd.f32 0.0, %v2237
  %v2239 = vpop.f32.mrb[0].mxu0
  %2240 = vdwg.mxu0
  %2246 = vrot.lane.b32.xlu0 %v2218, 16
  %v2247 = vpop.permute.xlu0 %2246
  %2248 = vrot.lane.b32.xlu0 %v2223, 16
  %v2249 = vpop.permute.xlu0 %2248
  %2250 = vrot.lane.b32.xlu0 %v2228, 16
  %v2251 = vpop.permute.xlu0 %2250
  %2252 = vrot.lane.b32.xlu0 %v2233, 16
  %v2253 = vpop.permute.xlu0 %2252
  %2254 = vrot.lane.b32.xlu0 %v2238, 16
  %v2255 = vpop.permute.xlu0 %2254
  %v2261 = vsel %vm324, %v1903, %v2247
  %v2262 = vsel %vm324, %v1908, %v2249
  %v2263 = vsel %vm324, %v1913, %v2251
  %v2264 = vsel %vm324, %v1918, %v2253
  %v2265 = vsel %vm324, %v1923, %v2255
  %s2266 = scalar_lea.vmem %s7, 32
  %v2267 = vld [vmem:[%s2266] sm:$0xff]
  %v2268 = vld [vmem:[%s2266 + $0x8] sm:$0xff]
  %v2269 = vld [vmem:[%s2266 + $0x10] sm:$0xff]
  %v2270 = vld [vmem:[%s2266 + $0x18] sm:$0xff]
  %s2271 = scalar_lea.vmem %s8, 1
  %v2272 = vld [vmem:[%s2271] sm:$0x1]
  %v2274 = vlaneseq
  %v2275 = vshrl.u32 %v2274, 7
  %v2276 = vsub.s32 0, %v2275
  %v2277 = vrot.slane %v2272, %v2276
  %v2280 = vsel %vm203, %v2261, 0
  %v2283 = vsel %vm203, %v2262, 0
  %v2286 = vsel %vm203, %v2263, 0
  %v2289 = vsel %vm203, %v2264, 0
  %v2292 = vsel %vm203, %v2265, 0
  %2294 = vmatprep.subr.mxu0 0.0
  %2295 = vmatpush1.msra.mxu0 %v2267
  %2296 = vmatprep.subr.mxu0 0.0
  %2297 = vmatpush1.msra.mxu0 %v2268
  %2298 = vmatprep.subr.mxu0 0.0
  %2299 = vmatpush1.msra.mxu0 %v2269
  %2300 = vmatprep.subr.mxu0 0.0
  %2301 = vmatpush1.msra.mxu0 %v2270
  %2302 = vmatprep.subr.mxu0 0.0
  %2303 = vmatpush1.msra.mxu0 0.0
  %2304 = vmatprep.subr.mxu0 0.0
  %2305 = vmatpush1.msra.mxu0 0.0
  %2306 = vmatprep.subr.mxu0 0.0
  %2307 = vmatpush1.msra.mxu0 0.0
  %2308 = vmatprep.subr.mxu0 0.0
  %2309 = vmatpush1.msra.mxu0 0.0
  %2310 = vmatprep.subr.mxu0 0.0
  %2311 = vmatpush1.msra.mxu0 0.0
  %2312 = vmatprep.subr.mxu0 0.0
  %2313 = vmatpush1.msra.mxu0 0.0
  %2314 = vmatprep.subr.mxu0 0.0
  %2315 = vmatpush1.msra.mxu0 0.0
  %2316 = vmatprep.subr.mxu0 0.0
  %2317 = vmatpush1.msra.mxu0 0.0
  %2318 = vmatprep.subr.mxu0 0.0
  %2319 = vmatpush1.msra.mxu0 0.0
  %2320 = vmatprep.subr.mxu0 0.0
  %2321 = vmatpush1.msra.mxu0 0.0
  %2322 = vmatprep.subr.mxu0 0.0
  %2323 = vmatpush1.msra.mxu0 0.0
  %2324 = vmatprep.subr.mxu0 0.0
  %2325 = vmatpush1.msra.mxu0 0.0
  %2326 = vmatprep.subr.mxu0 0.0
  %2327 = vmatpush1.msra.mxu0 0.0
  %2328 = vmatprep.subr.mxu0 0.0
  %2329 = vmatpush1.msra.mxu0 0.0
  %2330 = vmatprep.subr.mxu0 0.0
  %2331 = vmatpush1.msra.mxu0 0.0
  %2332 = vmatprep.subr.mxu0 0.0
  %2333 = vmatpush1.msra.mxu0 0.0
  %2334 = vmatprep.subr.mxu0 0.0
  %2335 = vmatpush1.msra.mxu0 0.0
  %2336 = vmatprep.subr.mxu0 0.0
  %2337 = vmatpush1.msra.mxu0 0.0
  %2338 = vmatprep.subr.mxu0 0.0
  %2339 = vmatpush1.msra.mxu0 0.0
  %2340 = vmatprep.subr.mxu0 0.0
  %2341 = vmatpush1.msra.mxu0 0.0
  %2342 = vmatprep.subr.mxu0 0.0
  %2343 = vmatpush1.msra.mxu0 0.0
  %2344 = vmatprep.subr.mxu0 0.0
  %2345 = vmatpush1.msra.mxu0 0.0
  %2346 = vmatprep.subr.mxu0 0.0
  %2347 = vmatpush1.msra.mxu0 0.0
  %2348 = vmatprep.subr.mxu0 0.0
  %2349 = vmatpush1.msra.mxu0 0.0
  %2350 = vmatprep.subr.mxu0 0.0
  %2351 = vmatpush1.msra.mxu0 0.0
  %2352 = vmatprep.subr.mxu0 0.0
  %2353 = vmatpush1.msra.mxu0 0.0
  %2354 = vmatprep.subr.mxu0 0.0
  %2355 = vmatpush1.msra.mxu0 0.0
  %2356 = vmatprep.subr.mxu0 0.0
  %2357 = vmatpush1.msra.mxu0 0.0
  %2358 = vmatprep.mubr.f32.mxu0 0.0
  %2359 = vmatmul.mubr.f32.gmra.mrb[0].mxu0 %v2280
  %v2360 = vpop.f32.mrb[0].mxu0
  %v2361 = vadd.f32 %v2277, %v2360
  %v2362 = vpop.f32.mrb[0].mxu0
  %2363 = vmatprep.mubr.f32.mxu0 0.0
  %2364 = vmatmul.mubr.f32.gmra.mrb[0].mxu0 %v2283
  %v2365 = vpop.f32.mrb[0].mxu0
  %v2366 = vadd.f32 %v2277, %v2365
  %v2367 = vpop.f32.mrb[0].mxu0
  %2368 = vmatprep.mubr.f32.mxu0 0.0
  %2369 = vmatmul.mubr.f32.gmra.mrb[0].mxu0 %v2286
  %v2370 = vpop.f32.mrb[0].mxu0
  %v2371 = vadd.f32 %v2277, %v2370
  %v2372 = vpop.f32.mrb[0].mxu0
  %2373 = vmatprep.mubr.f32.mxu0 0.0
  %2374 = vmatmul.mubr.f32.gmra.mrb[0].mxu0 %v2289
  %v2375 = vpop.f32.mrb[0].mxu0
  %v2376 = vadd.f32 %v2277, %v2375
  %v2377 = vpop.f32.mrb[0].mxu0
  %2378 = vmatprep.mubr.f32.mxu0 0.0
  %2379 = vmatmul.mubr.f32.gmra.mrb[0].mxu0 %v2292
  %v2380 = vpop.f32.mrb[0].mxu0
  %v2381 = vadd.f32 %v2277, %v2380
  %v2382 = vpop.f32.mrb[0].mxu0
  %2383 = vdwg.mxu0
  %v2384 = vadd.f32 %v1491, %v2361
  %v2385 = vadd.f32 %v1492, %v2366
  %v2386 = vadd.f32 %v1493, %v2371
  %v2387 = vadd.f32 %v1494, %v2376
  %v2388 = vadd.f32 %v1495, %v2381
  %v2389 = vsel %vm203, %v2384, 0.0
  %2390 = vadd.xlane.f32.xlu0 %v2389
  %v2391 = vpop.xlane.xlu0 %2390
  %v2392 = vsel %vm203, %v2385, 0.0
  %2393 = vadd.xlane.f32.xlu0 %v2392
  %v2394 = vpop.xlane.xlu0 %2393
  %v2395 = vsel %vm203, %v2386, 0.0
  %2396 = vadd.xlane.f32.xlu0 %v2395
  %v2397 = vpop.xlane.xlu0 %2396
  %v2398 = vsel %vm203, %v2387, 0.0
  %2399 = vadd.xlane.f32.xlu0 %v2398
  %v2400 = vpop.xlane.xlu0 %2399
  %v2401 = vsel %vm203, %v2388, 0.0
  %2402 = vadd.xlane.f32.xlu0 %v2401
  %v2403 = vpop.xlane.xlu0 %2402
  %v2404 = vmul.f32 %v2391, %v1097
  %v2405 = vmul.f32 %v2394, %v1097
  %v2406 = vmul.f32 %v2397, %v1097
  %v2407 = vmul.f32 %v2400, %v1097
  %v2408 = vmul.f32 %v2403, %v1097
  %v2409 = vsub.f32 %v2384, %v2404
  %v2410 = vsub.f32 %v2385, %v2405
  %v2411 = vsub.f32 %v2386, %v2406
  %v2412 = vsub.f32 %v2387, %v2407
  %v2413 = vsub.f32 %v2388, %v2408
  %v2414 = vmul.f32 %v2409, %v2409
  %v2415 = vmul.f32 %v2410, %v2410
  %v2416 = vmul.f32 %v2411, %v2411
  %v2417 = vmul.f32 %v2412, %v2412
  %v2418 = vmul.f32 %v2413, %v2413
  %v2419 = vsel %vm203, %v2414, 0.0
  %2420 = vadd.xlane.f32.xlu0 %v2419
  %v2421 = vpop.xlane.xlu0 %2420
  %v2422 = vsel %vm203, %v2415, 0.0
  %2423 = vadd.xlane.f32.xlu0 %v2422
  %v2424 = vpop.xlane.xlu0 %2423
  %v2425 = vsel %vm203, %v2416, 0.0
  %2426 = vadd.xlane.f32.xlu0 %v2425
  %v2427 = vpop.xlane.xlu0 %2426
  %v2428 = vsel %vm203, %v2417, 0.0
  %2429 = vadd.xlane.f32.xlu0 %v2428
  %v2430 = vpop.xlane.xlu0 %2429
  %v2431 = vsel %vm203, %v2418, 0.0
  %2432 = vadd.xlane.f32.xlu0 %v2431
  %v2433 = vpop.xlane.xlu0 %2432
  %v2434 = vmul.f32 %v2421, %v1097
  %v2435 = vmul.f32 %v2424, %v1097
  %v2436 = vmul.f32 %v2427, %v1097
  %v2437 = vmul.f32 %v2430, %v1097
  %v2438 = vmul.f32 %v2433, %v1097
  %v2439 = vadd.f32 %v2434, 1e-05
  %v2440 = vadd.f32 %v2435, 1e-05
  %v2441 = vadd.f32 %v2436, 1e-05
  %v2442 = vadd.f32 %v2437, 1e-05
  %v2443 = vadd.f32 %v2438, 1e-05
  %v2444 = vrsqrt.pop %v2439
  %v2445 = vrsqrt.pop %v2440
  %v2446 = vrsqrt.pop %v2441
  %v2447 = vrsqrt.pop %v2442
  %v2448 = vrsqrt.pop %v2443
  %v2449 = vmul.f32 %v2409, %v2444
  %v2450 = vmul.f32 %v2410, %v2445
  %v2451 = vmul.f32 %v2411, %v2446
  %v2452 = vmul.f32 %v2412, %v2447
  %v2453 = vmul.f32 %v2413, %v2448
  %v2454 = vlaneseq
  %v2455 = vshrl.u32 %v2454, 7
  %v2456 = vsub.s32 0, %v2455
  %v2457 = vrot.slane %v1497, %v2456
  %v2458 = vmul.f32 %v2449, %v2457
  %v2459 = vmul.f32 %v2450, %v2457
  %v2460 = vmul.f32 %v2451, %v2457
  %v2461 = vmul.f32 %v2452, %v2457
  %v2462 = vmul.f32 %v2453, %v2457
  %v2463 = vlaneseq
  %v2464 = vshrl.u32 %v2463, 7
  %v2465 = vsub.s32 1, %v2464
  %v2466 = vrot.slane %v1497, %v2465
  %v2467 = vadd.f32 %v2458, %v2466
  %v2468 = vadd.f32 %v2459, %v2466
  %v2469 = vadd.f32 %v2460, %v2466
  %v2470 = vadd.f32 %v2461, %v2466
  %v2471 = vadd.f32 %v2462, %v2466
  %s2472 = scalar_lea.vmem %s9, 32
  %v2473 = vld [vmem:[%s2472] sm:$0xff]
  %v2474 = vld [vmem:[%s2472 + $0x8] sm:$0xff]
  %v2475 = vld [vmem:[%s2472 + $0x10] sm:$0xff]
  %v2476 = vld [vmem:[%s2472 + $0x18] sm:$0xff]
  %s2477 = scalar_lea.vmem %s10, 1
  %v2478 = vld [vmem:[%s2477] sm:$0x1]
  %v2480 = vlaneseq
  %v2481 = vshrl.u32 %v2480, 7
  %v2482 = vsub.s32 0, %v2481
  %v2483 = vrot.slane %v2478, %v2482
  %v2486 = vsel %vm203, %v2467, 0
  %v2489 = vsel %vm203, %v2468, 0
  %v2492 = vsel %vm203, %v2469, 0
  %v2495 = vsel %vm203, %v2470, 0
  %v2498 = vsel %vm203, %v2471, 0
  %2500 = vmatprep.subr.mxu0 0.0
  %2501 = vmatpush1.msra.mxu0 %v2473
  %2502 = vmatprep.subr.mxu0 0.0
  %2503 = vmatpush1.msra.mxu0 %v2474
  %2504 = vmatprep.subr.mxu0 0.0
  %2505 = vmatpush1.msra.mxu0 %v2475
  %2506 = vmatprep.subr.mxu0 0.0
  %2507 = vmatpush1.msra.mxu0 %v2476
  %2508 = vmatprep.subr.mxu0 0.0
  %2509 = vmatpush1.msra.mxu0 0.0
  %2510 = vmatprep.subr.mxu0 0.0
  %2511 = vmatpush1.msra.mxu0 0.0
  %2512 = vmatprep.subr.mxu0 0.0
  %2513 = vmatpush1.msra.mxu0 0.0
  %2514 = vmatprep.subr.mxu0 0.0
  %2515 = vmatpush1.msra.mxu0 0.0
  %2516 = vmatprep.subr.mxu0 0.0
  %2517 = vmatpush1.msra.mxu0 0.0
  %2518 = vmatprep.subr.mxu0 0.0
  %2519 = vmatpush1.msra.mxu0 0.0
  %2520 = vmatprep.subr.mxu0 0.0
  %2521 = vmatpush1.msra.mxu0 0.0
  %2522 = vmatprep.subr.mxu0 0.0
  %2523 = vmatpush1.msra.mxu0 0.0
  %2524 = vmatprep.subr.mxu0 0.0
  %2525 = vmatpush1.msra.mxu0 0.0
  %2526 = vmatprep.subr.mxu0 0.0
  %2527 = vmatpush1.msra.mxu0 0.0
  %2528 = vmatprep.subr.mxu0 0.0
  %2529 = vmatpush1.msra.mxu0 0.0
  %2530 = vmatprep.subr.mxu0 0.0
  %2531 = vmatpush1.msra.mxu0 0.0
  %2532 = vmatprep.subr.mxu0 0.0
  %2533 = vmatpush1.msra.mxu0 0.0
  %2534 = vmatprep.subr.mxu0 0.0
  %2535 = vmatpush1.msra.mxu0 0.0
  %2536 = vmatprep.subr.mxu0 0.0
  %2537 = vmatpush1.msra.mxu0 0.0
  %2538 = vmatprep.subr.mxu0 0.0
  %2539 = vmatpush1.msra.mxu0 0.0
  %2540 = vmatprep.subr.mxu0 0.0
  %2541 = vmatpush1.msra.mxu0 0.0
  %2542 = vmatprep.subr.mxu0 0.0
  %2543 = vmatpush1.msra.mxu0 0.0
  %2544 = vmatprep.subr.mxu0 0.0
  %2545 = vmatpush1.msra.mxu0 0.0
  %2546 = vmatprep.subr.mxu0 0.0
  %2547 = vmatpush1.msra.mxu0 0.0
  %2548 = vmatprep.subr.mxu0 0.0
  %2549 = vmatpush1.msra.mxu0 0.0
  %2550 = vmatprep.subr.mxu0 0.0
  %2551 = vmatpush1.msra.mxu0 0.0
  %2552 = vmatprep.subr.mxu0 0.0
  %2553 = vmatpush1.msra.mxu0 0.0
  %2554 = vmatprep.subr.mxu0 0.0
  %2555 = vmatpush1.msra.mxu0 0.0
  %2556 = vmatprep.subr.mxu0 0.0
  %2557 = vmatpush1.msra.mxu0 0.0
  %2558 = vmatprep.subr.mxu0 0.0
  %2559 = vmatpush1.msra.mxu0 0.0
  %2560 = vmatprep.subr.mxu0 0.0
  %2561 = vmatpush1.msra.mxu0 0.0
  %2562 = vmatprep.subr.mxu0 0.0
  %2563 = vmatpush1.msra.mxu0 0.0
  %2564 = vmatprep.mubr.f32.mxu0 0.0
  %2565 = vmatmul.mubr.f32.gmra.mrb[0].mxu0 %v2486
  %v2566 = vpop.f32.mrb[0].mxu0
  %v2567 = vadd.f32 %v2483, %v2566
  %v2568 = vpop.f32.mrb[0].mxu0
  %2569 = vmatprep.mubr.f32.mxu0 0.0
  %2570 = vmatmul.mubr.f32.gmra.mrb[0].mxu0 %v2489
  %v2571 = vpop.f32.mrb[0].mxu0
  %v2572 = vadd.f32 %v2483, %v2571
  %v2573 = vpop.f32.mrb[0].mxu0
  %2574 = vmatprep.mubr.f32.mxu0 0.0
  %2575 = vmatmul.mubr.f32.gmra.mrb[0].mxu0 %v2492
  %v2576 = vpop.f32.mrb[0].mxu0
  %v2577 = vadd.f32 %v2483, %v2576
  %v2578 = vpop.f32.mrb[0].mxu0
  %2579 = vmatprep.mubr.f32.mxu0 0.0
  %2580 = vmatmul.mubr.f32.gmra.mrb[0].mxu0 %v2495
  %v2581 = vpop.f32.mrb[0].mxu0
  %v2582 = vadd.f32 %v2483, %v2581
  %v2583 = vpop.f32.mrb[0].mxu0
  %2584 = vmatprep.mubr.f32.mxu0 0.0
  %2585 = vmatmul.mubr.f32.gmra.mrb[0].mxu0 %v2498
  %v2586 = vpop.f32.mrb[0].mxu0
  %v2587 = vadd.f32 %v2483, %v2586
  %v2588 = vpop.f32.mrb[0].mxu0
  %2589 = vdwg.mxu0
  %v2590 = vmax.f32 %v2567, 0.0
  %v2591 = vmax.f32 %v2572, 0.0
  %v2592 = vmax.f32 %v2577, 0.0
  %v2593 = vmax.f32 %v2582, 0.0
  %v2594 = vmax.f32 %v2587, 0.0
  %s2595 = scalar_lea.vmem %s11, 64
  %v2596 = vld [vmem:[%s2595] sm:$0xff]
  %v2597 = vld [vmem:[%s2595 + $0x8] sm:$0xff]
  %v2598 = vld [vmem:[%s2595 + $0x10] sm:$0xff]
  %v2599 = vld [vmem:[%s2595 + $0x18] sm:$0xff]
  %v2600 = vld [vmem:[%s2595 + $0x20] sm:$0xff]
  %v2601 = vld [vmem:[%s2595 + $0x28] sm:$0xff]
  %v2602 = vld [vmem:[%s2595 + $0x30] sm:$0xff]
  %v2603 = vld [vmem:[%s2595 + $0x38] sm:$0xff]
  %s2604 = scalar_lea.vmem %s12, 1
  %v2605 = vld [vmem:[%s2604] sm:$0x1]
  %v2607 = vlaneseq
  %v2608 = vshrl.u32 %v2607, 7
  %v2609 = vsub.s32 0, %v2608
  %v2610 = vrot.slane %v2605, %v2609
  %v2613 = vsel %vm1302, %v2590, 0
  %v2616 = vsel %vm1302, %v2591, 0
  %v2619 = vsel %vm1302, %v2592, 0
  %v2622 = vsel %vm1302, %v2593, 0
  %v2625 = vsel %vm1302, %v2594, 0
  %2627 = vmatprep.subr.mxu0 0.0
  %2628 = vmatpush1.msra.mxu0 %v2596
  %2629 = vmatprep.subr.mxu0 0.0
  %2630 = vmatpush1.msra.mxu0 %v2597
  %2631 = vmatprep.subr.mxu0 0.0
  %2632 = vmatpush1.msra.mxu0 %v2598
  %2633 = vmatprep.subr.mxu0 0.0
  %2634 = vmatpush1.msra.mxu0 %v2599
  %2635 = vmatprep.subr.mxu0 0.0
  %2636 = vmatpush1.msra.mxu0 %v2600
  %2637 = vmatprep.subr.mxu0 0.0
  %2638 = vmatpush1.msra.mxu0 %v2601
  %2639 = vmatprep.subr.mxu0 0.0
  %2640 = vmatpush1.msra.mxu0 %v2602
  %2641 = vmatprep.subr.mxu0 0.0
  %2642 = vmatpush1.msra.mxu0 %v2603
  %2643 = vmatprep.subr.mxu0 0.0
  %2644 = vmatpush1.msra.mxu0 0.0
  %2645 = vmatprep.subr.mxu0 0.0
  %2646 = vmatpush1.msra.mxu0 0.0
  %2647 = vmatprep.subr.mxu0 0.0
  %2648 = vmatpush1.msra.mxu0 0.0
  %2649 = vmatprep.subr.mxu0 0.0
  %2650 = vmatpush1.msra.mxu0 0.0
  %2651 = vmatprep.subr.mxu0 0.0
  %2652 = vmatpush1.msra.mxu0 0.0
  %2653 = vmatprep.subr.mxu0 0.0
  %2654 = vmatpush1.msra.mxu0 0.0
  %2655 = vmatprep.subr.mxu0 0.0
  %2656 = vmatpush1.msra.mxu0 0.0
  %2657 = vmatprep.subr.mxu0 0.0
  %2658 = vmatpush1.msra.mxu0 0.0
  %2659 = vmatprep.subr.mxu0 0.0
  %2660 = vmatpush1.msra.mxu0 0.0
  %2661 = vmatprep.subr.mxu0 0.0
  %2662 = vmatpush1.msra.mxu0 0.0
  %2663 = vmatprep.subr.mxu0 0.0
  %2664 = vmatpush1.msra.mxu0 0.0
  %2665 = vmatprep.subr.mxu0 0.0
  %2666 = vmatpush1.msra.mxu0 0.0
  %2667 = vmatprep.subr.mxu0 0.0
  %2668 = vmatpush1.msra.mxu0 0.0
  %2669 = vmatprep.subr.mxu0 0.0
  %2670 = vmatpush1.msra.mxu0 0.0
  %2671 = vmatprep.subr.mxu0 0.0
  %2672 = vmatpush1.msra.mxu0 0.0
  %2673 = vmatprep.subr.mxu0 0.0
  %2674 = vmatpush1.msra.mxu0 0.0
  %2675 = vmatprep.subr.mxu0 0.0
  %2676 = vmatpush1.msra.mxu0 0.0
  %2677 = vmatprep.subr.mxu0 0.0
  %2678 = vmatpush1.msra.mxu0 0.0
  %2679 = vmatprep.subr.mxu0 0.0
  %2680 = vmatpush1.msra.mxu0 0.0
  %2681 = vmatprep.subr.mxu0 0.0
  %2682 = vmatpush1.msra.mxu0 0.0
  %2683 = vmatprep.subr.mxu0 0.0
  %2684 = vmatpush1.msra.mxu0 0.0
  %2685 = vmatprep.subr.mxu0 0.0
  %2686 = vmatpush1.msra.mxu0 0.0
  %2687 = vmatprep.subr.mxu0 0.0
  %2688 = vmatpush1.msra.mxu0 0.0
  %2689 = vmatprep.subr.mxu0 0.0
  %2690 = vmatpush1.msra.mxu0 0.0
  %2691 = vmatprep.mubr.f32.mxu0 0.0
  %2692 = vmatmul.mubr.f32.gmra.mrb[0].mxu0 %v2613
  %v2693 = vpop.f32.mrb[0].mxu0
  %v2694 = vadd.f32 %v2610, %v2693
  %v2695 = vpop.f32.mrb[0].mxu0
  %2696 = vmatprep.mubr.f32.mxu0 0.0
  %2697 = vmatmul.mubr.f32.gmra.mrb[0].mxu0 %v2616
  %v2698 = vpop.f32.mrb[0].mxu0
  %v2699 = vadd.f32 %v2610, %v2698
  %v2700 = vpop.f32.mrb[0].mxu0
  %2701 = vmatprep.mubr.f32.mxu0 0.0
  %2702 = vmatmul.mubr.f32.gmra.mrb[0].mxu0 %v2619
  %v2703 = vpop.f32.mrb[0].mxu0
  %v2704 = vadd.f32 %v2610, %v2703
  %v2705 = vpop.f32.mrb[0].mxu0
  %2706 = vmatprep.mubr.f32.mxu0 0.0
  %2707 = vmatmul.mubr.f32.gmra.mrb[0].mxu0 %v2622
  %v2708 = vpop.f32.mrb[0].mxu0
  %v2709 = vadd.f32 %v2610, %v2708
  %v2710 = vpop.f32.mrb[0].mxu0
  %2711 = vmatprep.mubr.f32.mxu0 0.0
  %2712 = vmatmul.mubr.f32.gmra.mrb[0].mxu0 %v2625
  %v2713 = vpop.f32.mrb[0].mxu0
  %v2714 = vadd.f32 %v2610, %v2713
  %v2715 = vpop.f32.mrb[0].mxu0
  %2716 = vdwg.mxu0
  %v2717 = vadd.f32 %v2467, %v2694
  %v2718 = vadd.f32 %v2468, %v2699
  %v2719 = vadd.f32 %v2469, %v2704
  %v2720 = vadd.f32 %v2470, %v2709
  %v2721 = vadd.f32 %v2471, %v2714
  %v2722 = vsel %vm203, %v2717, 0.0
  %2723 = vadd.xlane.f32.xlu0 %v2722
  %v2724 = vpop.xlane.xlu0 %2723
  %v2725 = vsel %vm203, %v2718, 0.0
  %2726 = vadd.xlane.f32.xlu0 %v2725
  %v2727 = vpop.xlane.xlu0 %2726
  %v2728 = vsel %vm203, %v2719, 0.0
  %2729 = vadd.xlane.f32.xlu0 %v2728
  %v2730 = vpop.xlane.xlu0 %2729
  %v2731 = vsel %vm203, %v2720, 0.0
  %2732 = vadd.xlane.f32.xlu0 %v2731
  %v2733 = vpop.xlane.xlu0 %2732
  %v2734 = vsel %vm203, %v2721, 0.0
  %2735 = vadd.xlane.f32.xlu0 %v2734
  %v2736 = vpop.xlane.xlu0 %2735
  %v2737 = vmul.f32 %v2724, %v1097
  %v2738 = vmul.f32 %v2727, %v1097
  %v2739 = vmul.f32 %v2730, %v1097
  %v2740 = vmul.f32 %v2733, %v1097
  %v2741 = vmul.f32 %v2736, %v1097
  %v2742 = vsub.f32 %v2717, %v2737
  %v2743 = vsub.f32 %v2718, %v2738
  %v2744 = vsub.f32 %v2719, %v2739
  %v2745 = vsub.f32 %v2720, %v2740
  %v2746 = vsub.f32 %v2721, %v2741
  %v2747 = vmul.f32 %v2742, %v2742
  %v2748 = vmul.f32 %v2743, %v2743
  %v2749 = vmul.f32 %v2744, %v2744
  %v2750 = vmul.f32 %v2745, %v2745
  %v2751 = vmul.f32 %v2746, %v2746
  %v2752 = vsel %vm203, %v2747, 0.0
  %2753 = vadd.xlane.f32.xlu0 %v2752
  %v2754 = vpop.xlane.xlu0 %2753
  %v2755 = vsel %vm203, %v2748, 0.0
  %2756 = vadd.xlane.f32.xlu0 %v2755
  %v2757 = vpop.xlane.xlu0 %2756
  %v2758 = vsel %vm203, %v2749, 0.0
  %2759 = vadd.xlane.f32.xlu0 %v2758
  %v2760 = vpop.xlane.xlu0 %2759
  %v2761 = vsel %vm203, %v2750, 0.0
  %2762 = vadd.xlane.f32.xlu0 %v2761
  %v2763 = vpop.xlane.xlu0 %2762
  %v2764 = vsel %vm203, %v2751, 0.0
  %2765 = vadd.xlane.f32.xlu0 %v2764
  %v2766 = vpop.xlane.xlu0 %2765
  %v2767 = vmul.f32 %v2754, %v1097
  %v2768 = vmul.f32 %v2757, %v1097
  %v2769 = vmul.f32 %v2760, %v1097
  %v2770 = vmul.f32 %v2763, %v1097
  %v2771 = vmul.f32 %v2766, %v1097
  %v2772 = vadd.f32 %v2767, 1e-05
  %v2773 = vadd.f32 %v2768, 1e-05
  %v2774 = vadd.f32 %v2769, 1e-05
  %v2775 = vadd.f32 %v2770, 1e-05
  %v2776 = vadd.f32 %v2771, 1e-05
  %v2777 = vrsqrt.pop %v2772
  %v2778 = vrsqrt.pop %v2773
  %v2779 = vrsqrt.pop %v2774
  %v2780 = vrsqrt.pop %v2775
  %v2781 = vrsqrt.pop %v2776
  %v2782 = vmul.f32 %v2742, %v2777
  %v2783 = vmul.f32 %v2743, %v2778
  %v2784 = vmul.f32 %v2744, %v2779
  %v2785 = vmul.f32 %v2745, %v2780
  %v2786 = vmul.f32 %v2746, %v2781
  %v2787 = vlaneseq
  %v2788 = vshrl.u32 %v2787, 7
  %v2789 = vsub.s32 2, %v2788
  %v2790 = vrot.slane %v1497, %v2789
  %v2791 = vmul.f32 %v2782, %v2790
  %v2792 = vmul.f32 %v2783, %v2790
  %v2793 = vmul.f32 %v2784, %v2790
  %v2794 = vmul.f32 %v2785, %v2790
  %v2795 = vmul.f32 %v2786, %v2790
  %v2796 = vlaneseq
  %v2797 = vshrl.u32 %v2796, 7
  %v2798 = vsub.s32 3, %v2797
  %v2799 = vrot.slane %v1497, %v2798
  %v2800 = vadd.f32 %v2791, %v2799
  %v2801 = vadd.f32 %v2792, %v2799
  %v2802 = vadd.f32 %v2793, %v2799
  %v2803 = vadd.f32 %v2794, %v2799
  %v2804 = vadd.f32 %v2795, %v2799
  %v2805 = vld [vmem:[%s14] sm:$0xff]
  %v2806 = vld [vmem:[%s14 + $0x8] sm:$0xff]
  %v2807 = vld [vmem:[%s14 + $0x10] sm:$0xff]
  %v2808 = vld [vmem:[%s14 + $0x18] sm:$0xff]
  %v2809 = vld [vmem:[%s15] sm:$0x1]
  %v2811 = vlaneseq
  %v2812 = vshrl.u32 %v2811, 7
  %v2813 = vsub.s32 0, %v2812
  %v2814 = vrot.slane %v2809, %v2813
  %v2817 = vsel %vm203, %v2800, 0
  %v2820 = vsel %vm203, %v2801, 0
  %v2823 = vsel %vm203, %v2802, 0
  %v2826 = vsel %vm203, %v2803, 0
  %v2829 = vsel %vm203, %v2804, 0
  %2831 = vmatprep.subr.mxu0 0.0
  %2832 = vmatpush1.msra.mxu0 %v2805
  %2833 = vmatprep.subr.mxu0 0.0
  %2834 = vmatpush1.msra.mxu0 %v2806
  %2835 = vmatprep.subr.mxu0 0.0
  %2836 = vmatpush1.msra.mxu0 %v2807
  %2837 = vmatprep.subr.mxu0 0.0
  %2838 = vmatpush1.msra.mxu0 %v2808
  %2839 = vmatprep.subr.mxu0 0.0
  %2840 = vmatpush1.msra.mxu0 0.0
  %2841 = vmatprep.subr.mxu0 0.0
  %2842 = vmatpush1.msra.mxu0 0.0
  %2843 = vmatprep.subr.mxu0 0.0
  %2844 = vmatpush1.msra.mxu0 0.0
  %2845 = vmatprep.subr.mxu0 0.0
  %2846 = vmatpush1.msra.mxu0 0.0
  %2847 = vmatprep.subr.mxu0 0.0
  %2848 = vmatpush1.msra.mxu0 0.0
  %2849 = vmatprep.subr.mxu0 0.0
  %2850 = vmatpush1.msra.mxu0 0.0
  %2851 = vmatprep.subr.mxu0 0.0
  %2852 = vmatpush1.msra.mxu0 0.0
  %2853 = vmatprep.subr.mxu0 0.0
  %2854 = vmatpush1.msra.mxu0 0.0
  %2855 = vmatprep.subr.mxu0 0.0
  %2856 = vmatpush1.msra.mxu0 0.0
  %2857 = vmatprep.subr.mxu0 0.0
  %2858 = vmatpush1.msra.mxu0 0.0
  %2859 = vmatprep.subr.mxu0 0.0
  %2860 = vmatpush1.msra.mxu0 0.0
  %2861 = vmatprep.subr.mxu0 0.0
  %2862 = vmatpush1.msra.mxu0 0.0
  %2863 = vmatprep.subr.mxu0 0.0
  %2864 = vmatpush1.msra.mxu0 0.0
  %2865 = vmatprep.subr.mxu0 0.0
  %2866 = vmatpush1.msra.mxu0 0.0
  %2867 = vmatprep.subr.mxu0 0.0
  %2868 = vmatpush1.msra.mxu0 0.0
  %2869 = vmatprep.subr.mxu0 0.0
  %2870 = vmatpush1.msra.mxu0 0.0
  %2871 = vmatprep.subr.mxu0 0.0
  %2872 = vmatpush1.msra.mxu0 0.0
  %2873 = vmatprep.subr.mxu0 0.0
  %2874 = vmatpush1.msra.mxu0 0.0
  %2875 = vmatprep.subr.mxu0 0.0
  %2876 = vmatpush1.msra.mxu0 0.0
  %2877 = vmatprep.subr.mxu0 0.0
  %2878 = vmatpush1.msra.mxu0 0.0
  %2879 = vmatprep.subr.mxu0 0.0
  %2880 = vmatpush1.msra.mxu0 0.0
  %2881 = vmatprep.subr.mxu0 0.0
  %2882 = vmatpush1.msra.mxu0 0.0
  %2883 = vmatprep.subr.mxu0 0.0
  %2884 = vmatpush1.msra.mxu0 0.0
  %2885 = vmatprep.subr.mxu0 0.0
  %2886 = vmatpush1.msra.mxu0 0.0
  %2887 = vmatprep.subr.mxu0 0.0
  %2888 = vmatpush1.msra.mxu0 0.0
  %2889 = vmatprep.subr.mxu0 0.0
  %2890 = vmatpush1.msra.mxu0 0.0
  %2891 = vmatprep.subr.mxu0 0.0
  %2892 = vmatpush1.msra.mxu0 0.0
  %2893 = vmatprep.subr.mxu0 0.0
  %2894 = vmatpush1.msra.mxu0 0.0
  %2895 = vmatprep.mubr.f32.mxu0 0.0
  %2896 = vmatmul.mubr.f32.gmra.mrb[0].mxu0 %v2817
  %v2897 = vpop.f32.mrb[0].mxu0
  %v2898 = vadd.f32 %v2814, %v2897
  %v2899 = vpop.f32.mrb[0].mxu0
  %2900 = vmatprep.mubr.f32.mxu0 0.0
  %2901 = vmatmul.mubr.f32.gmra.mrb[0].mxu0 %v2820
  %v2902 = vpop.f32.mrb[0].mxu0
  %v2903 = vadd.f32 %v2814, %v2902
  %v2904 = vpop.f32.mrb[0].mxu0
  %2905 = vmatprep.mubr.f32.mxu0 0.0
  %2906 = vmatmul.mubr.f32.gmra.mrb[0].mxu0 %v2823
  %v2907 = vpop.f32.mrb[0].mxu0
  %v2908 = vadd.f32 %v2814, %v2907
  %v2909 = vpop.f32.mrb[0].mxu0
  %2910 = vmatprep.mubr.f32.mxu0 0.0
  %2911 = vmatmul.mubr.f32.gmra.mrb[0].mxu0 %v2826
  %v2912 = vpop.f32.mrb[0].mxu0
  %v2913 = vadd.f32 %v2814, %v2912
  %v2914 = vpop.f32.mrb[0].mxu0
  %2915 = vmatprep.mubr.f32.mxu0 0.0
  %2916 = vmatmul.mubr.f32.gmra.mrb[0].mxu0 %v2829
  %v2917 = vpop.f32.mrb[0].mxu0
  %v2918 = vadd.f32 %v2814, %v2917
  %v2919 = vpop.f32.mrb[0].mxu0
  %2920 = vdwg.mxu0
  %vm2921 = vcmask 15360
  %v2922 = vsel %vm2921, %v2898, -inf
  %2923 = vmax.xlane.f32.xlu0 %v2922
  %v2924 = vpop.xlane.xlu0 %2923
  %v2925 = vsel %vm2921, %v2903, -inf
  %2926 = vmax.xlane.f32.xlu0 %v2925
  %v2927 = vpop.xlane.xlu0 %2926
  %v2928 = vsel %vm2921, %v2908, -inf
  %2929 = vmax.xlane.f32.xlu0 %v2928
  %v2930 = vpop.xlane.xlu0 %2929
  %v2931 = vsel %vm2921, %v2913, -inf
  %2932 = vmax.xlane.f32.xlu0 %v2931
  %v2933 = vpop.xlane.xlu0 %2932
  %v2934 = vsel %vm2921, %v2918, -inf
  %2935 = vmax.xlane.f32.xlu0 %v2934
  %v2936 = vpop.xlane.xlu0 %2935
  %v2937 = vsub.f32 %v2898, %v2924
  %v2938 = vsub.f32 %v2903, %v2927
  %v2939 = vsub.f32 %v2908, %v2930
  %v2940 = vsub.f32 %v2913, %v2933
  %v2941 = vsub.f32 %v2918, %v2936
  %v2942 = vmul.f32 %v2937, 1.442695
  %v2943 = vpow.pop %v2942
  %v2944 = vmul.f32 %v2938, 1.442695
  %v2945 = vpow.pop %v2944
  %v2946 = vmul.f32 %v2939, 1.442695
  %v2947 = vpow.pop %v2946
  %v2948 = vmul.f32 %v2940, 1.442695
  %v2949 = vpow.pop %v2948
  %v2950 = vmul.f32 %v2941, 1.442695
  %v2951 = vpow.pop %v2950
  %v2952 = vsel %vm2921, %v2943, 0.0
  %2953 = vadd.xlane.f32.xlu0 %v2952
  %v2954 = vpop.xlane.xlu0 %2953
  %v2955 = vsel %vm2921, %v2945, 0.0
  %2956 = vadd.xlane.f32.xlu0 %v2955
  %v2957 = vpop.xlane.xlu0 %2956
  %v2958 = vsel %vm2921, %v2947, 0.0
  %2959 = vadd.xlane.f32.xlu0 %v2958
  %v2960 = vpop.xlane.xlu0 %2959
  %v2961 = vsel %vm2921, %v2949, 0.0
  %2962 = vadd.xlane.f32.xlu0 %v2961
  %v2963 = vpop.xlane.xlu0 %2962
  %v2964 = vsel %vm2921, %v2951, 0.0
  %2965 = vadd.xlane.f32.xlu0 %v2964
  %v2966 = vpop.xlane.xlu0 %2965
  %v2967 = vlog2.pop %v2954
  %v2968 = vmul.f32 %v2967, 0.6931472
  %v2969 = vlog2.pop %v2957
  %v2970 = vmul.f32 %v2969, 0.6931472
  %v2971 = vlog2.pop %v2960
  %v2972 = vmul.f32 %v2971, 0.6931472
  %v2973 = vlog2.pop %v2963
  %v2974 = vmul.f32 %v2973, 0.6931472
  %v2975 = vlog2.pop %v2966
  %v2976 = vmul.f32 %v2975, 0.6931472
  %v2977 = vadd.f32 %v2924, %v2968
  %v2978 = vadd.f32 %v2927, %v2970
  %v2979 = vadd.f32 %v2930, %v2972
  %v2980 = vadd.f32 %v2933, %v2974
  %v2981 = vadd.f32 %v2936, %v2976
  %v2982 = vsub.f32 %v2898, %v2977
  %v2983 = vsub.f32 %v2903, %v2978
  %v2984 = vsub.f32 %v2908, %v2979
  %v2985 = vsub.f32 %v2913, %v2980
  %v2986 = vsub.f32 %v2918, %v2981
  %v2987 = vand.u32 2147483647, %v2898
  %v2988 = vand.u32 2147483647, %v2903
  %v2989 = vand.u32 2147483647, %v2908
  %v2990 = vand.u32 2147483647, %v2913
  %v2991 = vand.u32 2147483647, %v2918
  %v2992 = vadd.f32 %v2987, 1.0
  %v2993 = vadd.f32 %v2988, 1.0
  %v2994 = vadd.f32 %v2989, 1.0
  %v2995 = vadd.f32 %v2990, 1.0
  %v2996 = vadd.f32 %v2991, 1.0
  %v2997 = vrcp.pop %v2992
  %v2998 = vrcp.pop %v2993
  %v2999 = vrcp.pop %v2994
  %v3000 = vrcp.pop %v2995
  %v3001 = vrcp.pop %v2996
  %v3002 = vmul.f32 %v2898, %v2997
  %v3003 = vmul.f32 %v2903, %v2998
  %v3004 = vmul.f32 %v2908, %v2999
  %v3005 = vmul.f32 %v2913, %v3000
  %v3006 = vmul.f32 %v2918, %v3001
  %v3007 = vadd.f32 %v3002, 1.0
  %v3008 = vadd.f32 %v3003, 1.0
  %v3009 = vadd.f32 %v3004, 1.0
  %v3010 = vadd.f32 %v3005, 1.0
  %v3011 = vadd.f32 %v3006, 1.0
  %v3012 = vmul.f32 %v3007, 6.2831855
  %v3013 = vmul.f32 %v3008, 6.2831855
  %v3014 = vmul.f32 %v3009, 6.2831855
  %v3015 = vmul.f32 %v3010, 6.2831855
  %v3016 = vmul.f32 %v3011, 6.2831855
  %v3017 = vsel %vm2921, %v2982, %v3012
  %v3018 = vsel %vm2921, %v2983, %v3013
  %v3019 = vsel %vm2921, %v2984, %v3014
  %v3020 = vsel %vm2921, %v2985, %v3015
  %v3021 = vsel %vm2921, %v2986, %v3016
  %vm3022 = vcmask 31744
  %3023 = vst.msk [vmem:[%s16] sm:$0xff] %vm3022, %v3017
  %3024 = vst.msk [vmem:[%s16 + $0x8] sm:$0xff] %vm3022, %v3018
  %3025 = vst.msk [vmem:[%s16 + $0x10] sm:$0xff] %vm3022, %v3019
  %3026 = vst.msk [vmem:[%s16 + $0x18] sm:$0xff] %vm3022, %v3020
  %3027 = vst.msk [vmem:[%s16 + $0x20] sm:$0xff] %vm3022, %v3021
  // Predicated region
  $region66: #{tpu_custom_call.1} parent=0 // pred_check
    _
  $region67: #{tpu_custom_call.1} parent=0 // pred_check_branch
    %3029 = sbr.rel (0) target = $region69
  $region68: #{tpu_custom_call.1} parent=0 // pred_region
    _
  $region69: #{tpu_custom_call.1} parent=0 // pred_fallthru
    _
  // Predicated region
  $region70: #{tpu_custom_call.1} parent=0 // pred_check
    _
  $region71: #{tpu_custom_call.1} parent=0 // pred_check_branch
    %3031 = sbr.rel (0) target = $region73
  $region72: #{tpu_custom_call.1} parent=0 // pred_region
    _
  $region73: #{tpu_custom_call.1} parent=0 // pred_fallthru
    _

</llo_original>
